<compile_context>
chip_gen: v7x
topology: tpu7x:2x2x1
jax: 0.10.0
libtpu: 0.0.40
codegen_flags: <defaults>
</compile_context>

<pallas_src>
import jax
import jax.numpy as jnp
from jax.experimental import pallas as pl
from jax.experimental.pallas import tpu as pltpu

H1, H2, H3 = 512, 1024, 1024
LANE = 128
SUBLANE = 8


def _round_up(x, m):
    return (x + m - 1) // m * m


def _choose_batch_tile(n, tm_max=256):
    """Pick an MXU-friendly batch tile and padded batch size.

    Prefers (a) a multiple of 8 sublanes, (b) as large as possible up to
    tm_max, and (c) a grid of >= 2 parallel steps when the batch allows it so
    both TensorCores on v7x get work.
    """
    n8 = _round_up(n, SUBLANE)
    tm = min(tm_max, n8)
    if n8 // tm < 2 and n8 >= 2 * SUBLANE:
        tm = _round_up(n8 // 2, SUBLANE)
    n_pad = _round_up(n, tm)
    return tm, n_pad


def _vmem_limit_bytes(tm, in_pad, out_pad, mm_dtype):
    """Real VMEM footprint + headroom, clamped to 75% of physical VMEM."""
    mm = jnp.dtype(mm_dtype).itemsize
    weights = (in_pad * H1 + H1 * H2 + H2 * H3 + H3 * out_pad) * mm
    biases = (H1 + H2 + H3 + out_pad) * 4
    io_tiles = 2 * tm * in_pad * mm + 2 * tm * out_pad * 4   # double-buffered x / out
    acts = tm * (H1 + H2 + H3) * 4                           # h1/h2/h3 f32 temporaries
    need = int((2 * weights + biases + io_tiles + acts) * 1.25) + (8 << 20)
    try:
        cap = pltpu.get_tpu_info().vmem_capacity_bytes
    except Exception:
        cap = 64 << 20  # conservative fallback: v7x has 64 MiB per TensorCore
    return min(max(need, 48 << 20), int(cap * 0.75))


def mlp_kernel(x_ref, w1_ref, b1_ref, w2_ref, b2_ref,
               w3_ref, b3_ref, w4_ref, b4_ref, o_ref):
    mm = x_ref.dtype  # matmul input dtype (f32 or bf16); accumulation is always f32
    # Linear(in, 512)
    h = jnp.dot(x_ref[...], w1_ref[...],
                preferred_element_type=jnp.float32) + b1_ref[...]
    # Linear(512, 1024) + ReLU (bias add / ReLU stay in f32 on the VPU)
    h = jnp.dot(h.astype(mm), w2_ref[...],
                preferred_element_type=jnp.float32) + b2_ref[...]
    h = jnp.maximum(h, 0.0)
    # Linear(1024, 1024)
    h = jnp.dot(h.astype(mm), w3_ref[...],
                preferred_element_type=jnp.float32) + b3_ref[...]
    # Linear(1024, out)
    o_ref[...] = (jnp.dot(h.astype(mm), w4_ref[...],
                          preferred_element_type=jnp.float32)
                  + b4_ref[...]).astype(o_ref.dtype)


def neuralnet_forward(x, params, *, tm_max=256, matmul_dtype=jnp.float32):
    """Forward pass of NeuralNet: in_size -> 512 -> 1024 -> ReLU -> 1024 -> out_size."""
    (w1, b1), (w2, b2), (w3, b3), (w4, b4) = params
    n, in_size = x.shape
    out_size = w4.shape[1]

    in_pad = _round_up(in_size, LANE)
    out_pad = _round_up(out_size, LANE)
    tm, n_pad = _choose_batch_tile(n, tm_max)

    mm = matmul_dtype
    # Zero-pad feature dims to 128 lanes and the batch to a multiple of tm;
    # padding rows/cols are zeros so the math is unchanged. Biases stay f32.
    x_p = jnp.pad(x, ((0, n_pad - n), (0, in_pad - in_size))).astype(mm)
    w1_p = jnp.pad(w1, ((0, in_pad - in_size), (0, 0))).astype(mm)
    w2_p = w2.astype(mm)
    w3_p = w3.astype(mm)
    w4_p = jnp.pad(w4, ((0, 0), (0, out_pad - out_size))).astype(mm)
    b4_p = jnp.pad(b4, ((0, 0), (0, out_pad - out_size)))
    b1_p, b2_p, b3_p = b1, b2, b3

    def resident(shape):
        # Grid-invariant operand: keep a single VMEM copy (no double buffering).
        return pl.BlockSpec(shape, lambda i: (0,) * len(shape),
                            pipeline_mode=pl.Buffered(1))

    flops = 2 * n_pad * (in_pad * H1 + H1 * H2 + H2 * H3 + H3 * out_pad)
    bytes_accessed = (x_p.nbytes + w1_p.nbytes + w2_p.nbytes + w3_p.nbytes
                      + w4_p.nbytes + b1_p.nbytes + b2_p.nbytes + b3_p.nbytes
                      + b4_p.nbytes + n_pad * out_pad * 4)

    out = pl.pallas_call(
        mlp_kernel,
        out_shape=jax.ShapeDtypeStruct((n_pad, out_pad), jnp.float32),
        grid_spec=pltpu.PrefetchScalarGridSpec(
            num_scalar_prefetch=0,
            grid=(n_pad // tm,),
            in_specs=[
                pl.BlockSpec((tm, in_pad), lambda i: (i, 0)),   # x batch tile
                resident(w1_p.shape), resident(b1_p.shape),
                resident(w2_p.shape), resident(b2_p.shape),
                resident(w3_p.shape), resident(b3_p.shape),
                resident(w4_p.shape), resident(b4_p.shape),
            ],
            out_specs=pl.BlockSpec((tm, out_pad), lambda i: (i, 0)),
        ),
        compiler_params=pltpu.CompilerParams(
            dimension_semantics=("parallel",),
            vmem_limit_bytes=_vmem_limit_bytes(tm, in_pad, out_pad, mm),
        ),
        cost_estimate=pl.CostEstimate(flops=int(flops), transcendentals=0,
                                      bytes_accessed=int(bytes_accessed)),
    )(x_p, w1_p, b1_p, w2_p, b2_p, w3_p, b3_p, w4_p, b4_p)

    return out[:n, :out_size]


def init_linear(key, fan_in, fan_out):
    """Deterministic PyTorch-style init; returns W as (in, out) and b as (1, out)."""
    kw, kb = jax.random.split(key)
    bound = 1.0 / jnp.sqrt(float(fan_in))
    w = jax.random.uniform(kw, (fan_in, fan_out), jnp.float32, -bound, bound)
    b = jax.random.uniform(kb, (1, fan_out), jnp.float32, -bound, bound)
    return w, b


def make_params(key, in_size, out_size):
    k1, k2, k3, k4 = jax.random.split(key, 4)
    return (
        init_linear(k1, in_size, H1),
        init_linear(k2, H1, H2),
        init_linear(k3, H2, H3),
        init_linear(k4, H3, out_size),
    )


def reference_forward(x, params):
    (w1, b1), (w2, b2), (w3, b3), (w4, b4) = params
    h = x @ w1 + b1
    h = h @ w2 + b2
    h = jnp.maximum(h, 0.0)
    h = h @ w3 + b3
    return h @ w4 + b4


# TODO(synk): step()/Adam optimizer (training) is out of scope; forward pass only.

if __name__ == "__main__":
    key = jax.random.PRNGKey(0)
    k_x, k_p = jax.random.split(key)

    N, in_size, out_size = 8, 32, 16
    x = jax.random.normal(k_x, (N, in_size), jnp.float32)
    params = make_params(k_p, in_size, out_size)

    y_ref = reference_forward(x, params)

    # f32 matmuls: same numerics as the PyTorch module.
    y = jax.block_until_ready(neuralnet_forward(x, params, matmul_dtype=jnp.float32))
    assert y.shape == (N, out_size)
    assert jnp.allclose(y, y_ref, atol=1e-4, rtol=1e-4)

    # bf16 matmul inputs with f32 accumulation (native MXU fast path on v6e/v7x).
    y_bf16 = jax.block_until_ready(neuralnet_forward(x, params, matmul_dtype=jnp.bfloat16))
    assert y_bf16.shape == (N, out_size)
    assert jnp.allclose(y_bf16, y_ref, atol=2.5e-1, rtol=5e-2)

    print("KERNEL_OK")
</pallas_src>

<mosaic_0001>
module attributes {stable_mosaic.version = 11 : i64} {
  func.func @mlp_kernel(%arg0: i32, %arg1: memref<8x128xf32, #tpu.memory_space<vmem>>, %arg2: memref<128x512xf32, #tpu.memory_space<vmem>>, %arg3: memref<1x512xf32, #tpu.memory_space<vmem>>, %arg4: memref<512x1024xf32, #tpu.memory_space<vmem>>, %arg5: memref<1x1024xf32, #tpu.memory_space<vmem>>, %arg6: memref<1024x1024xf32, #tpu.memory_space<vmem>>, %arg7: memref<1x1024xf32, #tpu.memory_space<vmem>>, %arg8: memref<1024x128xf32, #tpu.memory_space<vmem>>, %arg9: memref<1x128xf32, #tpu.memory_space<vmem>>, %arg10: memref<8x128xf32, #tpu.memory_space<vmem>>) attributes {dimension_semantics = [#tpu.dimension_semantics<parallel>], iteration_bounds = array<i64: 1>, scalar_prefetch = 0 : i64, scratch_operands = 0 : i64, tpu.core_type = #tpu.core_type<tc>, window_params = [{transform_indices = @transform_0, window_bounds = array<i64: 8, 128>}, {pipeline_mode = #tpu.pipeline_mode<synchronous>, transform_indices = @transform_1, window_bounds = array<i64: 128, 512>}, {pipeline_mode = #tpu.pipeline_mode<synchronous>, transform_indices = @transform_2, window_bounds = array<i64: 1, 512>}, {pipeline_mode = #tpu.pipeline_mode<synchronous>, transform_indices = @transform_3, window_bounds = array<i64: 512, 1024>}, {pipeline_mode = #tpu.pipeline_mode<synchronous>, transform_indices = @transform_4, window_bounds = array<i64: 1, 1024>}, {pipeline_mode = #tpu.pipeline_mode<synchronous>, transform_indices = @transform_5, window_bounds = array<i64: 1024, 1024>}, {pipeline_mode = #tpu.pipeline_mode<synchronous>, transform_indices = @transform_6, window_bounds = array<i64: 1, 1024>}, {pipeline_mode = #tpu.pipeline_mode<synchronous>, transform_indices = @transform_7, window_bounds = array<i64: 1024, 128>}, {pipeline_mode = #tpu.pipeline_mode<synchronous>, transform_indices = @transform_8, window_bounds = array<i64: 1, 128>}, {transform_indices = @transform_9, window_bounds = array<i64: 8, 128>}]} {
    %c0 = arith.constant 0 : index
    %c0_0 = arith.constant 0 : index
    %0 = vector.load %arg1[%c0, %c0_0] : memref<8x128xf32, #tpu.memory_space<vmem>>, vector<8x128xf32>
    %c0_1 = arith.constant 0 : index
    %c0_2 = arith.constant 0 : index
    %1 = vector.load %arg2[%c0_1, %c0_2] : memref<128x512xf32, #tpu.memory_space<vmem>>, vector<128x512xf32>
    %cst = arith.constant dense<0.000000e+00> : vector<8x512xf32>
    %2 = tpu.matmul %0, %1, %cst {dimension_numbers = #tpu.dot_dimension_numbers<[1], [0], [0], [1], [0, 0, 1, 1], [], []>} : vector<8x128xf32>, vector<128x512xf32>, vector<8x512xf32> -> vector<8x512xf32>
    %c0_3 = arith.constant 0 : index
    %c0_4 = arith.constant 0 : index
    %3 = vector.load %arg3[%c0_3, %c0_4] : memref<1x512xf32, #tpu.memory_space<vmem>>, vector<1x512xf32>
    %4 = vector.broadcast %3 : vector<1x512xf32> to vector<8x512xf32>
    %5 = arith.addf %2, %4 : vector<8x512xf32>
    %c0_5 = arith.constant 0 : index
    %c0_6 = arith.constant 0 : index
    %6 = vector.load %arg4[%c0_5, %c0_6] : memref<512x1024xf32, #tpu.memory_space<vmem>>, vector<512x1024xf32>
    %cst_7 = arith.constant dense<0.000000e+00> : vector<8x1024xf32>
    %7 = tpu.matmul %5, %6, %cst_7 {dimension_numbers = #tpu.dot_dimension_numbers<[1], [0], [0], [1], [0, 0, 1, 1], [], []>} : vector<8x512xf32>, vector<512x1024xf32>, vector<8x1024xf32> -> vector<8x1024xf32>
    %c0_8 = arith.constant 0 : index
    %c0_9 = arith.constant 0 : index
    %8 = vector.load %arg5[%c0_8, %c0_9] : memref<1x1024xf32, #tpu.memory_space<vmem>>, vector<1x1024xf32>
    %9 = vector.broadcast %8 : vector<1x1024xf32> to vector<8x1024xf32>
    %10 = arith.addf %7, %9 : vector<8x1024xf32>
    %cst_10 = arith.constant 0.000000e+00 : f32
    %11 = vector.broadcast %cst_10 : f32 to vector<8x1024xf32>
    %12 = arith.maximumf %10, %11 : vector<8x1024xf32>
    %c0_11 = arith.constant 0 : index
    %c0_12 = arith.constant 0 : index
    %13 = vector.load %arg6[%c0_11, %c0_12] : memref<1024x1024xf32, #tpu.memory_space<vmem>>, vector<1024x1024xf32>
    %cst_13 = arith.constant dense<0.000000e+00> : vector<8x1024xf32>
    %14 = tpu.matmul %12, %13, %cst_13 {dimension_numbers = #tpu.dot_dimension_numbers<[1], [0], [0], [1], [0, 0, 1, 1], [], []>} : vector<8x1024xf32>, vector<1024x1024xf32>, vector<8x1024xf32> -> vector<8x1024xf32>
    %c0_14 = arith.constant 0 : index
    %c0_15 = arith.constant 0 : index
    %15 = vector.load %arg7[%c0_14, %c0_15] : memref<1x1024xf32, #tpu.memory_space<vmem>>, vector<1x1024xf32>
    %16 = vector.broadcast %15 : vector<1x1024xf32> to vector<8x1024xf32>
    %17 = arith.addf %14, %16 : vector<8x1024xf32>
    %c0_16 = arith.constant 0 : index
    %c0_17 = arith.constant 0 : index
    %18 = vector.load %arg8[%c0_16, %c0_17] : memref<1024x128xf32, #tpu.memory_space<vmem>>, vector<1024x128xf32>
    %cst_18 = arith.constant dense<0.000000e+00> : vector<8x128xf32>
    %19 = tpu.matmul %17, %18, %cst_18 {dimension_numbers = #tpu.dot_dimension_numbers<[1], [0], [0], [1], [0, 0, 1, 1], [], []>} : vector<8x1024xf32>, vector<1024x128xf32>, vector<8x128xf32> -> vector<8x128xf32>
    %c0_19 = arith.constant 0 : index
    %c0_20 = arith.constant 0 : index
    %20 = vector.load %arg9[%c0_19, %c0_20] : memref<1x128xf32, #tpu.memory_space<vmem>>, vector<1x128xf32>
    %21 = vector.broadcast %20 : vector<1x128xf32> to vector<8x128xf32>
    %22 = arith.addf %19, %21 : vector<8x128xf32>
    %c0_21 = arith.constant 0 : index
    %c0_22 = arith.constant 0 : index
    %23 = vector.load %arg10[%c0_21, %c0_22] : memref<8x128xf32, #tpu.memory_space<vmem>>, vector<8x128xf32>
    tpu.vector_store %arg10[%c0_21, %c0_22], %22 {strides = array<i32>} : memref<8x128xf32, #tpu.memory_space<vmem>>, vector<8x128xf32>,
    return
  }
  func.func @transform_0(%arg0: i32) -> (i32, i32) {
    %c0_i32 = arith.constant 0 : i32
    %c0_i32_0 = arith.constant 0 : i32
    return %arg0, %c0_i32 : i32, i32
  }
  func.func @transform_1(%arg0: i32) -> (i32, i32) {
    %c0_i32 = arith.constant 0 : i32
    %c0_i32_0 = arith.constant 0 : i32
    %c0_i32_1 = arith.constant 0 : i32
    return %c0_i32, %c0_i32_0 : i32, i32
  }
  func.func @transform_2(%arg0: i32) -> (i32, i32) {
    %c0_i32 = arith.constant 0 : i32
    %c0_i32_0 = arith.constant 0 : i32
    %c0_i32_1 = arith.constant 0 : i32
    return %c0_i32, %c0_i32_0 : i32, i32
  }
  func.func @transform_3(%arg0: i32) -> (i32, i32) {
    %c0_i32 = arith.constant 0 : i32
    %c0_i32_0 = arith.constant 0 : i32
    %c0_i32_1 = arith.constant 0 : i32
    return %c0_i32, %c0_i32_0 : i32, i32
  }
  func.func @transform_4(%arg0: i32) -> (i32, i32) {
    %c0_i32 = arith.constant 0 : i32
    %c0_i32_0 = arith.constant 0 : i32
    %c0_i32_1 = arith.constant 0 : i32
    return %c0_i32, %c0_i32_0 : i32, i32
  }
  func.func @transform_5(%arg0: i32) -> (i32, i32) {
    %c0_i32 = arith.constant 0 : i32
    %c0_i32_0 = arith.constant 0 : i32
    %c0_i32_1 = arith.constant 0 : i32
    return %c0_i32, %c0_i32_0 : i32, i32
  }
  func.func @transform_6(%arg0: i32) -> (i32, i32) {
    %c0_i32 = arith.constant 0 : i32
    %c0_i32_0 = arith.constant 0 : i32
    %c0_i32_1 = arith.constant 0 : i32
    return %c0_i32, %c0_i32_0 : i32, i32
  }
  func.func @transform_7(%arg0: i32) -> (i32, i32) {
    %c0_i32 = arith.constant 0 : i32
    %c0_i32_0 = arith.constant 0 : i32
    %c0_i32_1 = arith.constant 0 : i32
    return %c0_i32, %c0_i32_0 : i32, i32
  }
  func.func @transform_8(%arg0: i32) -> (i32, i32) {
    %c0_i32 = arith.constant 0 : i32
    %c0_i32_0 = arith.constant 0 : i32
    %c0_i32_1 = arith.constant 0 : i32
    return %c0_i32, %c0_i32_0 : i32, i32
  }
  func.func @transform_9(%arg0: i32) -> (i32, i32) {
    %c0_i32 = arith.constant 0 : i32
    %c0_i32_0 = arith.constant 0 : i32
    return %arg0, %c0_i32 : i32, i32
  }
}

</mosaic_0001>

<llo_original>
// kernel: tpu_custom_call.1
$region0: #{tpu_custom_call.1}
  #allocation0 [shape = 'u32[]', space=smem, size = 0x4, offset = 0x4, fixed_abs, tag = 'smem constant byte address 0x4 - core index']
  #allocation1 [shape = 'u32[144,128]{1,0:T(1,128)}', space=vmem, size = 0x12000, scoped, tag = 'internal scratch']
  %s0 = inlined_call_operand.hbm [shape: f32[8,128], index: 0, kind: input, shape index: {}]
  %s1 = inlined_call_operand.hbm [shape: f32[128,512], index: 1, kind: input, shape index: {}]
  %s2 = inlined_call_operand.hbm [shape: f32[1,512], index: 2, kind: input, shape index: {}]
  %s3 = inlined_call_operand.hbm [shape: f32[512,1024], index: 3, kind: input, shape index: {}]
  %s4 = inlined_call_operand.hbm [shape: f32[1,1024], index: 4, kind: input, shape index: {}]
  %s5 = inlined_call_operand.hbm [shape: f32[1024,1024], index: 5, kind: input, shape index: {}]
  %s6 = inlined_call_operand.hbm [shape: f32[1,1024], index: 6, kind: input, shape index: {}]
  %s7 = inlined_call_operand.hbm [shape: f32[1024,128], index: 7, kind: input, shape index: {}]
  %s8 = inlined_call_operand.hbm [shape: f32[1,128], index: 8, kind: input, shape index: {}]
  %s9 = inlined_call_operand.hbm [shape: f32[8,128], index: 9, kind: output, shape index: {}]
  %s10 = sld [smem:[#allocation0]]
  $region82: #{tpu_custom_call.1} parent=0
    _
  %s12 = ssub.s32 1, %s10
  %s13 = scalar_select 0, %s12, %s10
  $region1: #{tpu_custom_call.1} parent=0
    #allocation2 [shape = 'u8[4096]{0}', space=vmem, size = 0x1000, scoped, tag = 'input window, operand 0, single buffered']
    #allocation3 [shape = 's32[1]{0}', space=sflag, size = 0x4, scoped, tag = 'scoped memory for tpu_custom_call.1']
    #allocation4 [shape = 's32[1]{0}', space=sflag, size = 0x4, scoped, tag = 'scoped memory for tpu_custom_call.1']
    #allocation5 [shape = 'u8[262144]{0}', space=vmem, size = 0x40000, scoped, tag = 'input window, operand 1, single buffered']
    #allocation6 [shape = 's32[1]{0}', space=sflag, size = 0x4, scoped, tag = 'scoped memory for tpu_custom_call.1']
    #allocation7 [shape = 'u8[2048]{0}', space=vmem, size = 0x800, scoped, tag = 'input window, operand 2, single buffered']
    #allocation8 [shape = 'u8[2097152]{0}', space=vmem, size = 0x200000, scoped, tag = 'input window, operand 3, single buffered']
    #allocation9 [shape = 's32[1]{0}', space=sflag, size = 0x4, scoped, tag = 'scoped memory for tpu_custom_call.1']
    #allocation10 [shape = 'u8[4096]{0}', space=vmem, size = 0x1000, scoped, tag = 'input window, operand 4, single buffered']
    #allocation11 [shape = 'u8[4194304]{0}', space=vmem, size = 0x400000, scoped, tag = 'input window, operand 5, single buffered']
    #allocation12 [shape = 's32[1]{0}', space=sflag, size = 0x4, scoped, tag = 'scoped memory for tpu_custom_call.1']
    #allocation13 [shape = 'u8[4096]{0}', space=vmem, size = 0x1000, scoped, tag = 'input window, operand 6, single buffered']
    #allocation14 [shape = 'u8[524288]{0}', space=vmem, size = 0x80000, scoped, tag = 'input window, operand 7, single buffered']
    #allocation15 [shape = 's32[1]{0}', space=sflag, size = 0x4, scoped, tag = 'scoped memory for tpu_custom_call.1']
    #allocation16 [shape = 'u8[512]{0}', space=vmem, size = 0x400, scoped, tag = 'input window, operand 8, single buffered']
    #allocation17 [shape = 'u8[4096]{0}', space=vmem, size = 0x1000, scoped, tag = 'output window, operand 0, single buffered']
    %14 = vsyncpa [#allocation3], 0
    %15 = vsyncpa [#allocation6], 0
    %16 = vsyncpa [#allocation9], 0
    %17 = vsyncpa [#allocation12], 0
    %18 = vsyncpa [#allocation15], 0
    %19 = vsyncpa [#allocation4], 0
    // Predicated region
    $region2: #{tpu_custom_call.1} parent=1 // pred_check
      _
    $region3: #{tpu_custom_call.1} parent=1 // pred_check_branch
      %21 = sbr.rel (0) target = $region5
    $region4: #{tpu_custom_call.1} parent=1 // pred_region
      %s23 = ssub.s32 128, 128
      %24 = vsyncadd [#allocation3], %s23
      %s26 = sshll.u32 [#allocation2], 4
      %s27 = int_to_ptr.vmem [resolvable:$true] %s26
      %29 = dma.hbm_to_vmem [thread:$0]  %s0, 128, %s27, [#allocation3]
    $region5: #{tpu_custom_call.1} parent=1 // pred_fallthru
      _
    // Predicated region
    $region6: #{tpu_custom_call.1} parent=1 // pred_check
      _
    $region7: #{tpu_custom_call.1} parent=1 // pred_check_branch
      %31 = sbr.rel (0) target = $region9
    $region8: #{tpu_custom_call.1} parent=1 // pred_region
      %s33 = ssub.s32 8192, 8192
      %34 = vsyncadd [#allocation6], %s33
      %s35 = sshll.u32 [#allocation5], 4
      %s36 = int_to_ptr.vmem [resolvable:$true] %s35
      %41 = dma.hbm_to_vmem [thread:$0]  %s1, 8192, %s36, [#allocation6], 512, 512, 32
    $region9: #{tpu_custom_call.1} parent=1 // pred_fallthru
      _
    // Predicated region
    $region10: #{tpu_custom_call.1} parent=1 // pred_check
      _
    $region11: #{tpu_custom_call.1} parent=1 // pred_check_branch
      %43 = sbr.rel (0) target = $region13
    $region12: #{tpu_custom_call.1} parent=1 // pred_region
      %s45 = ssub.s32 64, 64
      %46 = vsyncadd [#allocation6], %s45
      %s48 = sshll.u32 [#allocation7], 4
      %s49 = int_to_ptr.vmem [resolvable:$true] %s48
      %51 = dma.hbm_to_vmem [thread:$0]  %s2, 64, %s49, [#allocation6]
    $region13: #{tpu_custom_call.1} parent=1 // pred_fallthru
      _
    // Predicated region
    $region14: #{tpu_custom_call.1} parent=1 // pred_check
      _
    $region15: #{tpu_custom_call.1} parent=1 // pred_check_branch
      %53 = sbr.rel (0) target = $region17
    $region16: #{tpu_custom_call.1} parent=1 // pred_region
      %s55 = ssub.s32 65536, 65536
      %56 = vsyncadd [#allocation9], %s55
      %s57 = sshll.u32 [#allocation8], 4
      %s58 = int_to_ptr.vmem [resolvable:$true] %s57
      %63 = dma.hbm_to_vmem [thread:$0]  %s3, 65536, %s58, [#allocation9], 1024, 1024, 64
    $region17: #{tpu_custom_call.1} parent=1 // pred_fallthru
      _
    // Predicated region
    $region18: #{tpu_custom_call.1} parent=1 // pred_check
      _
    $region19: #{tpu_custom_call.1} parent=1 // pred_check_branch
      %65 = sbr.rel (0) target = $region21
    $region20: #{tpu_custom_call.1} parent=1 // pred_region
      %s67 = ssub.s32 128, 128
      %68 = vsyncadd [#allocation9], %s67
      %s70 = sshll.u32 [#allocation10], 4
      %s71 = int_to_ptr.vmem [resolvable:$true] %s70
      %73 = dma.hbm_to_vmem [thread:$0]  %s4, 128, %s71, [#allocation9]
    $region21: #{tpu_custom_call.1} parent=1 // pred_fallthru
      _
    // Predicated region
    $region22: #{tpu_custom_call.1} parent=1 // pred_check
      _
    $region23: #{tpu_custom_call.1} parent=1 // pred_check_branch
      %75 = sbr.rel (0) target = $region25
    $region24: #{tpu_custom_call.1} parent=1 // pred_region
      %s77 = ssub.s32 131072, 131072
      %78 = vsyncadd [#allocation12], %s77
      %s79 = sshll.u32 [#allocation11], 4
      %s80 = int_to_ptr.vmem [resolvable:$true] %s79
      %85 = dma.hbm_to_vmem [thread:$0]  %s5, 131072, %s80, [#allocation12], 1024, 1024, 64
    $region25: #{tpu_custom_call.1} parent=1 // pred_fallthru
      _
    // Predicated region
    $region26: #{tpu_custom_call.1} parent=1 // pred_check
      _
    $region27: #{tpu_custom_call.1} parent=1 // pred_check_branch
      %87 = sbr.rel (0) target = $region29
    $region28: #{tpu_custom_call.1} parent=1 // pred_region
      %s89 = ssub.s32 128, 128
      %90 = vsyncadd [#allocation12], %s89
      %s92 = sshll.u32 [#allocation13], 4
      %s93 = int_to_ptr.vmem [resolvable:$true] %s92
      %95 = dma.hbm_to_vmem [thread:$0]  %s6, 128, %s93, [#allocation12]
    $region29: #{tpu_custom_call.1} parent=1 // pred_fallthru
      _
    // Predicated region
    $region30: #{tpu_custom_call.1} parent=1 // pred_check
      _
    $region31: #{tpu_custom_call.1} parent=1 // pred_check_branch
      %97 = sbr.rel (0) target = $region33
    $region32: #{tpu_custom_call.1} parent=1 // pred_region
      %s99 = ssub.s32 16384, 16384
      %100 = vsyncadd [#allocation15], %s99
      %s101 = sshll.u32 [#allocation14], 4
      %s102 = int_to_ptr.vmem [resolvable:$true] %s101
      %107 = dma.hbm_to_vmem [thread:$0]  %s7, 16384, %s102, [#allocation15], 128, 128, 8
    $region33: #{tpu_custom_call.1} parent=1 // pred_fallthru
      _
    // Predicated region
    $region34: #{tpu_custom_call.1} parent=1 // pred_check
      _
    $region35: #{tpu_custom_call.1} parent=1 // pred_check_branch
      %109 = sbr.rel (0) target = $region37
    $region36: #{tpu_custom_call.1} parent=1 // pred_region
      %s111 = ssub.s32 16, 16
      %112 = vsyncadd [#allocation15], %s111
      %s114 = sshll.u32 [#allocation16], 4
      %s115 = int_to_ptr.vmem [resolvable:$true] %s114
      %117 = dma.hbm_to_vmem [thread:$0]  %s8, 16, %s115, [#allocation15]
    $region37: #{tpu_custom_call.1} parent=1 // pred_fallthru
      _
    // Predicated region
    $region38: #{tpu_custom_call.1} parent=1 // pred_check
      _
    $region39: #{tpu_custom_call.1} parent=1 // pred_check_branch
      %119 = sbr.rel (0) target = $region41
    $region40: #{tpu_custom_call.1} parent=1 // pred_region
      %120 = dma.done [#allocation3], 128
    $region41: #{tpu_custom_call.1} parent=1 // pred_fallthru
      _
    // Predicated region
    $region42: #{tpu_custom_call.1} parent=1 // pred_check
      _
    $region43: #{tpu_custom_call.1} parent=1 // pred_check_branch
      %122 = sbr.rel (0) target = $region45
    $region44: #{tpu_custom_call.1} parent=1 // pred_region
      %123 = dma.done [#allocation6], 8192
    $region45: #{tpu_custom_call.1} parent=1 // pred_fallthru
      _
    // Predicated region
    $region46: #{tpu_custom_call.1} parent=1 // pred_check
      _
    $region47: #{tpu_custom_call.1} parent=1 // pred_check_branch
      %125 = sbr.rel (0) target = $region49
    $region48: #{tpu_custom_call.1} parent=1 // pred_region
      %126 = dma.done [#allocation6], 64
    $region49: #{tpu_custom_call.1} parent=1 // pred_fallthru
      _
    // Predicated region
    $region50: #{tpu_custom_call.1} parent=1 // pred_check
      _
    $region51: #{tpu_custom_call.1} parent=1 // pred_check_branch
      %128 = sbr.rel (0) target = $region53
    $region52: #{tpu_custom_call.1} parent=1 // pred_region
      %129 = dma.done [#allocation9], 65536
    $region53: #{tpu_custom_call.1} parent=1 // pred_fallthru
      _
    // Predicated region
    $region54: #{tpu_custom_call.1} parent=1 // pred_check
      _
    $region55: #{tpu_custom_call.1} parent=1 // pred_check_branch
      %131 = sbr.rel (0) target = $region57
    $region56: #{tpu_custom_call.1} parent=1 // pred_region
      %132 = dma.done [#allocation9], 128
    $region57: #{tpu_custom_call.1} parent=1 // pred_fallthru
      _
    // Predicated region
    $region58: #{tpu_custom_call.1} parent=1 // pred_check
      _
    $region59: #{tpu_custom_call.1} parent=1 // pred_check_branch
      %134 = sbr.rel (0) target = $region61
    $region60: #{tpu_custom_call.1} parent=1 // pred_region
      %135 = dma.done [#allocation12], 131072
    $region61: #{tpu_custom_call.1} parent=1 // pred_fallthru
      _
    // Predicated region
    $region62: #{tpu_custom_call.1} parent=1 // pred_check
      _
    $region63: #{tpu_custom_call.1} parent=1 // pred_check_branch
      %137 = sbr.rel (0) target = $region65
    $region64: #{tpu_custom_call.1} parent=1 // pred_region
      %138 = dma.done [#allocation12], 128
    $region65: #{tpu_custom_call.1} parent=1 // pred_fallthru
      _
    // Predicated region
    $region66: #{tpu_custom_call.1} parent=1 // pred_check
      _
    $region67: #{tpu_custom_call.1} parent=1 // pred_check_branch
      %140 = sbr.rel (0) target = $region69
    $region68: #{tpu_custom_call.1} parent=1 // pred_region
      %141 = dma.done [#allocation15], 16384
    $region69: #{tpu_custom_call.1} parent=1 // pred_fallthru
      _
    // Predicated region
    $region70: #{tpu_custom_call.1} parent=1 // pred_check
      _
    $region71: #{tpu_custom_call.1} parent=1 // pred_check_branch
      %143 = sbr.rel (0) target = $region73
    $region72: #{tpu_custom_call.1} parent=1 // pred_region
      %144 = dma.done [#allocation15], 16
    $region73: #{tpu_custom_call.1} parent=1 // pred_fallthru
      _
    %v145 = vld [vmem:[#allocation2] sm:$0xff]
    %v146 = vld [vmem:[#allocation5] sm:$0xff]
    %v147 = vld [vmem:[#allocation5 + $0x8] sm:$0xff]
    %v148 = vld [vmem:[#allocation5 + $0x10] sm:$0xff]
    %v149 = vld [vmem:[#allocation5 + $0x18] sm:$0xff]
    %v150 = vld [vmem:[#allocation5 + $0x20] sm:$0xff]
    %v151 = vld [vmem:[#allocation5 + $0x28] sm:$0xff]
    %v152 = vld [vmem:[#allocation5 + $0x30] sm:$0xff]
    %v153 = vld [vmem:[#allocation5 + $0x38] sm:$0xff]
    %v154 = vld [vmem:[#allocation5 + $0x40] sm:$0xff]
    %v155 = vld [vmem:[#allocation5 + $0x48] sm:$0xff]
    %v156 = vld [vmem:[#allocation5 + $0x50] sm:$0xff]
    %v157 = vld [vmem:[#allocation5 + $0x58] sm:$0xff]
    %v158 = vld [vmem:[#allocation5 + $0x60] sm:$0xff]
    %v159 = vld [vmem:[#allocation5 + $0x68] sm:$0xff]
    %v160 = vld [vmem:[#allocation5 + $0x70] sm:$0xff]
    %v161 = vld [vmem:[#allocation5 + $0x78] sm:$0xff]
    %v162 = vld [vmem:[#allocation5 + $0x80] sm:$0xff]
    %v163 = vld [vmem:[#allocation5 + $0x88] sm:$0xff]
    %v164 = vld [vmem:[#allocation5 + $0x90] sm:$0xff]
    %v165 = vld [vmem:[#allocation5 + $0x98] sm:$0xff]
    %v166 = vld [vmem:[#allocation5 + $0xa0] sm:$0xff]
    %v167 = vld [vmem:[#allocation5 + $0xa8] sm:$0xff]
    %v168 = vld [vmem:[#allocation5 + $0xb0] sm:$0xff]
    %v169 = vld [vmem:[#allocation5 + $0xb8] sm:$0xff]
    %v170 = vld [vmem:[#allocation5 + $0xc0] sm:$0xff]
    %v171 = vld [vmem:[#allocation5 + $0xc8] sm:$0xff]
    %v172 = vld [vmem:[#allocation5 + $0xd0] sm:$0xff]
    %v173 = vld [vmem:[#allocation5 + $0xd8] sm:$0xff]
    %v174 = vld [vmem:[#allocation5 + $0xe0] sm:$0xff]
    %v175 = vld [vmem:[#allocation5 + $0xe8] sm:$0xff]
    %v176 = vld [vmem:[#allocation5 + $0xf0] sm:$0xff]
    %v177 = vld [vmem:[#allocation5 + $0xf8] sm:$0xff]
    %v178 = vld [vmem:[#allocation5 + $0x100] sm:$0xff]
    %v179 = vld [vmem:[#allocation5 + $0x108] sm:$0xff]
    %v180 = vld [vmem:[#allocation5 + $0x110] sm:$0xff]
    %v181 = vld [vmem:[#allocation5 + $0x118] sm:$0xff]
    %v182 = vld [vmem:[#allocation5 + $0x120] sm:$0xff]
    %v183 = vld [vmem:[#allocation5 + $0x128] sm:$0xff]
    %v184 = vld [vmem:[#allocation5 + $0x130] sm:$0xff]
    %v185 = vld [vmem:[#allocation5 + $0x138] sm:$0xff]
    %v186 = vld [vmem:[#allocation5 + $0x140] sm:$0xff]
    %v187 = vld [vmem:[#allocation5 + $0x148] sm:$0xff]
    %v188 = vld [vmem:[#allocation5 + $0x150] sm:$0xff]
    %v189 = vld [vmem:[#allocation5 + $0x158] sm:$0xff]
    %v190 = vld [vmem:[#allocation5 + $0x160] sm:$0xff]
    %v191 = vld [vmem:[#allocation5 + $0x168] sm:$0xff]
    %v192 = vld [vmem:[#allocation5 + $0x170] sm:$0xff]
    %v193 = vld [vmem:[#allocation5 + $0x178] sm:$0xff]
    %v194 = vld [vmem:[#allocation5 + $0x180] sm:$0xff]
    %v195 = vld [vmem:[#allocation5 + $0x188] sm:$0xff]
    %v196 = vld [vmem:[#allocation5 + $0x190] sm:$0xff]
    %v197 = vld [vmem:[#allocation5 + $0x198] sm:$0xff]
    %v198 = vld [vmem:[#allocation5 + $0x1a0] sm:$0xff]
    %v199 = vld [vmem:[#allocation5 + $0x1a8] sm:$0xff]
    %v200 = vld [vmem:[#allocation5 + $0x1b0] sm:$0xff]
    %v201 = vld [vmem:[#allocation5 + $0x1b8] sm:$0xff]
    %v202 = vld [vmem:[#allocation5 + $0x1c0] sm:$0xff]
    %v203 = vld [vmem:[#allocation5 + $0x1c8] sm:$0xff]
    %v204 = vld [vmem:[#allocation5 + $0x1d0] sm:$0xff]
    %v205 = vld [vmem:[#allocation5 + $0x1d8] sm:$0xff]
    %v206 = vld [vmem:[#allocation5 + $0x1e0] sm:$0xff]
    %v207 = vld [vmem:[#allocation5 + $0x1e8] sm:$0xff]
    %v208 = vld [vmem:[#allocation5 + $0x1f0] sm:$0xff]
    %v209 = vld [vmem:[#allocation5 + $0x1f8] sm:$0xff]
    %v210 = vld [vmem:[#allocation7] sm:$0xf]
    %v212 = vlaneseq
    %v213 = vshrl.u32 %v212, 7
    %v214 = vsub.s32 0, %v213
    %v215 = vrot.slane %v210, %v214
    %v216 = vlaneseq
    %v217 = vshrl.u32 %v216, 7
    %v218 = vsub.s32 1, %v217
    %v219 = vrot.slane %v210, %v218
    %v220 = vlaneseq
    %v221 = vshrl.u32 %v220, 7
    %v222 = vsub.s32 2, %v221
    %v223 = vrot.slane %v210, %v222
    %v224 = vlaneseq
    %v225 = vshrl.u32 %v224, 7
    %v226 = vsub.s32 3, %v225
    %v227 = vrot.slane %v210, %v226
    %232 = vmatprep.subr.mxu0 %v147
    %233 = vmatpush1.msra.mxu0 %v146
    %234 = vmatprep.subr.mxu0 %v151
    %235 = vmatpush1.msra.mxu0 %v150
    %236 = vmatprep.subr.mxu0 %v155
    %237 = vmatpush1.msra.mxu0 %v154
    %238 = vmatprep.subr.mxu0 %v159
    %239 = vmatpush1.msra.mxu0 %v158
    %240 = vmatprep.subr.mxu0 %v163
    %241 = vmatpush1.msra.mxu0 %v162
    %242 = vmatprep.subr.mxu0 %v167
    %243 = vmatpush1.msra.mxu0 %v166
    %244 = vmatprep.subr.mxu0 %v171
    %245 = vmatpush1.msra.mxu0 %v170
    %246 = vmatprep.subr.mxu0 %v175
    %247 = vmatpush1.msra.mxu0 %v174
    %248 = vmatprep.subr.mxu0 %v179
    %249 = vmatpush1.msra.mxu0 %v178
    %250 = vmatprep.subr.mxu0 %v183
    %251 = vmatpush1.msra.mxu0 %v182
    %252 = vmatprep.subr.mxu0 %v187
    %253 = vmatpush1.msra.mxu0 %v186
    %254 = vmatprep.subr.mxu0 %v191
    %255 = vmatpush1.msra.mxu0 %v190
    %256 = vmatprep.subr.mxu0 %v195
    %257 = vmatpush1.msra.mxu0 %v194
    %258 = vmatprep.subr.mxu0 %v199
    %259 = vmatpush1.msra.mxu0 %v198
    %260 = vmatprep.subr.mxu0 %v203
    %261 = vmatpush1.msra.mxu0 %v202
    %262 = vmatprep.subr.mxu0 %v207
    %263 = vmatpush1.msra.mxu0 %v206
    %264 = vmatprep.subr.mxu0 0.0
    %265 = vmatpush1.msra.mxu0 0.0
    %266 = vmatprep.subr.mxu0 0.0
    %267 = vmatpush1.msra.mxu0 0.0
    %268 = vmatprep.subr.mxu0 0.0
    %269 = vmatpush1.msra.mxu0 0.0
    %270 = vmatprep.subr.mxu0 0.0
    %271 = vmatpush1.msra.mxu0 0.0
    %272 = vmatprep.subr.mxu0 0.0
    %273 = vmatpush1.msra.mxu0 0.0
    %274 = vmatprep.subr.mxu0 0.0
    %275 = vmatpush1.msra.mxu0 0.0
    %276 = vmatprep.subr.mxu0 0.0
    %277 = vmatpush1.msra.mxu0 0.0
    %278 = vmatprep.subr.mxu0 0.0
    %279 = vmatpush1.msra.mxu0 0.0
    %280 = vmatprep.subr.mxu0 0.0
    %281 = vmatpush1.msra.mxu0 0.0
    %282 = vmatprep.subr.mxu0 0.0
    %283 = vmatpush1.msra.mxu0 0.0
    %284 = vmatprep.subr.mxu0 0.0
    %285 = vmatpush1.msra.mxu0 0.0
    %286 = vmatprep.subr.mxu0 0.0
    %287 = vmatpush1.msra.mxu0 0.0
    %288 = vmatprep.subr.mxu0 0.0
    %289 = vmatpush1.msra.mxu0 0.0
    %290 = vmatprep.subr.mxu0 0.0
    %291 = vmatpush1.msra.mxu0 0.0
    %292 = vmatprep.subr.mxu0 0.0
    %293 = vmatpush1.msra.mxu0 0.0
    %294 = vmatprep.subr.mxu0 0.0
    %295 = vmatpush1.msra.mxu0 0.0
    %296 = vmatprep.mubr.f32.mxu0 0.0
    %297 = vmatmul.mubr.f32.gmra.mrb[0].mxu0 %v145
    %v298 = vpop.f32.mrb[0].mxu0
    %v299 = vadd.f32 %v215, %v298
    %v300 = vpop.f32.mrb[0].mxu0
    %v301 = vadd.f32 %v219, %v300
    %302 = vdwg.mxu0
    %303 = vmatprep.subr.mxu0 %v149
    %304 = vmatpush1.msra.mxu0 %v148
    %305 = vmatprep.subr.mxu0 %v153
    %306 = vmatpush1.msra.mxu0 %v152
    %307 = vmatprep.subr.mxu0 %v157
    %308 = vmatpush1.msra.mxu0 %v156
    %309 = vmatprep.subr.mxu0 %v161
    %310 = vmatpush1.msra.mxu0 %v160
    %311 = vmatprep.subr.mxu0 %v165
    %312 = vmatpush1.msra.mxu0 %v164
    %313 = vmatprep.subr.mxu0 %v169
    %314 = vmatpush1.msra.mxu0 %v168
    %315 = vmatprep.subr.mxu0 %v173
    %316 = vmatpush1.msra.mxu0 %v172
    %317 = vmatprep.subr.mxu0 %v177
    %318 = vmatpush1.msra.mxu0 %v176
    %319 = vmatprep.subr.mxu0 %v181
    %320 = vmatpush1.msra.mxu0 %v180
    %321 = vmatprep.subr.mxu0 %v185
    %322 = vmatpush1.msra.mxu0 %v184
    %323 = vmatprep.subr.mxu0 %v189
    %324 = vmatpush1.msra.mxu0 %v188
    %325 = vmatprep.subr.mxu0 %v193
    %326 = vmatpush1.msra.mxu0 %v192
    %327 = vmatprep.subr.mxu0 %v197
    %328 = vmatpush1.msra.mxu0 %v196
    %329 = vmatprep.subr.mxu0 %v201
    %330 = vmatpush1.msra.mxu0 %v200
    %331 = vmatprep.subr.mxu0 %v205
    %332 = vmatpush1.msra.mxu0 %v204
    %333 = vmatprep.subr.mxu0 %v209
    %334 = vmatpush1.msra.mxu0 %v208
    %335 = vmatprep.subr.mxu0 0.0
    %336 = vmatpush1.msra.mxu0 0.0
    %337 = vmatprep.subr.mxu0 0.0
    %338 = vmatpush1.msra.mxu0 0.0
    %339 = vmatprep.subr.mxu0 0.0
    %340 = vmatpush1.msra.mxu0 0.0
    %341 = vmatprep.subr.mxu0 0.0
    %342 = vmatpush1.msra.mxu0 0.0
    %343 = vmatprep.subr.mxu0 0.0
    %344 = vmatpush1.msra.mxu0 0.0
    %345 = vmatprep.subr.mxu0 0.0
    %346 = vmatpush1.msra.mxu0 0.0
    %347 = vmatprep.subr.mxu0 0.0
    %348 = vmatpush1.msra.mxu0 0.0
    %349 = vmatprep.subr.mxu0 0.0
    %350 = vmatpush1.msra.mxu0 0.0
    %351 = vmatprep.subr.mxu0 0.0
    %352 = vmatpush1.msra.mxu0 0.0
    %353 = vmatprep.subr.mxu0 0.0
    %354 = vmatpush1.msra.mxu0 0.0
    %355 = vmatprep.subr.mxu0 0.0
    %356 = vmatpush1.msra.mxu0 0.0
    %357 = vmatprep.subr.mxu0 0.0
    %358 = vmatpush1.msra.mxu0 0.0
    %359 = vmatprep.subr.mxu0 0.0
    %360 = vmatpush1.msra.mxu0 0.0
    %361 = vmatprep.subr.mxu0 0.0
    %362 = vmatpush1.msra.mxu0 0.0
    %363 = vmatprep.subr.mxu0 0.0
    %364 = vmatpush1.msra.mxu0 0.0
    %365 = vmatprep.subr.mxu0 0.0
    %366 = vmatpush1.msra.mxu0 0.0
    %367 = vmatprep.mubr.f32.mxu0 0.0
    %368 = vmatmul.mubr.f32.gmra.mrb[0].mxu0 %v145
    %v369 = vpop.f32.mrb[0].mxu0
    %v370 = vadd.f32 %v223, %v369
    %v371 = vpop.f32.mrb[0].mxu0
    %v372 = vadd.f32 %v227, %v371
    %373 = vdwg.mxu0
    %v374 = vld [vmem:[#allocation8] sm:$0xff]
    %v375 = vld [vmem:[#allocation8 + $0x8] sm:$0xff]
    %v376 = vld [vmem:[#allocation8 + $0x10] sm:$0xff]
    %v377 = vld [vmem:[#allocation8 + $0x18] sm:$0xff]
    %v378 = vld [vmem:[#allocation8 + $0x20] sm:$0xff]
    %v379 = vld [vmem:[#allocation8 + $0x28] sm:$0xff]
    %v380 = vld [vmem:[#allocation8 + $0x30] sm:$0xff]
    %v381 = vld [vmem:[#allocation8 + $0x38] sm:$0xff]
    %v382 = vld [vmem:[#allocation8 + $0x40] sm:$0xff]
    %v383 = vld [vmem:[#allocation8 + $0x48] sm:$0xff]
    %v384 = vld [vmem:[#allocation8 + $0x50] sm:$0xff]
    %v385 = vld [vmem:[#allocation8 + $0x58] sm:$0xff]
    %v386 = vld [vmem:[#allocation8 + $0x60] sm:$0xff]
    %v387 = vld [vmem:[#allocation8 + $0x68] sm:$0xff]
    %v388 = vld [vmem:[#allocation8 + $0x70] sm:$0xff]
    %v389 = vld [vmem:[#allocation8 + $0x78] sm:$0xff]
    %v390 = vld [vmem:[#allocation8 + $0x80] sm:$0xff]
    %v391 = vld [vmem:[#allocation8 + $0x88] sm:$0xff]
    %v392 = vld [vmem:[#allocation8 + $0x90] sm:$0xff]
    %v393 = vld [vmem:[#allocation8 + $0x98] sm:$0xff]
    %v394 = vld [vmem:[#allocation8 + $0xa0] sm:$0xff]
    %v395 = vld [vmem:[#allocation8 + $0xa8] sm:$0xff]
    %v396 = vld [vmem:[#allocation8 + $0xb0] sm:$0xff]
    %v397 = vld [vmem:[#allocation8 + $0xb8] sm:$0xff]
    %v398 = vld [vmem:[#allocation8 + $0xc0] sm:$0xff]
    %v399 = vld [vmem:[#allocation8 + $0xc8] sm:$0xff]
    %v400 = vld [vmem:[#allocation8 + $0xd0] sm:$0xff]
    %v401 = vld [vmem:[#allocation8 + $0xd8] sm:$0xff]
    %v402 = vld [vmem:[#allocation8 + $0xe0] sm:$0xff]
    %v403 = vld [vmem:[#allocation8 + $0xe8] sm:$0xff]
    %v404 = vld [vmem:[#allocation8 + $0xf0] sm:$0xff]
    %v405 = vld [vmem:[#allocation8 + $0xf8] sm:$0xff]
    %v406 = vld [vmem:[#allocation8 + $0x100] sm:$0xff]
    %v407 = vld [vmem:[#allocation8 + $0x108] sm:$0xff]
    %v408 = vld [vmem:[#allocation8 + $0x110] sm:$0xff]
    %v409 = vld [vmem:[#allocation8 + $0x118] sm:$0xff]
    %v410 = vld [vmem:[#allocation8 + $0x120] sm:$0xff]
    %v411 = vld [vmem:[#allocation8 + $0x128] sm:$0xff]
    %v412 = vld [vmem:[#allocation8 + $0x130] sm:$0xff]
    %v413 = vld [vmem:[#allocation8 + $0x138] sm:$0xff]
    %v414 = vld [vmem:[#allocation8 + $0x140] sm:$0xff]
    %v415 = vld [vmem:[#allocation8 + $0x148] sm:$0xff]
    %v416 = vld [vmem:[#allocation8 + $0x150] sm:$0xff]
    %v417 = vld [vmem:[#allocation8 + $0x158] sm:$0xff]
    %v418 = vld [vmem:[#allocation8 + $0x160] sm:$0xff]
    %v419 = vld [vmem:[#allocation8 + $0x168] sm:$0xff]
    %v420 = vld [vmem:[#allocation8 + $0x170] sm:$0xff]
    %v421 = vld [vmem:[#allocation8 + $0x178] sm:$0xff]
    %v422 = vld [vmem:[#allocation8 + $0x180] sm:$0xff]
    %v423 = vld [vmem:[#allocation8 + $0x188] sm:$0xff]
    %v424 = vld [vmem:[#allocation8 + $0x190] sm:$0xff]
    %v425 = vld [vmem:[#allocation8 + $0x198] sm:$0xff]
    %v426 = vld [vmem:[#allocation8 + $0x1a0] sm:$0xff]
    %v427 = vld [vmem:[#allocation8 + $0x1a8] sm:$0xff]
    %v428 = vld [vmem:[#allocation8 + $0x1b0] sm:$0xff]
    %v429 = vld [vmem:[#allocation8 + $0x1b8] sm:$0xff]
    %v430 = vld [vmem:[#allocation8 + $0x1c0] sm:$0xff]
    %v431 = vld [vmem:[#allocation8 + $0x1c8] sm:$0xff]
    %v432 = vld [vmem:[#allocation8 + $0x1d0] sm:$0xff]
    %v433 = vld [vmem:[#allocation8 + $0x1d8] sm:$0xff]
    %v434 = vld [vmem:[#allocation8 + $0x1e0] sm:$0xff]
    %v435 = vld [vmem:[#allocation8 + $0x1e8] sm:$0xff]
    %v436 = vld [vmem:[#allocation8 + $0x1f0] sm:$0xff]
    %v437 = vld [vmem:[#allocation8 + $0x1f8] sm:$0xff]
    %v438 = vld [vmem:[#allocation8 + $0x200] sm:$0xff]
    %v439 = vld [vmem:[#allocation8 + $0x208] sm:$0xff]
    %v440 = vld [vmem:[#allocation8 + $0x210] sm:$0xff]
    %v441 = vld [vmem:[#allocation8 + $0x218] sm:$0xff]
    %v442 = vld [vmem:[#allocation8 + $0x220] sm:$0xff]
    %v443 = vld [vmem:[#allocation8 + $0x228] sm:$0xff]
    %v444 = vld [vmem:[#allocation8 + $0x230] sm:$0xff]
    %v445 = vld [vmem:[#allocation8 + $0x238] sm:$0xff]
    %v446 = vld [vmem:[#allocation8 + $0x240] sm:$0xff]
    %v447 = vld [vmem:[#allocation8 + $0x248] sm:$0xff]
    %v448 = vld [vmem:[#allocation8 + $0x250] sm:$0xff]
    %v449 = vld [vmem:[#allocation8 + $0x258] sm:$0xff]
    %v450 = vld [vmem:[#allocation8 + $0x260] sm:$0xff]
    %v451 = vld [vmem:[#allocation8 + $0x268] sm:$0xff]
    %v452 = vld [vmem:[#allocation8 + $0x270] sm:$0xff]
    %v453 = vld [vmem:[#allocation8 + $0x278] sm:$0xff]
    %v454 = vld [vmem:[#allocation8 + $0x280] sm:$0xff]
    %v455 = vld [vmem:[#allocation8 + $0x288] sm:$0xff]
    %v456 = vld [vmem:[#allocation8 + $0x290] sm:$0xff]
    %v457 = vld [vmem:[#allocation8 + $0x298] sm:$0xff]
    %v458 = vld [vmem:[#allocation8 + $0x2a0] sm:$0xff]
    %v459 = vld [vmem:[#allocation8 + $0x2a8] sm:$0xff]
    %v460 = vld [vmem:[#allocation8 + $0x2b0] sm:$0xff]
    %v461 = vld [vmem:[#allocation8 + $0x2b8] sm:$0xff]
    %v462 = vld [vmem:[#allocation8 + $0x2c0] sm:$0xff]
    %v463 = vld [vmem:[#allocation8 + $0x2c8] sm:$0xff]
    %v464 = vld [vmem:[#allocation8 + $0x2d0] sm:$0xff]
    %v465 = vld [vmem:[#allocation8 + $0x2d8] sm:$0xff]
    %v466 = vld [vmem:[#allocation8 + $0x2e0] sm:$0xff]
    %v467 = vld [vmem:[#allocation8 + $0x2e8] sm:$0xff]
    %v468 = vld [vmem:[#allocation8 + $0x2f0] sm:$0xff]
    %v469 = vld [vmem:[#allocation8 + $0x2f8] sm:$0xff]
    %v470 = vld [vmem:[#allocation8 + $0x300] sm:$0xff]
    %v471 = vld [vmem:[#allocation8 + $0x308] sm:$0xff]
    %v472 = vld [vmem:[#allocation8 + $0x310] sm:$0xff]
    %v473 = vld [vmem:[#allocation8 + $0x318] sm:$0xff]
    %v474 = vld [vmem:[#allocation8 + $0x320] sm:$0xff]
    %v475 = vld [vmem:[#allocation8 + $0x328] sm:$0xff]
    %v476 = vld [vmem:[#allocation8 + $0x330] sm:$0xff]
    %v477 = vld [vmem:[#allocation8 + $0x338] sm:$0xff]
    %v478 = vld [vmem:[#allocation8 + $0x340] sm:$0xff]
    %v479 = vld [vmem:[#allocation8 + $0x348] sm:$0xff]
    %v480 = vld [vmem:[#allocation8 + $0x350] sm:$0xff]
    %v481 = vld [vmem:[#allocation8 + $0x358] sm:$0xff]
    %v482 = vld [vmem:[#allocation8 + $0x360] sm:$0xff]
    %v483 = vld [vmem:[#allocation8 + $0x368] sm:$0xff]
    %v484 = vld [vmem:[#allocation8 + $0x370] sm:$0xff]
    %v485 = vld [vmem:[#allocation8 + $0x378] sm:$0xff]
    %v486 = vld [vmem:[#allocation8 + $0x380] sm:$0xff]
    %v487 = vld [vmem:[#allocation8 + $0x388] sm:$0xff]
    %v488 = vld [vmem:[#allocation8 + $0x390] sm:$0xff]
    %v489 = vld [vmem:[#allocation8 + $0x398] sm:$0xff]
    %v490 = vld [vmem:[#allocation8 + $0x3a0] sm:$0xff]
    %v491 = vld [vmem:[#allocation8 + $0x3a8] sm:$0xff]
    %v492 = vld [vmem:[#allocation8 + $0x3b0] sm:$0xff]
    %v493 = vld [vmem:[#allocation8 + $0x3b8] sm:$0xff]
    %v494 = vld [vmem:[#allocation8 + $0x3c0] sm:$0xff]
    %v495 = vld [vmem:[#allocation8 + $0x3c8] sm:$0xff]
    %v496 = vld [vmem:[#allocation8 + $0x3d0] sm:$0xff]
    %v497 = vld [vmem:[#allocation8 + $0x3d8] sm:$0xff]
    %v498 = vld [vmem:[#allocation8 + $0x3e0] sm:$0xff]
    %v499 = vld [vmem:[#allocation8 + $0x3e8] sm:$0xff]
    %v500 = vld [vmem:[#allocation8 + $0x3f0] sm:$0xff]
    %v501 = vld [vmem:[#allocation8 + $0x3f8] sm:$0xff]
    %v502 = vld [vmem:[#allocation8 + $0x400] sm:$0xff]
    %v503 = vld [vmem:[#allocation8 + $0x408] sm:$0xff]
    %v504 = vld [vmem:[#allocation8 + $0x410] sm:$0xff]
    %v505 = vld [vmem:[#allocation8 + $0x418] sm:$0xff]
    %v506 = vld [vmem:[#allocation8 + $0x420] sm:$0xff]
    %v507 = vld [vmem:[#allocation8 + $0x428] sm:$0xff]
    %v508 = vld [vmem:[#allocation8 + $0x430] sm:$0xff]
    %v509 = vld [vmem:[#allocation8 + $0x438] sm:$0xff]
    %v510 = vld [vmem:[#allocation8 + $0x440] sm:$0xff]
    %v511 = vld [vmem:[#allocation8 + $0x448] sm:$0xff]
    %v512 = vld [vmem:[#allocation8 + $0x450] sm:$0xff]
    %v513 = vld [vmem:[#allocation8 + $0x458] sm:$0xff]
    %v514 = vld [vmem:[#allocation8 + $0x460] sm:$0xff]
    %v515 = vld [vmem:[#allocation8 + $0x468] sm:$0xff]
    %v516 = vld [vmem:[#allocation8 + $0x470] sm:$0xff]
    %v517 = vld [vmem:[#allocation8 + $0x478] sm:$0xff]
    %v518 = vld [vmem:[#allocation8 + $0x480] sm:$0xff]
    %v519 = vld [vmem:[#allocation8 + $0x488] sm:$0xff]
    %v520 = vld [vmem:[#allocation8 + $0x490] sm:$0xff]
    %v521 = vld [vmem:[#allocation8 + $0x498] sm:$0xff]
    %v522 = vld [vmem:[#allocation8 + $0x4a0] sm:$0xff]
    %v523 = vld [vmem:[#allocation8 + $0x4a8] sm:$0xff]
    %v524 = vld [vmem:[#allocation8 + $0x4b0] sm:$0xff]
    %v525 = vld [vmem:[#allocation8 + $0x4b8] sm:$0xff]
    %v526 = vld [vmem:[#allocation8 + $0x4c0] sm:$0xff]
    %v527 = vld [vmem:[#allocation8 + $0x4c8] sm:$0xff]
    %v528 = vld [vmem:[#allocation8 + $0x4d0] sm:$0xff]
    %v529 = vld [vmem:[#allocation8 + $0x4d8] sm:$0xff]
    %v530 = vld [vmem:[#allocation8 + $0x4e0] sm:$0xff]
    %v531 = vld [vmem:[#allocation8 + $0x4e8] sm:$0xff]
    %v532 = vld [vmem:[#allocation8 + $0x4f0] sm:$0xff]
    %v533 = vld [vmem:[#allocation8 + $0x4f8] sm:$0xff]
    %v534 = vld [vmem:[#allocation8 + $0x500] sm:$0xff]
    %v535 = vld [vmem:[#allocation8 + $0x508] sm:$0xff]
    %v536 = vld [vmem:[#allocation8 + $0x510] sm:$0xff]
    %v537 = vld [vmem:[#allocation8 + $0x518] sm:$0xff]
    %v538 = vld [vmem:[#allocation8 + $0x520] sm:$0xff]
    %v539 = vld [vmem:[#allocation8 + $0x528] sm:$0xff]
    %v540 = vld [vmem:[#allocation8 + $0x530] sm:$0xff]
    %v541 = vld [vmem:[#allocation8 + $0x538] sm:$0xff]
    %v542 = vld [vmem:[#allocation8 + $0x540] sm:$0xff]
    %v543 = vld [vmem:[#allocation8 + $0x548] sm:$0xff]
    %v544 = vld [vmem:[#allocation8 + $0x550] sm:$0xff]
    %v545 = vld [vmem:[#allocation8 + $0x558] sm:$0xff]
    %v546 = vld [vmem:[#allocation8 + $0x560] sm:$0xff]
    %v547 = vld [vmem:[#allocation8 + $0x568] sm:$0xff]
    %v548 = vld [vmem:[#allocation8 + $0x570] sm:$0xff]
    %v549 = vld [vmem:[#allocation8 + $0x578] sm:$0xff]
    %v550 = vld [vmem:[#allocation8 + $0x580] sm:$0xff]
    %v551 = vld [vmem:[#allocation8 + $0x588] sm:$0xff]
    %v552 = vld [vmem:[#allocation8 + $0x590] sm:$0xff]
    %v553 = vld [vmem:[#allocation8 + $0x598] sm:$0xff]
    %v554 = vld [vmem:[#allocation8 + $0x5a0] sm:$0xff]
    %v555 = vld [vmem:[#allocation8 + $0x5a8] sm:$0xff]
    %v556 = vld [vmem:[#allocation8 + $0x5b0] sm:$0xff]
    %v557 = vld [vmem:[#allocation8 + $0x5b8] sm:$0xff]
    %v558 = vld [vmem:[#allocation8 + $0x5c0] sm:$0xff]
    %v559 = vld [vmem:[#allocation8 + $0x5c8] sm:$0xff]
    %v560 = vld [vmem:[#allocation8 + $0x5d0] sm:$0xff]
    %v561 = vld [vmem:[#allocation8 + $0x5d8] sm:$0xff]
    %v562 = vld [vmem:[#allocation8 + $0x5e0] sm:$0xff]
    %v563 = vld [vmem:[#allocation8 + $0x5e8] sm:$0xff]
    %v564 = vld [vmem:[#allocation8 + $0x5f0] sm:$0xff]
    %v565 = vld [vmem:[#allocation8 + $0x5f8] sm:$0xff]
    %v566 = vld [vmem:[#allocation8 + $0x600] sm:$0xff]
    %v567 = vld [vmem:[#allocation8 + $0x608] sm:$0xff]
    %v568 = vld [vmem:[#allocation8 + $0x610] sm:$0xff]
    %v569 = vld [vmem:[#allocation8 + $0x618] sm:$0xff]
    %v570 = vld [vmem:[#allocation8 + $0x620] sm:$0xff]
    %v571 = vld [vmem:[#allocation8 + $0x628] sm:$0xff]
    %v572 = vld [vmem:[#allocation8 + $0x630] sm:$0xff]
    %v573 = vld [vmem:[#allocation8 + $0x638] sm:$0xff]
    %v574 = vld [vmem:[#allocation8 + $0x640] sm:$0xff]
    %v575 = vld [vmem:[#allocation8 + $0x648] sm:$0xff]
    %v576 = vld [vmem:[#allocation8 + $0x650] sm:$0xff]
    %v577 = vld [vmem:[#allocation8 + $0x658] sm:$0xff]
    %v578 = vld [vmem:[#allocation8 + $0x660] sm:$0xff]
    %v579 = vld [vmem:[#allocation8 + $0x668] sm:$0xff]
    %v580 = vld [vmem:[#allocation8 + $0x670] sm:$0xff]
    %v581 = vld [vmem:[#allocation8 + $0x678] sm:$0xff]
    %v582 = vld [vmem:[#allocation8 + $0x680] sm:$0xff]
    %v583 = vld [vmem:[#allocation8 + $0x688] sm:$0xff]
    %v584 = vld [vmem:[#allocation8 + $0x690] sm:$0xff]
    %v585 = vld [vmem:[#allocation8 + $0x698] sm:$0xff]
    %v586 = vld [vmem:[#allocation8 + $0x6a0] sm:$0xff]
    %v587 = vld [vmem:[#allocation8 + $0x6a8] sm:$0xff]
    %v588 = vld [vmem:[#allocation8 + $0x6b0] sm:$0xff]
    %v589 = vld [vmem:[#allocation8 + $0x6b8] sm:$0xff]
    %v590 = vld [vmem:[#allocation8 + $0x6c0] sm:$0xff]
    %v591 = vld [vmem:[#allocation8 + $0x6c8] sm:$0xff]
    %v592 = vld [vmem:[#allocation8 + $0x6d0] sm:$0xff]
    %v593 = vld [vmem:[#allocation8 + $0x6d8] sm:$0xff]
    %v594 = vld [vmem:[#allocation8 + $0x6e0] sm:$0xff]
    %v595 = vld [vmem:[#allocation8 + $0x6e8] sm:$0xff]
    %v596 = vld [vmem:[#allocation8 + $0x6f0] sm:$0xff]
    %v597 = vld [vmem:[#allocation8 + $0x6f8] sm:$0xff]
    %v598 = vld [vmem:[#allocation8 + $0x700] sm:$0xff]
    %v599 = vld [vmem:[#allocation8 + $0x708] sm:$0xff]
    %v600 = vld [vmem:[#allocation8 + $0x710] sm:$0xff]
    %v601 = vld [vmem:[#allocation8 + $0x718] sm:$0xff]
    %v602 = vld [vmem:[#allocation8 + $0x720] sm:$0xff]
    %v603 = vld [vmem:[#allocation8 + $0x728] sm:$0xff]
    %v604 = vld [vmem:[#allocation8 + $0x730] sm:$0xff]
    %v605 = vld [vmem:[#allocation8 + $0x738] sm:$0xff]
    %v606 = vld [vmem:[#allocation8 + $0x740] sm:$0xff]
    %v607 = vld [vmem:[#allocation8 + $0x748] sm:$0xff]
    %v608 = vld [vmem:[#allocation8 + $0x750] sm:$0xff]
    %v609 = vld [vmem:[#allocation8 + $0x758] sm:$0xff]
    %v610 = vld [vmem:[#allocation8 + $0x760] sm:$0xff]
    %v611 = vld [vmem:[#allocation8 + $0x768] sm:$0xff]
    %v612 = vld [vmem:[#allocation8 + $0x770] sm:$0xff]
    %v613 = vld [vmem:[#allocation8 + $0x778] sm:$0xff]
    %v614 = vld [vmem:[#allocation8 + $0x780] sm:$0xff]
    %v615 = vld [vmem:[#allocation8 + $0x788] sm:$0xff]
    %v616 = vld [vmem:[#allocation8 + $0x790] sm:$0xff]
    %v617 = vld [vmem:[#allocation8 + $0x798] sm:$0xff]
    %v618 = vld [vmem:[#allocation8 + $0x7a0] sm:$0xff]
    %v619 = vld [vmem:[#allocation8 + $0x7a8] sm:$0xff]
    %v620 = vld [vmem:[#allocation8 + $0x7b0] sm:$0xff]
    %v621 = vld [vmem:[#allocation8 + $0x7b8] sm:$0xff]
    %v622 = vld [vmem:[#allocation8 + $0x7c0] sm:$0xff]
    %v623 = vld [vmem:[#allocation8 + $0x7c8] sm:$0xff]
    %v624 = vld [vmem:[#allocation8 + $0x7d0] sm:$0xff]
    %v625 = vld [vmem:[#allocation8 + $0x7d8] sm:$0xff]
    %v626 = vld [vmem:[#allocation8 + $0x7e0] sm:$0xff]
    %v627 = vld [vmem:[#allocation8 + $0x7e8] sm:$0xff]
    %v628 = vld [vmem:[#allocation8 + $0x7f0] sm:$0xff]
    %v629 = vld [vmem:[#allocation8 + $0x7f8] sm:$0xff]
    %v630 = vld [vmem:[#allocation8 + $0x800] sm:$0xff]
    %v631 = vld [vmem:[#allocation8 + $0x808] sm:$0xff]
    %v632 = vld [vmem:[#allocation8 + $0x810] sm:$0xff]
    %v633 = vld [vmem:[#allocation8 + $0x818] sm:$0xff]
    %v634 = vld [vmem:[#allocation8 + $0x820] sm:$0xff]
    %v635 = vld [vmem:[#allocation8 + $0x828] sm:$0xff]
    %v636 = vld [vmem:[#allocation8 + $0x830] sm:$0xff]
    %v637 = vld [vmem:[#allocation8 + $0x838] sm:$0xff]
    %v638 = vld [vmem:[#allocation8 + $0x840] sm:$0xff]
    %v639 = vld [vmem:[#allocation8 + $0x848] sm:$0xff]
    %v640 = vld [vmem:[#allocation8 + $0x850] sm:$0xff]
    %v641 = vld [vmem:[#allocation8 + $0x858] sm:$0xff]
    %v642 = vld [vmem:[#allocation8 + $0x860] sm:$0xff]
    %v643 = vld [vmem:[#allocation8 + $0x868] sm:$0xff]
    %v644 = vld [vmem:[#allocation8 + $0x870] sm:$0xff]
    %v645 = vld [vmem:[#allocation8 + $0x878] sm:$0xff]
    %v646 = vld [vmem:[#allocation8 + $0x880] sm:$0xff]
    %v647 = vld [vmem:[#allocation8 + $0x888] sm:$0xff]
    %v648 = vld [vmem:[#allocation8 + $0x890] sm:$0xff]
    %v649 = vld [vmem:[#allocation8 + $0x898] sm:$0xff]
    %v650 = vld [vmem:[#allocation8 + $0x8a0] sm:$0xff]
    %v651 = vld [vmem:[#allocation8 + $0x8a8] sm:$0xff]
    %v652 = vld [vmem:[#allocation8 + $0x8b0] sm:$0xff]
    %v653 = vld [vmem:[#allocation8 + $0x8b8] sm:$0xff]
    %v654 = vld [vmem:[#allocation8 + $0x8c0] sm:$0xff]
    %v655 = vld [vmem:[#allocation8 + $0x8c8] sm:$0xff]
    %v656 = vld [vmem:[#allocation8 + $0x8d0] sm:$0xff]
    %v657 = vld [vmem:[#allocation8 + $0x8d8] sm:$0xff]
    %v658 = vld [vmem:[#allocation8 + $0x8e0] sm:$0xff]
    %v659 = vld [vmem:[#allocation8 + $0x8e8] sm:$0xff]
    %v660 = vld [vmem:[#allocation8 + $0x8f0] sm:$0xff]
    %v661 = vld [vmem:[#allocation8 + $0x8f8] sm:$0xff]
    %v662 = vld [vmem:[#allocation8 + $0x900] sm:$0xff]
    %v663 = vld [vmem:[#allocation8 + $0x908] sm:$0xff]
    %v664 = vld [vmem:[#allocation8 + $0x910] sm:$0xff]
    %v665 = vld [vmem:[#allocation8 + $0x918] sm:$0xff]
    %v666 = vld [vmem:[#allocation8 + $0x920] sm:$0xff]
    %v667 = vld [vmem:[#allocation8 + $0x928] sm:$0xff]
    %v668 = vld [vmem:[#allocation8 + $0x930] sm:$0xff]
    %v669 = vld [vmem:[#allocation8 + $0x938] sm:$0xff]
    %v670 = vld [vmem:[#allocation8 + $0x940] sm:$0xff]
    %v671 = vld [vmem:[#allocation8 + $0x948] sm:$0xff]
    %v672 = vld [vmem:[#allocation8 + $0x950] sm:$0xff]
    %v673 = vld [vmem:[#allocation8 + $0x958] sm:$0xff]
    %v674 = vld [vmem:[#allocation8 + $0x960] sm:$0xff]
    %v675 = vld [vmem:[#allocation8 + $0x968] sm:$0xff]
    %v676 = vld [vmem:[#allocation8 + $0x970] sm:$0xff]
    %v677 = vld [vmem:[#allocation8 + $0x978] sm:$0xff]
    %v678 = vld [vmem:[#allocation8 + $0x980] sm:$0xff]
    %v679 = vld [vmem:[#allocation8 + $0x988] sm:$0xff]
    %v680 = vld [vmem:[#allocation8 + $0x990] sm:$0xff]
    %v681 = vld [vmem:[#allocation8 + $0x998] sm:$0xff]
    %v682 = vld [vmem:[#allocation8 + $0x9a0] sm:$0xff]
    %v683 = vld [vmem:[#allocation8 + $0x9a8] sm:$0xff]
    %v684 = vld [vmem:[#allocation8 + $0x9b0] sm:$0xff]
    %v685 = vld [vmem:[#allocation8 + $0x9b8] sm:$0xff]
    %v686 = vld [vmem:[#allocation8 + $0x9c0] sm:$0xff]
    %v687 = vld [vmem:[#allocation8 + $0x9c8] sm:$0xff]
    %v688 = vld [vmem:[#allocation8 + $0x9d0] sm:$0xff]
    %v689 = vld [vmem:[#allocation8 + $0x9d8] sm:$0xff]
    %v690 = vld [vmem:[#allocation8 + $0x9e0] sm:$0xff]
    %v691 = vld [vmem:[#allocation8 + $0x9e8] sm:$0xff]
    %v692 = vld [vmem:[#allocation8 + $0x9f0] sm:$0xff]
    %v693 = vld [vmem:[#allocation8 + $0x9f8] sm:$0xff]
    %v694 = vld [vmem:[#allocation8 + $0xa00] sm:$0xff]
    %v695 = vld [vmem:[#allocation8 + $0xa08] sm:$0xff]
    %v696 = vld [vmem:[#allocation8 + $0xa10] sm:$0xff]
    %v697 = vld [vmem:[#allocation8 + $0xa18] sm:$0xff]
    %v698 = vld [vmem:[#allocation8 + $0xa20] sm:$0xff]
    %v699 = vld [vmem:[#allocation8 + $0xa28] sm:$0xff]
    %v700 = vld [vmem:[#allocation8 + $0xa30] sm:$0xff]
    %v701 = vld [vmem:[#allocation8 + $0xa38] sm:$0xff]
    %v702 = vld [vmem:[#allocation8 + $0xa40] sm:$0xff]
    %v703 = vld [vmem:[#allocation8 + $0xa48] sm:$0xff]
    %v704 = vld [vmem:[#allocation8 + $0xa50] sm:$0xff]
    %v705 = vld [vmem:[#allocation8 + $0xa58] sm:$0xff]
    %v706 = vld [vmem:[#allocation8 + $0xa60] sm:$0xff]
    %v707 = vld [vmem:[#allocation8 + $0xa68] sm:$0xff]
    %v708 = vld [vmem:[#allocation8 + $0xa70] sm:$0xff]
    %v709 = vld [vmem:[#allocation8 + $0xa78] sm:$0xff]
    %v710 = vld [vmem:[#allocation8 + $0xa80] sm:$0xff]
    %v711 = vld [vmem:[#allocation8 + $0xa88] sm:$0xff]
    %v712 = vld [vmem:[#allocation8 + $0xa90] sm:$0xff]
    %v713 = vld [vmem:[#allocation8 + $0xa98] sm:$0xff]
    %v714 = vld [vmem:[#allocation8 + $0xaa0] sm:$0xff]
    %v715 = vld [vmem:[#allocation8 + $0xaa8] sm:$0xff]
    %v716 = vld [vmem:[#allocation8 + $0xab0] sm:$0xff]
    %v717 = vld [vmem:[#allocation8 + $0xab8] sm:$0xff]
    %v718 = vld [vmem:[#allocation8 + $0xac0] sm:$0xff]
    %v719 = vld [vmem:[#allocation8 + $0xac8] sm:$0xff]
    %v720 = vld [vmem:[#allocation8 + $0xad0] sm:$0xff]
    %v721 = vld [vmem:[#allocation8 + $0xad8] sm:$0xff]
    %v722 = vld [vmem:[#allocation8 + $0xae0] sm:$0xff]
    %v723 = vld [vmem:[#allocation8 + $0xae8] sm:$0xff]
    %v724 = vld [vmem:[#allocation8 + $0xaf0] sm:$0xff]
    %v725 = vld [vmem:[#allocation8 + $0xaf8] sm:$0xff]
    %v726 = vld [vmem:[#allocation8 + $0xb00] sm:$0xff]
    %v727 = vld [vmem:[#allocation8 + $0xb08] sm:$0xff]
    %v728 = vld [vmem:[#allocation8 + $0xb10] sm:$0xff]
    %v729 = vld [vmem:[#allocation8 + $0xb18] sm:$0xff]
    %v730 = vld [vmem:[#allocation8 + $0xb20] sm:$0xff]
    %v731 = vld [vmem:[#allocation8 + $0xb28] sm:$0xff]
    %v732 = vld [vmem:[#allocation8 + $0xb30] sm:$0xff]
    %v733 = vld [vmem:[#allocation8 + $0xb38] sm:$0xff]
    %v734 = vld [vmem:[#allocation8 + $0xb40] sm:$0xff]
    %v735 = vld [vmem:[#allocation8 + $0xb48] sm:$0xff]
    %v736 = vld [vmem:[#allocation8 + $0xb50] sm:$0xff]
    %v737 = vld [vmem:[#allocation8 + $0xb58] sm:$0xff]
    %v738 = vld [vmem:[#allocation8 + $0xb60] sm:$0xff]
    %v739 = vld [vmem:[#allocation8 + $0xb68] sm:$0xff]
    %v740 = vld [vmem:[#allocation8 + $0xb70] sm:$0xff]
    %v741 = vld [vmem:[#allocation8 + $0xb78] sm:$0xff]
    %v742 = vld [vmem:[#allocation8 + $0xb80] sm:$0xff]
    %v743 = vld [vmem:[#allocation8 + $0xb88] sm:$0xff]
    %v744 = vld [vmem:[#allocation8 + $0xb90] sm:$0xff]
    %v745 = vld [vmem:[#allocation8 + $0xb98] sm:$0xff]
    %v746 = vld [vmem:[#allocation8 + $0xba0] sm:$0xff]
    %v747 = vld [vmem:[#allocation8 + $0xba8] sm:$0xff]
    %v748 = vld [vmem:[#allocation8 + $0xbb0] sm:$0xff]
    %v749 = vld [vmem:[#allocation8 + $0xbb8] sm:$0xff]
    %v750 = vld [vmem:[#allocation8 + $0xbc0] sm:$0xff]
    %v751 = vld [vmem:[#allocation8 + $0xbc8] sm:$0xff]
    %v752 = vld [vmem:[#allocation8 + $0xbd0] sm:$0xff]
    %v753 = vld [vmem:[#allocation8 + $0xbd8] sm:$0xff]
    %v754 = vld [vmem:[#allocation8 + $0xbe0] sm:$0xff]
    %v755 = vld [vmem:[#allocation8 + $0xbe8] sm:$0xff]
    %v756 = vld [vmem:[#allocation8 + $0xbf0] sm:$0xff]
    %v757 = vld [vmem:[#allocation8 + $0xbf8] sm:$0xff]
    %v758 = vld [vmem:[#allocation8 + $0xc00] sm:$0xff]
    %v759 = vld [vmem:[#allocation8 + $0xc08] sm:$0xff]
    %v760 = vld [vmem:[#allocation8 + $0xc10] sm:$0xff]
    %v761 = vld [vmem:[#allocation8 + $0xc18] sm:$0xff]
    %v762 = vld [vmem:[#allocation8 + $0xc20] sm:$0xff]
    %v763 = vld [vmem:[#allocation8 + $0xc28] sm:$0xff]
    %v764 = vld [vmem:[#allocation8 + $0xc30] sm:$0xff]
    %v765 = vld [vmem:[#allocation8 + $0xc38] sm:$0xff]
    %v766 = vld [vmem:[#allocation8 + $0xc40] sm:$0xff]
    %v767 = vld [vmem:[#allocation8 + $0xc48] sm:$0xff]
    %v768 = vld [vmem:[#allocation8 + $0xc50] sm:$0xff]
    %v769 = vld [vmem:[#allocation8 + $0xc58] sm:$0xff]
    %v770 = vld [vmem:[#allocation8 + $0xc60] sm:$0xff]
    %v771 = vld [vmem:[#allocation8 + $0xc68] sm:$0xff]
    %v772 = vld [vmem:[#allocation8 + $0xc70] sm:$0xff]
    %v773 = vld [vmem:[#allocation8 + $0xc78] sm:$0xff]
    %v774 = vld [vmem:[#allocation8 + $0xc80] sm:$0xff]
    %v775 = vld [vmem:[#allocation8 + $0xc88] sm:$0xff]
    %v776 = vld [vmem:[#allocation8 + $0xc90] sm:$0xff]
    %v777 = vld [vmem:[#allocation8 + $0xc98] sm:$0xff]
    %v778 = vld [vmem:[#allocation8 + $0xca0] sm:$0xff]
    %v779 = vld [vmem:[#allocation8 + $0xca8] sm:$0xff]
    %v780 = vld [vmem:[#allocation8 + $0xcb0] sm:$0xff]
    %v781 = vld [vmem:[#allocation8 + $0xcb8] sm:$0xff]
    %v782 = vld [vmem:[#allocation8 + $0xcc0] sm:$0xff]
    %v783 = vld [vmem:[#allocation8 + $0xcc8] sm:$0xff]
    %v784 = vld [vmem:[#allocation8 + $0xcd0] sm:$0xff]
    %v785 = vld [vmem:[#allocation8 + $0xcd8] sm:$0xff]
    %v786 = vld [vmem:[#allocation8 + $0xce0] sm:$0xff]
    %v787 = vld [vmem:[#allocation8 + $0xce8] sm:$0xff]
    %v788 = vld [vmem:[#allocation8 + $0xcf0] sm:$0xff]
    %v789 = vld [vmem:[#allocation8 + $0xcf8] sm:$0xff]
    %v790 = vld [vmem:[#allocation8 + $0xd00] sm:$0xff]
    %v791 = vld [vmem:[#allocation8 + $0xd08] sm:$0xff]
    %v792 = vld [vmem:[#allocation8 + $0xd10] sm:$0xff]
    %v793 = vld [vmem:[#allocation8 + $0xd18] sm:$0xff]
    %v794 = vld [vmem:[#allocation8 + $0xd20] sm:$0xff]
    %v795 = vld [vmem:[#allocation8 + $0xd28] sm:$0xff]
    %v796 = vld [vmem:[#allocation8 + $0xd30] sm:$0xff]
    %v797 = vld [vmem:[#allocation8 + $0xd38] sm:$0xff]
    %v798 = vld [vmem:[#allocation8 + $0xd40] sm:$0xff]
    %v799 = vld [vmem:[#allocation8 + $0xd48] sm:$0xff]
    %v800 = vld [vmem:[#allocation8 + $0xd50] sm:$0xff]
    %v801 = vld [vmem:[#allocation8 + $0xd58] sm:$0xff]
    %v802 = vld [vmem:[#allocation8 + $0xd60] sm:$0xff]
    %v803 = vld [vmem:[#allocation8 + $0xd68] sm:$0xff]
    %v804 = vld [vmem:[#allocation8 + $0xd70] sm:$0xff]
    %v805 = vld [vmem:[#allocation8 + $0xd78] sm:$0xff]
    %v806 = vld [vmem:[#allocation8 + $0xd80] sm:$0xff]
    %v807 = vld [vmem:[#allocation8 + $0xd88] sm:$0xff]
    %v808 = vld [vmem:[#allocation8 + $0xd90] sm:$0xff]
    %v809 = vld [vmem:[#allocation8 + $0xd98] sm:$0xff]
    %v810 = vld [vmem:[#allocation8 + $0xda0] sm:$0xff]
    %v811 = vld [vmem:[#allocation8 + $0xda8] sm:$0xff]
    %v812 = vld [vmem:[#allocation8 + $0xdb0] sm:$0xff]
    %v813 = vld [vmem:[#allocation8 + $0xdb8] sm:$0xff]
    %v814 = vld [vmem:[#allocation8 + $0xdc0] sm:$0xff]
    %v815 = vld [vmem:[#allocation8 + $0xdc8] sm:$0xff]
    %v816 = vld [vmem:[#allocation8 + $0xdd0] sm:$0xff]
    %v817 = vld [vmem:[#allocation8 + $0xdd8] sm:$0xff]
    %v818 = vld [vmem:[#allocation8 + $0xde0] sm:$0xff]
    %v819 = vld [vmem:[#allocation8 + $0xde8] sm:$0xff]
    %v820 = vld [vmem:[#allocation8 + $0xdf0] sm:$0xff]
    %v821 = vld [vmem:[#allocation8 + $0xdf8] sm:$0xff]
    %v822 = vld [vmem:[#allocation8 + $0xe00] sm:$0xff]
    %v823 = vld [vmem:[#allocation8 + $0xe08] sm:$0xff]
    %v824 = vld [vmem:[#allocation8 + $0xe10] sm:$0xff]
    %v825 = vld [vmem:[#allocation8 + $0xe18] sm:$0xff]
    %v826 = vld [vmem:[#allocation8 + $0xe20] sm:$0xff]
    %v827 = vld [vmem:[#allocation8 + $0xe28] sm:$0xff]
    %v828 = vld [vmem:[#allocation8 + $0xe30] sm:$0xff]
    %v829 = vld [vmem:[#allocation8 + $0xe38] sm:$0xff]
    %v830 = vld [vmem:[#allocation8 + $0xe40] sm:$0xff]
    %v831 = vld [vmem:[#allocation8 + $0xe48] sm:$0xff]
    %v832 = vld [vmem:[#allocation8 + $0xe50] sm:$0xff]
    %v833 = vld [vmem:[#allocation8 + $0xe58] sm:$0xff]
    %v834 = vld [vmem:[#allocation8 + $0xe60] sm:$0xff]
    %v835 = vld [vmem:[#allocation8 + $0xe68] sm:$0xff]
    %v836 = vld [vmem:[#allocation8 + $0xe70] sm:$0xff]
    %v837 = vld [vmem:[#allocation8 + $0xe78] sm:$0xff]
    %v838 = vld [vmem:[#allocation8 + $0xe80] sm:$0xff]
    %v839 = vld [vmem:[#allocation8 + $0xe88] sm:$0xff]
    %v840 = vld [vmem:[#allocation8 + $0xe90] sm:$0xff]
    %v841 = vld [vmem:[#allocation8 + $0xe98] sm:$0xff]
    %v842 = vld [vmem:[#allocation8 + $0xea0] sm:$0xff]
    %v843 = vld [vmem:[#allocation8 + $0xea8] sm:$0xff]
    %v844 = vld [vmem:[#allocation8 + $0xeb0] sm:$0xff]
    %v845 = vld [vmem:[#allocation8 + $0xeb8] sm:$0xff]
    %v846 = vld [vmem:[#allocation8 + $0xec0] sm:$0xff]
    %v847 = vld [vmem:[#allocation8 + $0xec8] sm:$0xff]
    %v848 = vld [vmem:[#allocation8 + $0xed0] sm:$0xff]
    %v849 = vld [vmem:[#allocation8 + $0xed8] sm:$0xff]
    %v850 = vld [vmem:[#allocation8 + $0xee0] sm:$0xff]
    %v851 = vld [vmem:[#allocation8 + $0xee8] sm:$0xff]
    %v852 = vld [vmem:[#allocation8 + $0xef0] sm:$0xff]
    %v853 = vld [vmem:[#allocation8 + $0xef8] sm:$0xff]
    %v854 = vld [vmem:[#allocation8 + $0xf00] sm:$0xff]
    %v855 = vld [vmem:[#allocation8 + $0xf08] sm:$0xff]
    %v856 = vld [vmem:[#allocation8 + $0xf10] sm:$0xff]
    %v857 = vld [vmem:[#allocation8 + $0xf18] sm:$0xff]
    %v858 = vld [vmem:[#allocation8 + $0xf20] sm:$0xff]
    %v859 = vld [vmem:[#allocation8 + $0xf28] sm:$0xff]
    %v860 = vld [vmem:[#allocation8 + $0xf30] sm:$0xff]
    %v861 = vld [vmem:[#allocation8 + $0xf38] sm:$0xff]
    %v862 = vld [vmem:[#allocation8 + $0xf40] sm:$0xff]
    %v863 = vld [vmem:[#allocation8 + $0xf48] sm:$0xff]
    %v864 = vld [vmem:[#allocation8 + $0xf50] sm:$0xff]
    %v865 = vld [vmem:[#allocation8 + $0xf58] sm:$0xff]
    %v866 = vld [vmem:[#allocation8 + $0xf60] sm:$0xff]
    %v867 = vld [vmem:[#allocation8 + $0xf68] sm:$0xff]
    %v868 = vld [vmem:[#allocation8 + $0xf70] sm:$0xff]
    %v869 = vld [vmem:[#allocation8 + $0xf78] sm:$0xff]
    %v870 = vld [vmem:[#allocation8 + $0xf80] sm:$0xff]
    %v871 = vld [vmem:[#allocation8 + $0xf88] sm:$0xff]
    %v872 = vld [vmem:[#allocation8 + $0xf90] sm:$0xff]
    %v873 = vld [vmem:[#allocation8 + $0xf98] sm:$0xff]
    %v874 = vld [vmem:[#allocation8 + $0xfa0] sm:$0xff]
    %v875 = vld [vmem:[#allocation8 + $0xfa8] sm:$0xff]
    %v876 = vld [vmem:[#allocation8 + $0xfb0] sm:$0xff]
    %v877 = vld [vmem:[#allocation8 + $0xfb8] sm:$0xff]
    %v878 = vld [vmem:[#allocation8 + $0xfc0] sm:$0xff]
    %v879 = vld [vmem:[#allocation8 + $0xfc8] sm:$0xff]
    %v880 = vld [vmem:[#allocation8 + $0xfd0] sm:$0xff]
    %v881 = vld [vmem:[#allocation8 + $0xfd8] sm:$0xff]
    %v882 = vld [vmem:[#allocation8 + $0xfe0] sm:$0xff]
    %v883 = vld [vmem:[#allocation8 + $0xfe8] sm:$0xff]
    %v884 = vld [vmem:[#allocation8 + $0xff0] sm:$0xff]
    %v885 = vld [vmem:[#allocation8 + $0xff8] sm:$0xff]
    %v886 = vld [vmem:[#allocation10] sm:$0xff]
    %v888 = vlaneseq
    %v889 = vshrl.u32 %v888, 7
    %v890 = vsub.s32 0, %v889
    %v891 = vrot.slane %v886, %v890
    %v892 = vlaneseq
    %v893 = vshrl.u32 %v892, 7
    %v894 = vsub.s32 1, %v893
    %v895 = vrot.slane %v886, %v894
    %v896 = vlaneseq
    %v897 = vshrl.u32 %v896, 7
    %v898 = vsub.s32 2, %v897
    %v899 = vrot.slane %v886, %v898
    %v900 = vlaneseq
    %v901 = vshrl.u32 %v900, 7
    %v902 = vsub.s32 3, %v901
    %v903 = vrot.slane %v886, %v902
    %v904 = vlaneseq
    %v905 = vshrl.u32 %v904, 7
    %v906 = vsub.s32 4, %v905
    %v907 = vrot.slane %v886, %v906
    %v908 = vlaneseq
    %v909 = vshrl.u32 %v908, 7
    %v910 = vsub.s32 5, %v909
    %v911 = vrot.slane %v886, %v910
    %v912 = vlaneseq
    %v913 = vshrl.u32 %v912, 7
    %v914 = vsub.s32 6, %v913
    %v915 = vrot.slane %v886, %v914
    %v916 = vlaneseq
    %v917 = vshrl.u32 %v916, 7
    %v918 = vsub.s32 7, %v917
    %v919 = vrot.slane %v886, %v918
    %928 = vmatprep.subr.mxu0 %v375
    %929 = vmatpush1.msra.mxu0 %v374
    %930 = vmatprep.subr.mxu0 %v383
    %931 = vmatpush1.msra.mxu0 %v382
    %932 = vmatprep.subr.mxu0 %v391
    %933 = vmatpush1.msra.mxu0 %v390
    %934 = vmatprep.subr.mxu0 %v399
    %935 = vmatpush1.msra.mxu0 %v398
    %936 = vmatprep.subr.mxu0 %v407
    %937 = vmatpush1.msra.mxu0 %v406
    %938 = vmatprep.subr.mxu0 %v415
    %939 = vmatpush1.msra.mxu0 %v414
    %940 = vmatprep.subr.mxu0 %v423
    %941 = vmatpush1.msra.mxu0 %v422
    %942 = vmatprep.subr.mxu0 %v431
    %943 = vmatpush1.msra.mxu0 %v430
    %944 = vmatprep.subr.mxu0 %v439
    %945 = vmatpush1.msra.mxu0 %v438
    %946 = vmatprep.subr.mxu0 %v447
    %947 = vmatpush1.msra.mxu0 %v446
    %948 = vmatprep.subr.mxu0 %v455
    %949 = vmatpush1.msra.mxu0 %v454
    %950 = vmatprep.subr.mxu0 %v463
    %951 = vmatpush1.msra.mxu0 %v462
    %952 = vmatprep.subr.mxu0 %v471
    %953 = vmatpush1.msra.mxu0 %v470
    %954 = vmatprep.subr.mxu0 %v479
    %955 = vmatpush1.msra.mxu0 %v478
    %956 = vmatprep.subr.mxu0 %v487
    %957 = vmatpush1.msra.mxu0 %v486
    %958 = vmatprep.subr.mxu0 %v495
    %959 = vmatpush1.msra.mxu0 %v494
    %960 = vmatprep.subr.mxu0 %v503
    %961 = vmatpush1.msra.mxu0 %v502
    %962 = vmatprep.subr.mxu0 %v511
    %963 = vmatpush1.msra.mxu0 %v510
    %964 = vmatprep.subr.mxu0 %v519
    %965 = vmatpush1.msra.mxu0 %v518
    %966 = vmatprep.subr.mxu0 %v527
    %967 = vmatpush1.msra.mxu0 %v526
    %968 = vmatprep.subr.mxu0 %v535
    %969 = vmatpush1.msra.mxu0 %v534
    %970 = vmatprep.subr.mxu0 %v543
    %971 = vmatpush1.msra.mxu0 %v542
    %972 = vmatprep.subr.mxu0 %v551
    %973 = vmatpush1.msra.mxu0 %v550
    %974 = vmatprep.subr.mxu0 %v559
    %975 = vmatpush1.msra.mxu0 %v558
    %976 = vmatprep.subr.mxu0 %v567
    %977 = vmatpush1.msra.mxu0 %v566
    %978 = vmatprep.subr.mxu0 %v575
    %979 = vmatpush1.msra.mxu0 %v574
    %980 = vmatprep.subr.mxu0 %v583
    %981 = vmatpush1.msra.mxu0 %v582
    %982 = vmatprep.subr.mxu0 %v591
    %983 = vmatpush1.msra.mxu0 %v590
    %984 = vmatprep.subr.mxu0 %v599
    %985 = vmatpush1.msra.mxu0 %v598
    %986 = vmatprep.subr.mxu0 %v607
    %987 = vmatpush1.msra.mxu0 %v606
    %988 = vmatprep.subr.mxu0 %v615
    %989 = vmatpush1.msra.mxu0 %v614
    %990 = vmatprep.subr.mxu0 %v623
    %991 = vmatpush1.msra.mxu0 %v622
    %992 = vmatprep.mubr.f32.mxu0 %v301
    %993 = vmatmul.mubr.f32.gmra.mrb[0].mxu0 %v299
    %v994 = vpop.f32.mrb[0].mxu0
    %v995 = vadd.f32 %v891, %v994
    %v996 = vpop.f32.mrb[0].mxu0
    %v997 = vadd.f32 %v895, %v996
    %998 = vdwg.mxu0
    %999 = vmatprep.subr.mxu0 %v631
    %1000 = vmatpush1.msra.mxu0 %v630
    %1001 = vmatprep.subr.mxu0 %v639
    %1002 = vmatpush1.msra.mxu0 %v638
    %1003 = vmatprep.subr.mxu0 %v647
    %1004 = vmatpush1.msra.mxu0 %v646
    %1005 = vmatprep.subr.mxu0 %v655
    %1006 = vmatpush1.msra.mxu0 %v654
    %1007 = vmatprep.subr.mxu0 %v663
    %1008 = vmatpush1.msra.mxu0 %v662
    %1009 = vmatprep.subr.mxu0 %v671
    %1010 = vmatpush1.msra.mxu0 %v670
    %1011 = vmatprep.subr.mxu0 %v679
    %1012 = vmatpush1.msra.mxu0 %v678
    %1013 = vmatprep.subr.mxu0 %v687
    %1014 = vmatpush1.msra.mxu0 %v686
    %1015 = vmatprep.subr.mxu0 %v695
    %1016 = vmatpush1.msra.mxu0 %v694
    %1017 = vmatprep.subr.mxu0 %v703
    %1018 = vmatpush1.msra.mxu0 %v702
    %1019 = vmatprep.subr.mxu0 %v711
    %1020 = vmatpush1.msra.mxu0 %v710
    %1021 = vmatprep.subr.mxu0 %v719
    %1022 = vmatpush1.msra.mxu0 %v718
    %1023 = vmatprep.subr.mxu0 %v727
    %1024 = vmatpush1.msra.mxu0 %v726
    %1025 = vmatprep.subr.mxu0 %v735
    %1026 = vmatpush1.msra.mxu0 %v734
    %1027 = vmatprep.subr.mxu0 %v743
    %1028 = vmatpush1.msra.mxu0 %v742
    %1029 = vmatprep.subr.mxu0 %v751
    %1030 = vmatpush1.msra.mxu0 %v750
    %1031 = vmatprep.subr.mxu0 %v759
    %1032 = vmatpush1.msra.mxu0 %v758
    %1033 = vmatprep.subr.mxu0 %v767
    %1034 = vmatpush1.msra.mxu0 %v766
    %1035 = vmatprep.subr.mxu0 %v775
    %1036 = vmatpush1.msra.mxu0 %v774
    %1037 = vmatprep.subr.mxu0 %v783
    %1038 = vmatpush1.msra.mxu0 %v782
    %1039 = vmatprep.subr.mxu0 %v791
    %1040 = vmatpush1.msra.mxu0 %v790
    %1041 = vmatprep.subr.mxu0 %v799
    %1042 = vmatpush1.msra.mxu0 %v798
    %1043 = vmatprep.subr.mxu0 %v807
    %1044 = vmatpush1.msra.mxu0 %v806
    %1045 = vmatprep.subr.mxu0 %v815
    %1046 = vmatpush1.msra.mxu0 %v814
    %1047 = vmatprep.subr.mxu0 %v823
    %1048 = vmatpush1.msra.mxu0 %v822
    %1049 = vmatprep.subr.mxu0 %v831
    %1050 = vmatpush1.msra.mxu0 %v830
    %1051 = vmatprep.subr.mxu0 %v839
    %1052 = vmatpush1.msra.mxu0 %v838
    %1053 = vmatprep.subr.mxu0 %v847
    %1054 = vmatpush1.msra.mxu0 %v846
    %1055 = vmatprep.subr.mxu0 %v855
    %1056 = vmatpush1.msra.mxu0 %v854
    %1057 = vmatprep.subr.mxu0 %v863
    %1058 = vmatpush1.msra.mxu0 %v862
    %1059 = vmatprep.subr.mxu0 %v871
    %1060 = vmatpush1.msra.mxu0 %v870
    %1061 = vmatprep.subr.mxu0 %v879
    %1062 = vmatpush1.msra.mxu0 %v878
    %1063 = vmatprep.mubr.f32.mxu0 %v372
    %1064 = vmatmul.mubr.f32.gmra.mrb[0].mxu0 %v370
    %v1065 = vpop.f32.mrb[0].mxu0
    %v1066 = vadd.f32 %v995, %v1065
    %v1067 = vpop.f32.mrb[0].mxu0
    %v1068 = vadd.f32 %v997, %v1067
    %1069 = vdwg.mxu0
    %1070 = vmatprep.subr.mxu0 %v377
    %1071 = vmatpush1.msra.mxu0 %v376
    %1072 = vmatprep.subr.mxu0 %v385
    %1073 = vmatpush1.msra.mxu0 %v384
    %1074 = vmatprep.subr.mxu0 %v393
    %1075 = vmatpush1.msra.mxu0 %v392
    %1076 = vmatprep.subr.mxu0 %v401
    %1077 = vmatpush1.msra.mxu0 %v400
    %1078 = vmatprep.subr.mxu0 %v409
    %1079 = vmatpush1.msra.mxu0 %v408
    %1080 = vmatprep.subr.mxu0 %v417
    %1081 = vmatpush1.msra.mxu0 %v416
    %1082 = vmatprep.subr.mxu0 %v425
    %1083 = vmatpush1.msra.mxu0 %v424
    %1084 = vmatprep.subr.mxu0 %v433
    %1085 = vmatpush1.msra.mxu0 %v432
    %1086 = vmatprep.subr.mxu0 %v441
    %1087 = vmatpush1.msra.mxu0 %v440
    %1088 = vmatprep.subr.mxu0 %v449
    %1089 = vmatpush1.msra.mxu0 %v448
    %1090 = vmatprep.subr.mxu0 %v457
    %1091 = vmatpush1.msra.mxu0 %v456
    %1092 = vmatprep.subr.mxu0 %v465
    %1093 = vmatpush1.msra.mxu0 %v464
    %1094 = vmatprep.subr.mxu0 %v473
    %1095 = vmatpush1.msra.mxu0 %v472
    %1096 = vmatprep.subr.mxu0 %v481
    %1097 = vmatpush1.msra.mxu0 %v480
    %1098 = vmatprep.subr.mxu0 %v489
    %1099 = vmatpush1.msra.mxu0 %v488
    %1100 = vmatprep.subr.mxu0 %v497
    %1101 = vmatpush1.msra.mxu0 %v496
    %1102 = vmatprep.subr.mxu0 %v505
    %1103 = vmatpush1.msra.mxu0 %v504
    %1104 = vmatprep.subr.mxu0 %v513
    %1105 = vmatpush1.msra.mxu0 %v512
    %1106 = vmatprep.subr.mxu0 %v521
    %1107 = vmatpush1.msra.mxu0 %v520
    %1108 = vmatprep.subr.mxu0 %v529
    %1109 = vmatpush1.msra.mxu0 %v528
    %1110 = vmatprep.subr.mxu0 %v537
    %1111 = vmatpush1.msra.mxu0 %v536
    %1112 = vmatprep.subr.mxu0 %v545
    %1113 = vmatpush1.msra.mxu0 %v544
    %1114 = vmatprep.subr.mxu0 %v553
    %1115 = vmatpush1.msra.mxu0 %v552
    %1116 = vmatprep.subr.mxu0 %v561
    %1117 = vmatpush1.msra.mxu0 %v560
    %1118 = vmatprep.subr.mxu0 %v569
    %1119 = vmatpush1.msra.mxu0 %v568
    %1120 = vmatprep.subr.mxu0 %v577
    %1121 = vmatpush1.msra.mxu0 %v576
    %1122 = vmatprep.subr.mxu0 %v585
    %1123 = vmatpush1.msra.mxu0 %v584
    %1124 = vmatprep.subr.mxu0 %v593
    %1125 = vmatpush1.msra.mxu0 %v592
    %1126 = vmatprep.subr.mxu0 %v601
    %1127 = vmatpush1.msra.mxu0 %v600
    %1128 = vmatprep.subr.mxu0 %v609
    %1129 = vmatpush1.msra.mxu0 %v608
    %1130 = vmatprep.subr.mxu0 %v617
    %1131 = vmatpush1.msra.mxu0 %v616
    %1132 = vmatprep.subr.mxu0 %v625
    %1133 = vmatpush1.msra.mxu0 %v624
    %1134 = vmatprep.mubr.f32.mxu0 %v301
    %1135 = vmatmul.mubr.f32.gmra.mrb[0].mxu0 %v299
    %v1136 = vpop.f32.mrb[0].mxu0
    %v1137 = vadd.f32 %v899, %v1136
    %v1138 = vpop.f32.mrb[0].mxu0
    %v1139 = vadd.f32 %v903, %v1138
    %1140 = vdwg.mxu0
    %1141 = vmatprep.subr.mxu0 %v633
    %1142 = vmatpush1.msra.mxu0 %v632
    %1143 = vmatprep.subr.mxu0 %v641
    %1144 = vmatpush1.msra.mxu0 %v640
    %1145 = vmatprep.subr.mxu0 %v649
    %1146 = vmatpush1.msra.mxu0 %v648
    %1147 = vmatprep.subr.mxu0 %v657
    %1148 = vmatpush1.msra.mxu0 %v656
    %1149 = vmatprep.subr.mxu0 %v665
    %1150 = vmatpush1.msra.mxu0 %v664
    %1151 = vmatprep.subr.mxu0 %v673
    %1152 = vmatpush1.msra.mxu0 %v672
    %1153 = vmatprep.subr.mxu0 %v681
    %1154 = vmatpush1.msra.mxu0 %v680
    %1155 = vmatprep.subr.mxu0 %v689
    %1156 = vmatpush1.msra.mxu0 %v688
    %1157 = vmatprep.subr.mxu0 %v697
    %1158 = vmatpush1.msra.mxu0 %v696
    %1159 = vmatprep.subr.mxu0 %v705
    %1160 = vmatpush1.msra.mxu0 %v704
    %1161 = vmatprep.subr.mxu0 %v713
    %1162 = vmatpush1.msra.mxu0 %v712
    %1163 = vmatprep.subr.mxu0 %v721
    %1164 = vmatpush1.msra.mxu0 %v720
    %1165 = vmatprep.subr.mxu0 %v729
    %1166 = vmatpush1.msra.mxu0 %v728
    %1167 = vmatprep.subr.mxu0 %v737
    %1168 = vmatpush1.msra.mxu0 %v736
    %1169 = vmatprep.subr.mxu0 %v745
    %1170 = vmatpush1.msra.mxu0 %v744
    %1171 = vmatprep.subr.mxu0 %v753
    %1172 = vmatpush1.msra.mxu0 %v752
    %1173 = vmatprep.subr.mxu0 %v761
    %1174 = vmatpush1.msra.mxu0 %v760
    %1175 = vmatprep.subr.mxu0 %v769
    %1176 = vmatpush1.msra.mxu0 %v768
    %1177 = vmatprep.subr.mxu0 %v777
    %1178 = vmatpush1.msra.mxu0 %v776
    %1179 = vmatprep.subr.mxu0 %v785
    %1180 = vmatpush1.msra.mxu0 %v784
    %1181 = vmatprep.subr.mxu0 %v793
    %1182 = vmatpush1.msra.mxu0 %v792
    %1183 = vmatprep.subr.mxu0 %v801
    %1184 = vmatpush1.msra.mxu0 %v800
    %1185 = vmatprep.subr.mxu0 %v809
    %1186 = vmatpush1.msra.mxu0 %v808
    %1187 = vmatprep.subr.mxu0 %v817
    %1188 = vmatpush1.msra.mxu0 %v816
    %1189 = vmatprep.subr.mxu0 %v825
    %1190 = vmatpush1.msra.mxu0 %v824
    %1191 = vmatprep.subr.mxu0 %v833
    %1192 = vmatpush1.msra.mxu0 %v832
    %1193 = vmatprep.subr.mxu0 %v841
    %1194 = vmatpush1.msra.mxu0 %v840
    %1195 = vmatprep.subr.mxu0 %v849
    %1196 = vmatpush1.msra.mxu0 %v848
    %1197 = vmatprep.subr.mxu0 %v857
    %1198 = vmatpush1.msra.mxu0 %v856
    %1199 = vmatprep.subr.mxu0 %v865
    %1200 = vmatpush1.msra.mxu0 %v864
    %1201 = vmatprep.subr.mxu0 %v873
    %1202 = vmatpush1.msra.mxu0 %v872
    %1203 = vmatprep.subr.mxu0 %v881
    %1204 = vmatpush1.msra.mxu0 %v880
    %1205 = vmatprep.mubr.f32.mxu0 %v372
    %1206 = vmatmul.mubr.f32.gmra.mrb[0].mxu0 %v370
    %v1207 = vpop.f32.mrb[0].mxu0
    %v1208 = vadd.f32 %v1137, %v1207
    %v1209 = vpop.f32.mrb[0].mxu0
    %v1210 = vadd.f32 %v1139, %v1209
    %1211 = vdwg.mxu0
    %1212 = vmatprep.subr.mxu0 %v379
    %1213 = vmatpush1.msra.mxu0 %v378
    %1214 = vmatprep.subr.mxu0 %v387
    %1215 = vmatpush1.msra.mxu0 %v386
    %1216 = vmatprep.subr.mxu0 %v395
    %1217 = vmatpush1.msra.mxu0 %v394
    %1218 = vmatprep.subr.mxu0 %v403
    %1219 = vmatpush1.msra.mxu0 %v402
    %1220 = vmatprep.subr.mxu0 %v411
    %1221 = vmatpush1.msra.mxu0 %v410
    %1222 = vmatprep.subr.mxu0 %v419
    %1223 = vmatpush1.msra.mxu0 %v418
    %1224 = vmatprep.subr.mxu0 %v427
    %1225 = vmatpush1.msra.mxu0 %v426
    %1226 = vmatprep.subr.mxu0 %v435
    %1227 = vmatpush1.msra.mxu0 %v434
    %1228 = vmatprep.subr.mxu0 %v443
    %1229 = vmatpush1.msra.mxu0 %v442
    %1230 = vmatprep.subr.mxu0 %v451
    %1231 = vmatpush1.msra.mxu0 %v450
    %1232 = vmatprep.subr.mxu0 %v459
    %1233 = vmatpush1.msra.mxu0 %v458
    %1234 = vmatprep.subr.mxu0 %v467
    %1235 = vmatpush1.msra.mxu0 %v466
    %1236 = vmatprep.subr.mxu0 %v475
    %1237 = vmatpush1.msra.mxu0 %v474
    %1238 = vmatprep.subr.mxu0 %v483
    %1239 = vmatpush1.msra.mxu0 %v482
    %1240 = vmatprep.subr.mxu0 %v491
    %1241 = vmatpush1.msra.mxu0 %v490
    %1242 = vmatprep.subr.mxu0 %v499
    %1243 = vmatpush1.msra.mxu0 %v498
    %1244 = vmatprep.subr.mxu0 %v507
    %1245 = vmatpush1.msra.mxu0 %v506
    %1246 = vmatprep.subr.mxu0 %v515
    %1247 = vmatpush1.msra.mxu0 %v514
    %1248 = vmatprep.subr.mxu0 %v523
    %1249 = vmatpush1.msra.mxu0 %v522
    %1250 = vmatprep.subr.mxu0 %v531
    %1251 = vmatpush1.msra.mxu0 %v530
    %1252 = vmatprep.subr.mxu0 %v539
    %1253 = vmatpush1.msra.mxu0 %v538
    %1254 = vmatprep.subr.mxu0 %v547
    %1255 = vmatpush1.msra.mxu0 %v546
    %1256 = vmatprep.subr.mxu0 %v555
    %1257 = vmatpush1.msra.mxu0 %v554
    %1258 = vmatprep.subr.mxu0 %v563
    %1259 = vmatpush1.msra.mxu0 %v562
    %1260 = vmatprep.subr.mxu0 %v571
    %1261 = vmatpush1.msra.mxu0 %v570
    %1262 = vmatprep.subr.mxu0 %v579
    %1263 = vmatpush1.msra.mxu0 %v578
    %1264 = vmatprep.subr.mxu0 %v587
    %1265 = vmatpush1.msra.mxu0 %v586
    %1266 = vmatprep.subr.mxu0 %v595
    %1267 = vmatpush1.msra.mxu0 %v594
    %1268 = vmatprep.subr.mxu0 %v603
    %1269 = vmatpush1.msra.mxu0 %v602
    %1270 = vmatprep.subr.mxu0 %v611
    %1271 = vmatpush1.msra.mxu0 %v610
    %1272 = vmatprep.subr.mxu0 %v619
    %1273 = vmatpush1.msra.mxu0 %v618
    %1274 = vmatprep.subr.mxu0 %v627
    %1275 = vmatpush1.msra.mxu0 %v626
    %1276 = vmatprep.mubr.f32.mxu0 %v301
    %1277 = vmatmul.mubr.f32.gmra.mrb[0].mxu0 %v299
    %v1278 = vpop.f32.mrb[0].mxu0
    %v1279 = vadd.f32 %v907, %v1278
    %v1280 = vpop.f32.mrb[0].mxu0
    %v1281 = vadd.f32 %v911, %v1280
    %1282 = vdwg.mxu0
    %1283 = vmatprep.subr.mxu0 %v635
    %1284 = vmatpush1.msra.mxu0 %v634
    %1285 = vmatprep.subr.mxu0 %v643
    %1286 = vmatpush1.msra.mxu0 %v642
    %1287 = vmatprep.subr.mxu0 %v651
    %1288 = vmatpush1.msra.mxu0 %v650
    %1289 = vmatprep.subr.mxu0 %v659
    %1290 = vmatpush1.msra.mxu0 %v658
    %1291 = vmatprep.subr.mxu0 %v667
    %1292 = vmatpush1.msra.mxu0 %v666
    %1293 = vmatprep.subr.mxu0 %v675
    %1294 = vmatpush1.msra.mxu0 %v674
    %1295 = vmatprep.subr.mxu0 %v683
    %1296 = vmatpush1.msra.mxu0 %v682
    %1297 = vmatprep.subr.mxu0 %v691
    %1298 = vmatpush1.msra.mxu0 %v690
    %1299 = vmatprep.subr.mxu0 %v699
    %1300 = vmatpush1.msra.mxu0 %v698
    %1301 = vmatprep.subr.mxu0 %v707
    %1302 = vmatpush1.msra.mxu0 %v706
    %1303 = vmatprep.subr.mxu0 %v715
    %1304 = vmatpush1.msra.mxu0 %v714
    %1305 = vmatprep.subr.mxu0 %v723
    %1306 = vmatpush1.msra.mxu0 %v722
    %1307 = vmatprep.subr.mxu0 %v731
    %1308 = vmatpush1.msra.mxu0 %v730
    %1309 = vmatprep.subr.mxu0 %v739
    %1310 = vmatpush1.msra.mxu0 %v738
    %1311 = vmatprep.subr.mxu0 %v747
    %1312 = vmatpush1.msra.mxu0 %v746
    %1313 = vmatprep.subr.mxu0 %v755
    %1314 = vmatpush1.msra.mxu0 %v754
    %1315 = vmatprep.subr.mxu0 %v763
    %1316 = vmatpush1.msra.mxu0 %v762
    %1317 = vmatprep.subr.mxu0 %v771
    %1318 = vmatpush1.msra.mxu0 %v770
    %1319 = vmatprep.subr.mxu0 %v779
    %1320 = vmatpush1.msra.mxu0 %v778
    %1321 = vmatprep.subr.mxu0 %v787
    %1322 = vmatpush1.msra.mxu0 %v786
    %1323 = vmatprep.subr.mxu0 %v795
    %1324 = vmatpush1.msra.mxu0 %v794
    %1325 = vmatprep.subr.mxu0 %v803
    %1326 = vmatpush1.msra.mxu0 %v802
    %1327 = vmatprep.subr.mxu0 %v811
    %1328 = vmatpush1.msra.mxu0 %v810
    %1329 = vmatprep.subr.mxu0 %v819
    %1330 = vmatpush1.msra.mxu0 %v818
    %1331 = vmatprep.subr.mxu0 %v827
    %1332 = vmatpush1.msra.mxu0 %v826
    %1333 = vmatprep.subr.mxu0 %v835
    %1334 = vmatpush1.msra.mxu0 %v834
    %1335 = vmatprep.subr.mxu0 %v843
    %1336 = vmatpush1.msra.mxu0 %v842
    %1337 = vmatprep.subr.mxu0 %v851
    %1338 = vmatpush1.msra.mxu0 %v850
    %1339 = vmatprep.subr.mxu0 %v859
    %1340 = vmatpush1.msra.mxu0 %v858
    %1341 = vmatprep.subr.mxu0 %v867
    %1342 = vmatpush1.msra.mxu0 %v866
    %1343 = vmatprep.subr.mxu0 %v875
    %1344 = vmatpush1.msra.mxu0 %v874
    %1345 = vmatprep.subr.mxu0 %v883
    %1346 = vmatpush1.msra.mxu0 %v882
    %1347 = vmatprep.mubr.f32.mxu0 %v372
    %1348 = vmatmul.mubr.f32.gmra.mrb[0].mxu0 %v370
    %v1349 = vpop.f32.mrb[0].mxu0
    %v1350 = vadd.f32 %v1279, %v1349
    %v1351 = vpop.f32.mrb[0].mxu0
    %v1352 = vadd.f32 %v1281, %v1351
    %1353 = vdwg.mxu0
    %1354 = vmatprep.subr.mxu0 %v381
    %1355 = vmatpush1.msra.mxu0 %v380
    %1356 = vmatprep.subr.mxu0 %v389
    %1357 = vmatpush1.msra.mxu0 %v388
    %1358 = vmatprep.subr.mxu0 %v397
    %1359 = vmatpush1.msra.mxu0 %v396
    %1360 = vmatprep.subr.mxu0 %v405
    %1361 = vmatpush1.msra.mxu0 %v404
    %1362 = vmatprep.subr.mxu0 %v413
    %1363 = vmatpush1.msra.mxu0 %v412
    %1364 = vmatprep.subr.mxu0 %v421
    %1365 = vmatpush1.msra.mxu0 %v420
    %1366 = vmatprep.subr.mxu0 %v429
    %1367 = vmatpush1.msra.mxu0 %v428
    %1368 = vmatprep.subr.mxu0 %v437
    %1369 = vmatpush1.msra.mxu0 %v436
    %1370 = vmatprep.subr.mxu0 %v445
    %1371 = vmatpush1.msra.mxu0 %v444
    %1372 = vmatprep.subr.mxu0 %v453
    %1373 = vmatpush1.msra.mxu0 %v452
    %1374 = vmatprep.subr.mxu0 %v461
    %1375 = vmatpush1.msra.mxu0 %v460
    %1376 = vmatprep.subr.mxu0 %v469
    %1377 = vmatpush1.msra.mxu0 %v468
    %1378 = vmatprep.subr.mxu0 %v477
    %1379 = vmatpush1.msra.mxu0 %v476
    %1380 = vmatprep.subr.mxu0 %v485
    %1381 = vmatpush1.msra.mxu0 %v484
    %1382 = vmatprep.subr.mxu0 %v493
    %1383 = vmatpush1.msra.mxu0 %v492
    %1384 = vmatprep.subr.mxu0 %v501
    %1385 = vmatpush1.msra.mxu0 %v500
    %1386 = vmatprep.subr.mxu0 %v509
    %1387 = vmatpush1.msra.mxu0 %v508
    %1388 = vmatprep.subr.mxu0 %v517
    %1389 = vmatpush1.msra.mxu0 %v516
    %1390 = vmatprep.subr.mxu0 %v525
    %1391 = vmatpush1.msra.mxu0 %v524
    %1392 = vmatprep.subr.mxu0 %v533
    %1393 = vmatpush1.msra.mxu0 %v532
    %1394 = vmatprep.subr.mxu0 %v541
    %1395 = vmatpush1.msra.mxu0 %v540
    %1396 = vmatprep.subr.mxu0 %v549
    %1397 = vmatpush1.msra.mxu0 %v548
    %1398 = vmatprep.subr.mxu0 %v557
    %1399 = vmatpush1.msra.mxu0 %v556
    %1400 = vmatprep.subr.mxu0 %v565
    %1401 = vmatpush1.msra.mxu0 %v564
    %1402 = vmatprep.subr.mxu0 %v573
    %1403 = vmatpush1.msra.mxu0 %v572
    %1404 = vmatprep.subr.mxu0 %v581
    %1405 = vmatpush1.msra.mxu0 %v580
    %1406 = vmatprep.subr.mxu0 %v589
    %1407 = vmatpush1.msra.mxu0 %v588
    %1408 = vmatprep.subr.mxu0 %v597
    %1409 = vmatpush1.msra.mxu0 %v596
    %1410 = vmatprep.subr.mxu0 %v605
    %1411 = vmatpush1.msra.mxu0 %v604
    %1412 = vmatprep.subr.mxu0 %v613
    %1413 = vmatpush1.msra.mxu0 %v612
    %1414 = vmatprep.subr.mxu0 %v621
    %1415 = vmatpush1.msra.mxu0 %v620
    %1416 = vmatprep.subr.mxu0 %v629
    %1417 = vmatpush1.msra.mxu0 %v628
    %1418 = vmatprep.mubr.f32.mxu0 %v301
    %1419 = vmatmul.mubr.f32.gmra.mrb[0].mxu0 %v299
    %v1420 = vpop.f32.mrb[0].mxu0
    %v1421 = vadd.f32 %v915, %v1420
    %v1422 = vpop.f32.mrb[0].mxu0
    %v1423 = vadd.f32 %v919, %v1422
    %1424 = vdwg.mxu0
    %1425 = vmatprep.subr.mxu0 %v637
    %1426 = vmatpush1.msra.mxu0 %v636
    %1427 = vmatprep.subr.mxu0 %v645
    %1428 = vmatpush1.msra.mxu0 %v644
    %1429 = vmatprep.subr.mxu0 %v653
    %1430 = vmatpush1.msra.mxu0 %v652
    %1431 = vmatprep.subr.mxu0 %v661
    %1432 = vmatpush1.msra.mxu0 %v660
    %1433 = vmatprep.subr.mxu0 %v669
    %1434 = vmatpush1.msra.mxu0 %v668
    %1435 = vmatprep.subr.mxu0 %v677
    %1436 = vmatpush1.msra.mxu0 %v676
    %1437 = vmatprep.subr.mxu0 %v685
    %1438 = vmatpush1.msra.mxu0 %v684
    %1439 = vmatprep.subr.mxu0 %v693
    %1440 = vmatpush1.msra.mxu0 %v692
    %1441 = vmatprep.subr.mxu0 %v701
    %1442 = vmatpush1.msra.mxu0 %v700
    %1443 = vmatprep.subr.mxu0 %v709
    %1444 = vmatpush1.msra.mxu0 %v708
    %1445 = vmatprep.subr.mxu0 %v717
    %1446 = vmatpush1.msra.mxu0 %v716
    %1447 = vmatprep.subr.mxu0 %v725
    %1448 = vmatpush1.msra.mxu0 %v724
    %1449 = vmatprep.subr.mxu0 %v733
    %1450 = vmatpush1.msra.mxu0 %v732
    %1451 = vmatprep.subr.mxu0 %v741
    %1452 = vmatpush1.msra.mxu0 %v740
    %1453 = vmatprep.subr.mxu0 %v749
    %1454 = vmatpush1.msra.mxu0 %v748
    %1455 = vmatprep.subr.mxu0 %v757
    %1456 = vmatpush1.msra.mxu0 %v756
    %1457 = vmatprep.subr.mxu0 %v765
    %1458 = vmatpush1.msra.mxu0 %v764
    %1459 = vmatprep.subr.mxu0 %v773
    %1460 = vmatpush1.msra.mxu0 %v772
    %1461 = vmatprep.subr.mxu0 %v781
    %1462 = vmatpush1.msra.mxu0 %v780
    %1463 = vmatprep.subr.mxu0 %v789
    %1464 = vmatpush1.msra.mxu0 %v788
    %1465 = vmatprep.subr.mxu0 %v797
    %1466 = vmatpush1.msra.mxu0 %v796
    %1467 = vmatprep.subr.mxu0 %v805
    %1468 = vmatpush1.msra.mxu0 %v804
    %1469 = vmatprep.subr.mxu0 %v813
    %1470 = vmatpush1.msra.mxu0 %v812
    %1471 = vmatprep.subr.mxu0 %v821
    %1472 = vmatpush1.msra.mxu0 %v820
    %1473 = vmatprep.subr.mxu0 %v829
    %1474 = vmatpush1.msra.mxu0 %v828
    %1475 = vmatprep.subr.mxu0 %v837
    %1476 = vmatpush1.msra.mxu0 %v836
    %1477 = vmatprep.subr.mxu0 %v845
    %1478 = vmatpush1.msra.mxu0 %v844
    %1479 = vmatprep.subr.mxu0 %v853
    %1480 = vmatpush1.msra.mxu0 %v852
    %1481 = vmatprep.subr.mxu0 %v861
    %1482 = vmatpush1.msra.mxu0 %v860
    %1483 = vmatprep.subr.mxu0 %v869
    %1484 = vmatpush1.msra.mxu0 %v868
    %1485 = vmatprep.subr.mxu0 %v877
    %1486 = vmatpush1.msra.mxu0 %v876
    %1487 = vmatprep.subr.mxu0 %v885
    %1488 = vmatpush1.msra.mxu0 %v884
    %1489 = vmatprep.mubr.f32.mxu0 %v372
    %1490 = vmatmul.mubr.f32.gmra.mrb[0].mxu0 %v370
    %v1491 = vpop.f32.mrb[0].mxu0
    %v1492 = vadd.f32 %v1421, %v1491
    %v1493 = vpop.f32.mrb[0].mxu0
    %v1494 = vadd.f32 %v1423, %v1493
    %1495 = vdwg.mxu0
    %v1496 = vmax.f32 %v1066, 0.0
    %v1497 = vmax.f32 %v1068, 0.0
    %v1498 = vmax.f32 %v1208, 0.0
    %v1499 = vmax.f32 %v1210, 0.0
    %v1500 = vmax.f32 %v1350, 0.0
    %v1501 = vmax.f32 %v1352, 0.0
    %v1502 = vmax.f32 %v1492, 0.0
    %v1503 = vmax.f32 %v1494, 0.0
    %v1504 = vld [vmem:[#allocation11] sm:$0xff]
    %v1505 = vld [vmem:[#allocation11 + $0x8] sm:$0xff]
    %v1506 = vld [vmem:[#allocation11 + $0x10] sm:$0xff]
    %v1507 = vld [vmem:[#allocation11 + $0x18] sm:$0xff]
    %v1508 = vld [vmem:[#allocation11 + $0x20] sm:$0xff]
    %v1509 = vld [vmem:[#allocation11 + $0x28] sm:$0xff]
    %v1510 = vld [vmem:[#allocation11 + $0x30] sm:$0xff]
    %v1511 = vld [vmem:[#allocation11 + $0x38] sm:$0xff]
    %v1512 = vld [vmem:[#allocation11 + $0x40] sm:$0xff]
    %v1513 = vld [vmem:[#allocation11 + $0x48] sm:$0xff]
    %v1514 = vld [vmem:[#allocation11 + $0x50] sm:$0xff]
    %v1515 = vld [vmem:[#allocation11 + $0x58] sm:$0xff]
    %v1516 = vld [vmem:[#allocation11 + $0x60] sm:$0xff]
    %v1517 = vld [vmem:[#allocation11 + $0x68] sm:$0xff]
    %v1518 = vld [vmem:[#allocation11 + $0x70] sm:$0xff]
    %v1519 = vld [vmem:[#allocation11 + $0x78] sm:$0xff]
    %v1520 = vld [vmem:[#allocation11 + $0x80] sm:$0xff]
    %v1521 = vld [vmem:[#allocation11 + $0x88] sm:$0xff]
    %v1522 = vld [vmem:[#allocation11 + $0x90] sm:$0xff]
    %v1523 = vld [vmem:[#allocation11 + $0x98] sm:$0xff]
    %v1524 = vld [vmem:[#allocation11 + $0xa0] sm:$0xff]
    %v1525 = vld [vmem:[#allocation11 + $0xa8] sm:$0xff]
    %v1526 = vld [vmem:[#allocation11 + $0xb0] sm:$0xff]
    %v1527 = vld [vmem:[#allocation11 + $0xb8] sm:$0xff]
    %v1528 = vld [vmem:[#allocation11 + $0xc0] sm:$0xff]
    %v1529 = vld [vmem:[#allocation11 + $0xc8] sm:$0xff]
    %v1530 = vld [vmem:[#allocation11 + $0xd0] sm:$0xff]
    %v1531 = vld [vmem:[#allocation11 + $0xd8] sm:$0xff]
    %v1532 = vld [vmem:[#allocation11 + $0xe0] sm:$0xff]
    %v1533 = vld [vmem:[#allocation11 + $0xe8] sm:$0xff]
    %v1534 = vld [vmem:[#allocation11 + $0xf0] sm:$0xff]
    %v1535 = vld [vmem:[#allocation11 + $0xf8] sm:$0xff]
    %v1536 = vld [vmem:[#allocation11 + $0x100] sm:$0xff]
    %v1537 = vld [vmem:[#allocation11 + $0x108] sm:$0xff]
    %v1538 = vld [vmem:[#allocation11 + $0x110] sm:$0xff]
    %v1539 = vld [vmem:[#allocation11 + $0x118] sm:$0xff]
    %v1540 = vld [vmem:[#allocation11 + $0x120] sm:$0xff]
    %v1541 = vld [vmem:[#allocation11 + $0x128] sm:$0xff]
    %v1542 = vld [vmem:[#allocation11 + $0x130] sm:$0xff]
    %v1543 = vld [vmem:[#allocation11 + $0x138] sm:$0xff]
    %v1544 = vld [vmem:[#allocation11 + $0x140] sm:$0xff]
    %v1545 = vld [vmem:[#allocation11 + $0x148] sm:$0xff]
    %v1546 = vld [vmem:[#allocation11 + $0x150] sm:$0xff]
    %v1547 = vld [vmem:[#allocation11 + $0x158] sm:$0xff]
    %v1548 = vld [vmem:[#allocation11 + $0x160] sm:$0xff]
    %v1549 = vld [vmem:[#allocation11 + $0x168] sm:$0xff]
    %v1550 = vld [vmem:[#allocation11 + $0x170] sm:$0xff]
    %v1551 = vld [vmem:[#allocation11 + $0x178] sm:$0xff]
    %v1552 = vld [vmem:[#allocation11 + $0x180] sm:$0xff]
    %v1553 = vld [vmem:[#allocation11 + $0x188] sm:$0xff]
    %v1554 = vld [vmem:[#allocation11 + $0x190] sm:$0xff]
    %v1555 = vld [vmem:[#allocation11 + $0x198] sm:$0xff]
    %v1556 = vld [vmem:[#allocation11 + $0x1a0] sm:$0xff]
    %v1557 = vld [vmem:[#allocation11 + $0x1a8] sm:$0xff]
    %v1558 = vld [vmem:[#allocation11 + $0x1b0] sm:$0xff]
    %v1559 = vld [vmem:[#allocation11 + $0x1b8] sm:$0xff]
    %v1560 = vld [vmem:[#allocation11 + $0x1c0] sm:$0xff]
    %v1561 = vld [vmem:[#allocation11 + $0x1c8] sm:$0xff]
    %v1562 = vld [vmem:[#allocation11 + $0x1d0] sm:$0xff]
    %v1563 = vld [vmem:[#allocation11 + $0x1d8] sm:$0xff]
    %v1564 = vld [vmem:[#allocation11 + $0x1e0] sm:$0xff]
    %v1565 = vld [vmem:[#allocation11 + $0x1e8] sm:$0xff]
    %v1566 = vld [vmem:[#allocation11 + $0x1f0] sm:$0xff]
    %v1567 = vld [vmem:[#allocation11 + $0x1f8] sm:$0xff]
    %v1568 = vld [vmem:[#allocation11 + $0x200] sm:$0xff]
    %v1569 = vld [vmem:[#allocation11 + $0x208] sm:$0xff]
    %v1570 = vld [vmem:[#allocation11 + $0x210] sm:$0xff]
    %v1571 = vld [vmem:[#allocation11 + $0x218] sm:$0xff]
    %v1572 = vld [vmem:[#allocation11 + $0x220] sm:$0xff]
    %v1573 = vld [vmem:[#allocation11 + $0x228] sm:$0xff]
    %v1574 = vld [vmem:[#allocation11 + $0x230] sm:$0xff]
    %v1575 = vld [vmem:[#allocation11 + $0x238] sm:$0xff]
    %v1576 = vld [vmem:[#allocation11 + $0x240] sm:$0xff]
    %v1577 = vld [vmem:[#allocation11 + $0x248] sm:$0xff]
    %v1578 = vld [vmem:[#allocation11 + $0x250] sm:$0xff]
    %v1579 = vld [vmem:[#allocation11 + $0x258] sm:$0xff]
    %v1580 = vld [vmem:[#allocation11 + $0x260] sm:$0xff]
    %v1581 = vld [vmem:[#allocation11 + $0x268] sm:$0xff]
    %v1582 = vld [vmem:[#allocation11 + $0x270] sm:$0xff]
    %v1583 = vld [vmem:[#allocation11 + $0x278] sm:$0xff]
    %v1584 = vld [vmem:[#allocation11 + $0x280] sm:$0xff]
    %v1585 = vld [vmem:[#allocation11 + $0x288] sm:$0xff]
    %v1586 = vld [vmem:[#allocation11 + $0x290] sm:$0xff]
    %v1587 = vld [vmem:[#allocation11 + $0x298] sm:$0xff]
    %v1588 = vld [vmem:[#allocation11 + $0x2a0] sm:$0xff]
    %v1589 = vld [vmem:[#allocation11 + $0x2a8] sm:$0xff]
    %v1590 = vld [vmem:[#allocation11 + $0x2b0] sm:$0xff]
    %v1591 = vld [vmem:[#allocation11 + $0x2b8] sm:$0xff]
    %v1592 = vld [vmem:[#allocation11 + $0x2c0] sm:$0xff]
    %v1593 = vld [vmem:[#allocation11 + $0x2c8] sm:$0xff]
    %v1594 = vld [vmem:[#allocation11 + $0x2d0] sm:$0xff]
    %v1595 = vld [vmem:[#allocation11 + $0x2d8] sm:$0xff]
    %v1596 = vld [vmem:[#allocation11 + $0x2e0] sm:$0xff]
    %v1597 = vld [vmem:[#allocation11 + $0x2e8] sm:$0xff]
    %v1598 = vld [vmem:[#allocation11 + $0x2f0] sm:$0xff]
    %v1599 = vld [vmem:[#allocation11 + $0x2f8] sm:$0xff]
    %v1600 = vld [vmem:[#allocation11 + $0x300] sm:$0xff]
    %v1601 = vld [vmem:[#allocation11 + $0x308] sm:$0xff]
    %v1602 = vld [vmem:[#allocation11 + $0x310] sm:$0xff]
    %v1603 = vld [vmem:[#allocation11 + $0x318] sm:$0xff]
    %v1604 = vld [vmem:[#allocation11 + $0x320] sm:$0xff]
    %v1605 = vld [vmem:[#allocation11 + $0x328] sm:$0xff]
    %v1606 = vld [vmem:[#allocation11 + $0x330] sm:$0xff]
    %v1607 = vld [vmem:[#allocation11 + $0x338] sm:$0xff]
    %v1608 = vld [vmem:[#allocation11 + $0x340] sm:$0xff]
    %v1609 = vld [vmem:[#allocation11 + $0x348] sm:$0xff]
    %v1610 = vld [vmem:[#allocation11 + $0x350] sm:$0xff]
    %v1611 = vld [vmem:[#allocation11 + $0x358] sm:$0xff]
    %v1612 = vld [vmem:[#allocation11 + $0x360] sm:$0xff]
    %v1613 = vld [vmem:[#allocation11 + $0x368] sm:$0xff]
    %v1614 = vld [vmem:[#allocation11 + $0x370] sm:$0xff]
    %v1615 = vld [vmem:[#allocation11 + $0x378] sm:$0xff]
    %v1616 = vld [vmem:[#allocation11 + $0x380] sm:$0xff]
    %v1617 = vld [vmem:[#allocation11 + $0x388] sm:$0xff]
    %v1618 = vld [vmem:[#allocation11 + $0x390] sm:$0xff]
    %v1619 = vld [vmem:[#allocation11 + $0x398] sm:$0xff]
    %v1620 = vld [vmem:[#allocation11 + $0x3a0] sm:$0xff]
    %v1621 = vld [vmem:[#allocation11 + $0x3a8] sm:$0xff]
    %v1622 = vld [vmem:[#allocation11 + $0x3b0] sm:$0xff]
    %v1623 = vld [vmem:[#allocation11 + $0x3b8] sm:$0xff]
    %v1624 = vld [vmem:[#allocation11 + $0x3c0] sm:$0xff]
    %v1625 = vld [vmem:[#allocation11 + $0x3c8] sm:$0xff]
    %v1626 = vld [vmem:[#allocation11 + $0x3d0] sm:$0xff]
    %v1627 = vld [vmem:[#allocation11 + $0x3d8] sm:$0xff]
    %v1628 = vld [vmem:[#allocation11 + $0x3e0] sm:$0xff]
    %v1629 = vld [vmem:[#allocation11 + $0x3e8] sm:$0xff]
    %v1630 = vld [vmem:[#allocation11 + $0x3f0] sm:$0xff]
    %v1631 = vld [vmem:[#allocation11 + $0x3f8] sm:$0xff]
    %v1632 = vld [vmem:[#allocation11 + $0x400] sm:$0xff]
    %v1633 = vld [vmem:[#allocation11 + $0x408] sm:$0xff]
    %v1634 = vld [vmem:[#allocation11 + $0x410] sm:$0xff]
    %v1635 = vld [vmem:[#allocation11 + $0x418] sm:$0xff]
    %v1636 = vld [vmem:[#allocation11 + $0x420] sm:$0xff]
    %v1637 = vld [vmem:[#allocation11 + $0x428] sm:$0xff]
    %v1638 = vld [vmem:[#allocation11 + $0x430] sm:$0xff]
    %v1639 = vld [vmem:[#allocation11 + $0x438] sm:$0xff]
    %v1640 = vld [vmem:[#allocation11 + $0x440] sm:$0xff]
    %v1641 = vld [vmem:[#allocation11 + $0x448] sm:$0xff]
    %v1642 = vld [vmem:[#allocation11 + $0x450] sm:$0xff]
    %v1643 = vld [vmem:[#allocation11 + $0x458] sm:$0xff]
    %v1644 = vld [vmem:[#allocation11 + $0x460] sm:$0xff]
    %v1645 = vld [vmem:[#allocation11 + $0x468] sm:$0xff]
    %v1646 = vld [vmem:[#allocation11 + $0x470] sm:$0xff]
    %v1647 = vld [vmem:[#allocation11 + $0x478] sm:$0xff]
    %v1648 = vld [vmem:[#allocation11 + $0x480] sm:$0xff]
    %v1649 = vld [vmem:[#allocation11 + $0x488] sm:$0xff]
    %v1650 = vld [vmem:[#allocation11 + $0x490] sm:$0xff]
    %v1651 = vld [vmem:[#allocation11 + $0x498] sm:$0xff]
    %v1652 = vld [vmem:[#allocation11 + $0x4a0] sm:$0xff]
    %v1653 = vld [vmem:[#allocation11 + $0x4a8] sm:$0xff]
    %v1654 = vld [vmem:[#allocation11 + $0x4b0] sm:$0xff]
    %v1655 = vld [vmem:[#allocation11 + $0x4b8] sm:$0xff]
    %v1656 = vld [vmem:[#allocation11 + $0x4c0] sm:$0xff]
    %v1657 = vld [vmem:[#allocation11 + $0x4c8] sm:$0xff]
    %v1658 = vld [vmem:[#allocation11 + $0x4d0] sm:$0xff]
    %v1659 = vld [vmem:[#allocation11 + $0x4d8] sm:$0xff]
    %v1660 = vld [vmem:[#allocation11 + $0x4e0] sm:$0xff]
    %v1661 = vld [vmem:[#allocation11 + $0x4e8] sm:$0xff]
    %v1662 = vld [vmem:[#allocation11 + $0x4f0] sm:$0xff]
    %v1663 = vld [vmem:[#allocation11 + $0x4f8] sm:$0xff]
    %v1664 = vld [vmem:[#allocation11 + $0x500] sm:$0xff]
    %v1665 = vld [vmem:[#allocation11 + $0x508] sm:$0xff]
    %v1666 = vld [vmem:[#allocation11 + $0x510] sm:$0xff]
    %v1667 = vld [vmem:[#allocation11 + $0x518] sm:$0xff]
    %v1668 = vld [vmem:[#allocation11 + $0x520] sm:$0xff]
    %v1669 = vld [vmem:[#allocation11 + $0x528] sm:$0xff]
    %v1670 = vld [vmem:[#allocation11 + $0x530] sm:$0xff]
    %v1671 = vld [vmem:[#allocation11 + $0x538] sm:$0xff]
    %v1672 = vld [vmem:[#allocation11 + $0x540] sm:$0xff]
    %v1673 = vld [vmem:[#allocation11 + $0x548] sm:$0xff]
    %v1674 = vld [vmem:[#allocation11 + $0x550] sm:$0xff]
    %v1675 = vld [vmem:[#allocation11 + $0x558] sm:$0xff]
    %v1676 = vld [vmem:[#allocation11 + $0x560] sm:$0xff]
    %v1677 = vld [vmem:[#allocation11 + $0x568] sm:$0xff]
    %v1678 = vld [vmem:[#allocation11 + $0x570] sm:$0xff]
    %v1679 = vld [vmem:[#allocation11 + $0x578] sm:$0xff]
    %v1680 = vld [vmem:[#allocation11 + $0x580] sm:$0xff]
    %v1681 = vld [vmem:[#allocation11 + $0x588] sm:$0xff]
    %v1682 = vld [vmem:[#allocation11 + $0x590] sm:$0xff]
    %v1683 = vld [vmem:[#allocation11 + $0x598] sm:$0xff]
    %v1684 = vld [vmem:[#allocation11 + $0x5a0] sm:$0xff]
    %v1685 = vld [vmem:[#allocation11 + $0x5a8] sm:$0xff]
    %v1686 = vld [vmem:[#allocation11 + $0x5b0] sm:$0xff]
    %v1687 = vld [vmem:[#allocation11 + $0x5b8] sm:$0xff]
    %v1688 = vld [vmem:[#allocation11 + $0x5c0] sm:$0xff]
    %v1689 = vld [vmem:[#allocation11 + $0x5c8] sm:$0xff]
    %v1690 = vld [vmem:[#allocation11 + $0x5d0] sm:$0xff]
    %v1691 = vld [vmem:[#allocation11 + $0x5d8] sm:$0xff]
    %v1692 = vld [vmem:[#allocation11 + $0x5e0] sm:$0xff]
    %v1693 = vld [vmem:[#allocation11 + $0x5e8] sm:$0xff]
    %v1694 = vld [vmem:[#allocation11 + $0x5f0] sm:$0xff]
    %v1695 = vld [vmem:[#allocation11 + $0x5f8] sm:$0xff]
    %v1696 = vld [vmem:[#allocation11 + $0x600] sm:$0xff]
    %v1697 = vld [vmem:[#allocation11 + $0x608] sm:$0xff]
    %v1698 = vld [vmem:[#allocation11 + $0x610] sm:$0xff]
    %v1699 = vld [vmem:[#allocation11 + $0x618] sm:$0xff]
    %v1700 = vld [vmem:[#allocation11 + $0x620] sm:$0xff]
    %v1701 = vld [vmem:[#allocation11 + $0x628] sm:$0xff]
    %v1702 = vld [vmem:[#allocation11 + $0x630] sm:$0xff]
    %v1703 = vld [vmem:[#allocation11 + $0x638] sm:$0xff]
    %v1704 = vld [vmem:[#allocation11 + $0x640] sm:$0xff]
    %v1705 = vld [vmem:[#allocation11 + $0x648] sm:$0xff]
    %v1706 = vld [vmem:[#allocation11 + $0x650] sm:$0xff]
    %v1707 = vld [vmem:[#allocation11 + $0x658] sm:$0xff]
    %v1708 = vld [vmem:[#allocation11 + $0x660] sm:$0xff]
    %v1709 = vld [vmem:[#allocation11 + $0x668] sm:$0xff]
    %v1710 = vld [vmem:[#allocation11 + $0x670] sm:$0xff]
    %v1711 = vld [vmem:[#allocation11 + $0x678] sm:$0xff]
    %v1712 = vld [vmem:[#allocation11 + $0x680] sm:$0xff]
    %v1713 = vld [vmem:[#allocation11 + $0x688] sm:$0xff]
    %v1714 = vld [vmem:[#allocation11 + $0x690] sm:$0xff]
    %v1715 = vld [vmem:[#allocation11 + $0x698] sm:$0xff]
    %v1716 = vld [vmem:[#allocation11 + $0x6a0] sm:$0xff]
    %v1717 = vld [vmem:[#allocation11 + $0x6a8] sm:$0xff]
    %v1718 = vld [vmem:[#allocation11 + $0x6b0] sm:$0xff]
    %v1719 = vld [vmem:[#allocation11 + $0x6b8] sm:$0xff]
    %v1720 = vld [vmem:[#allocation11 + $0x6c0] sm:$0xff]
    %v1721 = vld [vmem:[#allocation11 + $0x6c8] sm:$0xff]
    %v1722 = vld [vmem:[#allocation11 + $0x6d0] sm:$0xff]
    %v1723 = vld [vmem:[#allocation11 + $0x6d8] sm:$0xff]
    %v1724 = vld [vmem:[#allocation11 + $0x6e0] sm:$0xff]
    %v1725 = vld [vmem:[#allocation11 + $0x6e8] sm:$0xff]
    %v1726 = vld [vmem:[#allocation11 + $0x6f0] sm:$0xff]
    %v1727 = vld [vmem:[#allocation11 + $0x6f8] sm:$0xff]
    %v1728 = vld [vmem:[#allocation11 + $0x700] sm:$0xff]
    %v1729 = vld [vmem:[#allocation11 + $0x708] sm:$0xff]
    %v1730 = vld [vmem:[#allocation11 + $0x710] sm:$0xff]
    %v1731 = vld [vmem:[#allocation11 + $0x718] sm:$0xff]
    %v1732 = vld [vmem:[#allocation11 + $0x720] sm:$0xff]
    %v1733 = vld [vmem:[#allocation11 + $0x728] sm:$0xff]
    %v1734 = vld [vmem:[#allocation11 + $0x730] sm:$0xff]
    %v1735 = vld [vmem:[#allocation11 + $0x738] sm:$0xff]
    %v1736 = vld [vmem:[#allocation11 + $0x740] sm:$0xff]
    %v1737 = vld [vmem:[#allocation11 + $0x748] sm:$0xff]
    %v1738 = vld [vmem:[#allocation11 + $0x750] sm:$0xff]
    %v1739 = vld [vmem:[#allocation11 + $0x758] sm:$0xff]
    %v1740 = vld [vmem:[#allocation11 + $0x760] sm:$0xff]
    %v1741 = vld [vmem:[#allocation11 + $0x768] sm:$0xff]
    %v1742 = vld [vmem:[#allocation11 + $0x770] sm:$0xff]
    %v1743 = vld [vmem:[#allocation11 + $0x778] sm:$0xff]
    %v1744 = vld [vmem:[#allocation11 + $0x780] sm:$0xff]
    %v1745 = vld [vmem:[#allocation11 + $0x788] sm:$0xff]
    %v1746 = vld [vmem:[#allocation11 + $0x790] sm:$0xff]
    %v1747 = vld [vmem:[#allocation11 + $0x798] sm:$0xff]
    %v1748 = vld [vmem:[#allocation11 + $0x7a0] sm:$0xff]
    %v1749 = vld [vmem:[#allocation11 + $0x7a8] sm:$0xff]
    %v1750 = vld [vmem:[#allocation11 + $0x7b0] sm:$0xff]
    %v1751 = vld [vmem:[#allocation11 + $0x7b8] sm:$0xff]
    %v1752 = vld [vmem:[#allocation11 + $0x7c0] sm:$0xff]
    %v1753 = vld [vmem:[#allocation11 + $0x7c8] sm:$0xff]
    %v1754 = vld [vmem:[#allocation11 + $0x7d0] sm:$0xff]
    %v1755 = vld [vmem:[#allocation11 + $0x7d8] sm:$0xff]
    %v1756 = vld [vmem:[#allocation11 + $0x7e0] sm:$0xff]
    %v1757 = vld [vmem:[#allocation11 + $0x7e8] sm:$0xff]
    %v1758 = vld [vmem:[#allocation11 + $0x7f0] sm:$0xff]
    %v1759 = vld [vmem:[#allocation11 + $0x7f8] sm:$0xff]
    %v1760 = vld [vmem:[#allocation11 + $0x800] sm:$0xff]
    %v1761 = vld [vmem:[#allocation11 + $0x808] sm:$0xff]
    %v1762 = vld [vmem:[#allocation11 + $0x810] sm:$0xff]
    %v1763 = vld [vmem:[#allocation11 + $0x818] sm:$0xff]
    %v1764 = vld [vmem:[#allocation11 + $0x820] sm:$0xff]
    %v1765 = vld [vmem:[#allocation11 + $0x828] sm:$0xff]
    %v1766 = vld [vmem:[#allocation11 + $0x830] sm:$0xff]
    %v1767 = vld [vmem:[#allocation11 + $0x838] sm:$0xff]
    %v1768 = vld [vmem:[#allocation11 + $0x840] sm:$0xff]
    %v1769 = vld [vmem:[#allocation11 + $0x848] sm:$0xff]
    %v1770 = vld [vmem:[#allocation11 + $0x850] sm:$0xff]
    %v1771 = vld [vmem:[#allocation11 + $0x858] sm:$0xff]
    %v1772 = vld [vmem:[#allocation11 + $0x860] sm:$0xff]
    %v1773 = vld [vmem:[#allocation11 + $0x868] sm:$0xff]
    %v1774 = vld [vmem:[#allocation11 + $0x870] sm:$0xff]
    %v1775 = vld [vmem:[#allocation11 + $0x878] sm:$0xff]
    %v1776 = vld [vmem:[#allocation11 + $0x880] sm:$0xff]
    %v1777 = vld [vmem:[#allocation11 + $0x888] sm:$0xff]
    %v1778 = vld [vmem:[#allocation11 + $0x890] sm:$0xff]
    %v1779 = vld [vmem:[#allocation11 + $0x898] sm:$0xff]
    %v1780 = vld [vmem:[#allocation11 + $0x8a0] sm:$0xff]
    %v1781 = vld [vmem:[#allocation11 + $0x8a8] sm:$0xff]
    %v1782 = vld [vmem:[#allocation11 + $0x8b0] sm:$0xff]
    %v1783 = vld [vmem:[#allocation11 + $0x8b8] sm:$0xff]
    %v1784 = vld [vmem:[#allocation11 + $0x8c0] sm:$0xff]
    %v1785 = vld [vmem:[#allocation11 + $0x8c8] sm:$0xff]
    %v1786 = vld [vmem:[#allocation11 + $0x8d0] sm:$0xff]
    %v1787 = vld [vmem:[#allocation11 + $0x8d8] sm:$0xff]
    %v1788 = vld [vmem:[#allocation11 + $0x8e0] sm:$0xff]
    %v1789 = vld [vmem:[#allocation11 + $0x8e8] sm:$0xff]
    %v1790 = vld [vmem:[#allocation11 + $0x8f0] sm:$0xff]
    %v1791 = vld [vmem:[#allocation11 + $0x8f8] sm:$0xff]
    %v1792 = vld [vmem:[#allocation11 + $0x900] sm:$0xff]
    %v1793 = vld [vmem:[#allocation11 + $0x908] sm:$0xff]
    %v1794 = vld [vmem:[#allocation11 + $0x910] sm:$0xff]
    %v1795 = vld [vmem:[#allocation11 + $0x918] sm:$0xff]
    %v1796 = vld [vmem:[#allocation11 + $0x920] sm:$0xff]
    %v1797 = vld [vmem:[#allocation11 + $0x928] sm:$0xff]
    %v1798 = vld [vmem:[#allocation11 + $0x930] sm:$0xff]
    %v1799 = vld [vmem:[#allocation11 + $0x938] sm:$0xff]
    %v1800 = vld [vmem:[#allocation11 + $0x940] sm:$0xff]
    %v1801 = vld [vmem:[#allocation11 + $0x948] sm:$0xff]
    %v1802 = vld [vmem:[#allocation11 + $0x950] sm:$0xff]
    %v1803 = vld [vmem:[#allocation11 + $0x958] sm:$0xff]
    %v1804 = vld [vmem:[#allocation11 + $0x960] sm:$0xff]
    %v1805 = vld [vmem:[#allocation11 + $0x968] sm:$0xff]
    %v1806 = vld [vmem:[#allocation11 + $0x970] sm:$0xff]
    %v1807 = vld [vmem:[#allocation11 + $0x978] sm:$0xff]
    %v1808 = vld [vmem:[#allocation11 + $0x980] sm:$0xff]
    %v1809 = vld [vmem:[#allocation11 + $0x988] sm:$0xff]
    %v1810 = vld [vmem:[#allocation11 + $0x990] sm:$0xff]
    %v1811 = vld [vmem:[#allocation11 + $0x998] sm:$0xff]
    %v1812 = vld [vmem:[#allocation11 + $0x9a0] sm:$0xff]
    %v1813 = vld [vmem:[#allocation11 + $0x9a8] sm:$0xff]
    %v1814 = vld [vmem:[#allocation11 + $0x9b0] sm:$0xff]
    %v1815 = vld [vmem:[#allocation11 + $0x9b8] sm:$0xff]
    %v1816 = vld [vmem:[#allocation11 + $0x9c0] sm:$0xff]
    %v1817 = vld [vmem:[#allocation11 + $0x9c8] sm:$0xff]
    %v1818 = vld [vmem:[#allocation11 + $0x9d0] sm:$0xff]
    %v1819 = vld [vmem:[#allocation11 + $0x9d8] sm:$0xff]
    %v1820 = vld [vmem:[#allocation11 + $0x9e0] sm:$0xff]
    %v1821 = vld [vmem:[#allocation11 + $0x9e8] sm:$0xff]
    %v1822 = vld [vmem:[#allocation11 + $0x9f0] sm:$0xff]
    %v1823 = vld [vmem:[#allocation11 + $0x9f8] sm:$0xff]
    %v1824 = vld [vmem:[#allocation11 + $0xa00] sm:$0xff]
    %v1825 = vld [vmem:[#allocation11 + $0xa08] sm:$0xff]
    %v1826 = vld [vmem:[#allocation11 + $0xa10] sm:$0xff]
    %v1827 = vld [vmem:[#allocation11 + $0xa18] sm:$0xff]
    %v1828 = vld [vmem:[#allocation11 + $0xa20] sm:$0xff]
    %v1829 = vld [vmem:[#allocation11 + $0xa28] sm:$0xff]
    %v1830 = vld [vmem:[#allocation11 + $0xa30] sm:$0xff]
    %v1831 = vld [vmem:[#allocation11 + $0xa38] sm:$0xff]
    %v1832 = vld [vmem:[#allocation11 + $0xa40] sm:$0xff]
    %v1833 = vld [vmem:[#allocation11 + $0xa48] sm:$0xff]
    %v1834 = vld [vmem:[#allocation11 + $0xa50] sm:$0xff]
    %v1835 = vld [vmem:[#allocation11 + $0xa58] sm:$0xff]
    %v1836 = vld [vmem:[#allocation11 + $0xa60] sm:$0xff]
    %v1837 = vld [vmem:[#allocation11 + $0xa68] sm:$0xff]
    %v1838 = vld [vmem:[#allocation11 + $0xa70] sm:$0xff]
    %v1839 = vld [vmem:[#allocation11 + $0xa78] sm:$0xff]
    %v1840 = vld [vmem:[#allocation11 + $0xa80] sm:$0xff]
    %v1841 = vld [vmem:[#allocation11 + $0xa88] sm:$0xff]
    %v1842 = vld [vmem:[#allocation11 + $0xa90] sm:$0xff]
    %v1843 = vld [vmem:[#allocation11 + $0xa98] sm:$0xff]
    %v1844 = vld [vmem:[#allocation11 + $0xaa0] sm:$0xff]
    %v1845 = vld [vmem:[#allocation11 + $0xaa8] sm:$0xff]
    %v1846 = vld [vmem:[#allocation11 + $0xab0] sm:$0xff]
    %v1847 = vld [vmem:[#allocation11 + $0xab8] sm:$0xff]
    %v1848 = vld [vmem:[#allocation11 + $0xac0] sm:$0xff]
    %v1849 = vld [vmem:[#allocation11 + $0xac8] sm:$0xff]
    %v1850 = vld [vmem:[#allocation11 + $0xad0] sm:$0xff]
    %v1851 = vld [vmem:[#allocation11 + $0xad8] sm:$0xff]
    %v1852 = vld [vmem:[#allocation11 + $0xae0] sm:$0xff]
    %v1853 = vld [vmem:[#allocation11 + $0xae8] sm:$0xff]
    %v1854 = vld [vmem:[#allocation11 + $0xaf0] sm:$0xff]
    %v1855 = vld [vmem:[#allocation11 + $0xaf8] sm:$0xff]
    %v1856 = vld [vmem:[#allocation11 + $0xb00] sm:$0xff]
    %v1857 = vld [vmem:[#allocation11 + $0xb08] sm:$0xff]
    %v1858 = vld [vmem:[#allocation11 + $0xb10] sm:$0xff]
    %v1859 = vld [vmem:[#allocation11 + $0xb18] sm:$0xff]
    %v1860 = vld [vmem:[#allocation11 + $0xb20] sm:$0xff]
    %v1861 = vld [vmem:[#allocation11 + $0xb28] sm:$0xff]
    %v1862 = vld [vmem:[#allocation11 + $0xb30] sm:$0xff]
    %v1863 = vld [vmem:[#allocation11 + $0xb38] sm:$0xff]
    %v1864 = vld [vmem:[#allocation11 + $0xb40] sm:$0xff]
    %v1865 = vld [vmem:[#allocation11 + $0xb48] sm:$0xff]
    %v1866 = vld [vmem:[#allocation11 + $0xb50] sm:$0xff]
    %v1867 = vld [vmem:[#allocation11 + $0xb58] sm:$0xff]
    %v1868 = vld [vmem:[#allocation11 + $0xb60] sm:$0xff]
    %v1869 = vld [vmem:[#allocation11 + $0xb68] sm:$0xff]
    %v1870 = vld [vmem:[#allocation11 + $0xb70] sm:$0xff]
    %v1871 = vld [vmem:[#allocation11 + $0xb78] sm:$0xff]
    %v1872 = vld [vmem:[#allocation11 + $0xb80] sm:$0xff]
    %v1873 = vld [vmem:[#allocation11 + $0xb88] sm:$0xff]
    %v1874 = vld [vmem:[#allocation11 + $0xb90] sm:$0xff]
    %v1875 = vld [vmem:[#allocation11 + $0xb98] sm:$0xff]
    %v1876 = vld [vmem:[#allocation11 + $0xba0] sm:$0xff]
    %v1877 = vld [vmem:[#allocation11 + $0xba8] sm:$0xff]
    %v1878 = vld [vmem:[#allocation11 + $0xbb0] sm:$0xff]
    %v1879 = vld [vmem:[#allocation11 + $0xbb8] sm:$0xff]
    %v1880 = vld [vmem:[#allocation11 + $0xbc0] sm:$0xff]
    %v1881 = vld [vmem:[#allocation11 + $0xbc8] sm:$0xff]
    %v1882 = vld [vmem:[#allocation11 + $0xbd0] sm:$0xff]
    %v1883 = vld [vmem:[#allocation11 + $0xbd8] sm:$0xff]
    %v1884 = vld [vmem:[#allocation11 + $0xbe0] sm:$0xff]
    %v1885 = vld [vmem:[#allocation11 + $0xbe8] sm:$0xff]
    %v1886 = vld [vmem:[#allocation11 + $0xbf0] sm:$0xff]
    %v1887 = vld [vmem:[#allocation11 + $0xbf8] sm:$0xff]
    %v1888 = vld [vmem:[#allocation11 + $0xc00] sm:$0xff]
    %v1889 = vld [vmem:[#allocation11 + $0xc08] sm:$0xff]
    %v1890 = vld [vmem:[#allocation11 + $0xc10] sm:$0xff]
    %v1891 = vld [vmem:[#allocation11 + $0xc18] sm:$0xff]
    %v1892 = vld [vmem:[#allocation11 + $0xc20] sm:$0xff]
    %v1893 = vld [vmem:[#allocation11 + $0xc28] sm:$0xff]
    %v1894 = vld [vmem:[#allocation11 + $0xc30] sm:$0xff]
    %v1895 = vld [vmem:[#allocation11 + $0xc38] sm:$0xff]
    %v1896 = vld [vmem:[#allocation11 + $0xc40] sm:$0xff]
    %v1897 = vld [vmem:[#allocation11 + $0xc48] sm:$0xff]
    %v1898 = vld [vmem:[#allocation11 + $0xc50] sm:$0xff]
    %v1899 = vld [vmem:[#allocation11 + $0xc58] sm:$0xff]
    %v1900 = vld [vmem:[#allocation11 + $0xc60] sm:$0xff]
    %v1901 = vld [vmem:[#allocation11 + $0xc68] sm:$0xff]
    %v1902 = vld [vmem:[#allocation11 + $0xc70] sm:$0xff]
    %v1903 = vld [vmem:[#allocation11 + $0xc78] sm:$0xff]
    %v1904 = vld [vmem:[#allocation11 + $0xc80] sm:$0xff]
    %v1905 = vld [vmem:[#allocation11 + $0xc88] sm:$0xff]
    %v1906 = vld [vmem:[#allocation11 + $0xc90] sm:$0xff]
    %v1907 = vld [vmem:[#allocation11 + $0xc98] sm:$0xff]
    %v1908 = vld [vmem:[#allocation11 + $0xca0] sm:$0xff]
    %v1909 = vld [vmem:[#allocation11 + $0xca8] sm:$0xff]
    %v1910 = vld [vmem:[#allocation11 + $0xcb0] sm:$0xff]
    %v1911 = vld [vmem:[#allocation11 + $0xcb8] sm:$0xff]
    %v1912 = vld [vmem:[#allocation11 + $0xcc0] sm:$0xff]
    %v1913 = vld [vmem:[#allocation11 + $0xcc8] sm:$0xff]
    %v1914 = vld [vmem:[#allocation11 + $0xcd0] sm:$0xff]
    %v1915 = vld [vmem:[#allocation11 + $0xcd8] sm:$0xff]
    %v1916 = vld [vmem:[#allocation11 + $0xce0] sm:$0xff]
    %v1917 = vld [vmem:[#allocation11 + $0xce8] sm:$0xff]
    %v1918 = vld [vmem:[#allocation11 + $0xcf0] sm:$0xff]
    %v1919 = vld [vmem:[#allocation11 + $0xcf8] sm:$0xff]
    %v1920 = vld [vmem:[#allocation11 + $0xd00] sm:$0xff]
    %v1921 = vld [vmem:[#allocation11 + $0xd08] sm:$0xff]
    %v1922 = vld [vmem:[#allocation11 + $0xd10] sm:$0xff]
    %v1923 = vld [vmem:[#allocation11 + $0xd18] sm:$0xff]
    %v1924 = vld [vmem:[#allocation11 + $0xd20] sm:$0xff]
    %v1925 = vld [vmem:[#allocation11 + $0xd28] sm:$0xff]
    %v1926 = vld [vmem:[#allocation11 + $0xd30] sm:$0xff]
    %v1927 = vld [vmem:[#allocation11 + $0xd38] sm:$0xff]
    %v1928 = vld [vmem:[#allocation11 + $0xd40] sm:$0xff]
    %v1929 = vld [vmem:[#allocation11 + $0xd48] sm:$0xff]
    %v1930 = vld [vmem:[#allocation11 + $0xd50] sm:$0xff]
    %v1931 = vld [vmem:[#allocation11 + $0xd58] sm:$0xff]
    %v1932 = vld [vmem:[#allocation11 + $0xd60] sm:$0xff]
    %v1933 = vld [vmem:[#allocation11 + $0xd68] sm:$0xff]
    %v1934 = vld [vmem:[#allocation11 + $0xd70] sm:$0xff]
    %v1935 = vld [vmem:[#allocation11 + $0xd78] sm:$0xff]
    %v1936 = vld [vmem:[#allocation11 + $0xd80] sm:$0xff]
    %v1937 = vld [vmem:[#allocation11 + $0xd88] sm:$0xff]
    %v1938 = vld [vmem:[#allocation11 + $0xd90] sm:$0xff]
    %v1939 = vld [vmem:[#allocation11 + $0xd98] sm:$0xff]
    %v1940 = vld [vmem:[#allocation11 + $0xda0] sm:$0xff]
    %v1941 = vld [vmem:[#allocation11 + $0xda8] sm:$0xff]
    %v1942 = vld [vmem:[#allocation11 + $0xdb0] sm:$0xff]
    %v1943 = vld [vmem:[#allocation11 + $0xdb8] sm:$0xff]
    %v1944 = vld [vmem:[#allocation11 + $0xdc0] sm:$0xff]
    %v1945 = vld [vmem:[#allocation11 + $0xdc8] sm:$0xff]
    %v1946 = vld [vmem:[#allocation11 + $0xdd0] sm:$0xff]
    %v1947 = vld [vmem:[#allocation11 + $0xdd8] sm:$0xff]
    %v1948 = vld [vmem:[#allocation11 + $0xde0] sm:$0xff]
    %v1949 = vld [vmem:[#allocation11 + $0xde8] sm:$0xff]
    %v1950 = vld [vmem:[#allocation11 + $0xdf0] sm:$0xff]
    %v1951 = vld [vmem:[#allocation11 + $0xdf8] sm:$0xff]
    %v1952 = vld [vmem:[#allocation11 + $0xe00] sm:$0xff]
    %v1953 = vld [vmem:[#allocation11 + $0xe08] sm:$0xff]
    %v1954 = vld [vmem:[#allocation11 + $0xe10] sm:$0xff]
    %v1955 = vld [vmem:[#allocation11 + $0xe18] sm:$0xff]
    %v1956 = vld [vmem:[#allocation11 + $0xe20] sm:$0xff]
    %v1957 = vld [vmem:[#allocation11 + $0xe28] sm:$0xff]
    %v1958 = vld [vmem:[#allocation11 + $0xe30] sm:$0xff]
    %v1959 = vld [vmem:[#allocation11 + $0xe38] sm:$0xff]
    %v1960 = vld [vmem:[#allocation11 + $0xe40] sm:$0xff]
    %v1961 = vld [vmem:[#allocation11 + $0xe48] sm:$0xff]
    %v1962 = vld [vmem:[#allocation11 + $0xe50] sm:$0xff]
    %v1963 = vld [vmem:[#allocation11 + $0xe58] sm:$0xff]
    %v1964 = vld [vmem:[#allocation11 + $0xe60] sm:$0xff]
    %v1965 = vld [vmem:[#allocation11 + $0xe68] sm:$0xff]
    %v1966 = vld [vmem:[#allocation11 + $0xe70] sm:$0xff]
    %v1967 = vld [vmem:[#allocation11 + $0xe78] sm:$0xff]
    %v1968 = vld [vmem:[#allocation11 + $0xe80] sm:$0xff]
    %v1969 = vld [vmem:[#allocation11 + $0xe88] sm:$0xff]
    %v1970 = vld [vmem:[#allocation11 + $0xe90] sm:$0xff]
    %v1971 = vld [vmem:[#allocation11 + $0xe98] sm:$0xff]
    %v1972 = vld [vmem:[#allocation11 + $0xea0] sm:$0xff]
    %v1973 = vld [vmem:[#allocation11 + $0xea8] sm:$0xff]
    %v1974 = vld [vmem:[#allocation11 + $0xeb0] sm:$0xff]
    %v1975 = vld [vmem:[#allocation11 + $0xeb8] sm:$0xff]
    %v1976 = vld [vmem:[#allocation11 + $0xec0] sm:$0xff]
    %v1977 = vld [vmem:[#allocation11 + $0xec8] sm:$0xff]
    %v1978 = vld [vmem:[#allocation11 + $0xed0] sm:$0xff]
    %v1979 = vld [vmem:[#allocation11 + $0xed8] sm:$0xff]
    %v1980 = vld [vmem:[#allocation11 + $0xee0] sm:$0xff]
    %v1981 = vld [vmem:[#allocation11 + $0xee8] sm:$0xff]
    %v1982 = vld [vmem:[#allocation11 + $0xef0] sm:$0xff]
    %v1983 = vld [vmem:[#allocation11 + $0xef8] sm:$0xff]
    %v1984 = vld [vmem:[#allocation11 + $0xf00] sm:$0xff]
    %v1985 = vld [vmem:[#allocation11 + $0xf08] sm:$0xff]
    %v1986 = vld [vmem:[#allocation11 + $0xf10] sm:$0xff]
    %v1987 = vld [vmem:[#allocation11 + $0xf18] sm:$0xff]
    %v1988 = vld [vmem:[#allocation11 + $0xf20] sm:$0xff]
    %v1989 = vld [vmem:[#allocation11 + $0xf28] sm:$0xff]
    %v1990 = vld [vmem:[#allocation11 + $0xf30] sm:$0xff]
    %v1991 = vld [vmem:[#allocation11 + $0xf38] sm:$0xff]
    %v1992 = vld [vmem:[#allocation11 + $0xf40] sm:$0xff]
    %v1993 = vld [vmem:[#allocation11 + $0xf48] sm:$0xff]
    %v1994 = vld [vmem:[#allocation11 + $0xf50] sm:$0xff]
    %v1995 = vld [vmem:[#allocation11 + $0xf58] sm:$0xff]
    %v1996 = vld [vmem:[#allocation11 + $0xf60] sm:$0xff]
    %v1997 = vld [vmem:[#allocation11 + $0xf68] sm:$0xff]
    %v1998 = vld [vmem:[#allocation11 + $0xf70] sm:$0xff]
    %v1999 = vld [vmem:[#allocation11 + $0xf78] sm:$0xff]
    %v2000 = vld [vmem:[#allocation11 + $0xf80] sm:$0xff]
    %v2001 = vld [vmem:[#allocation11 + $0xf88] sm:$0xff]
    %v2002 = vld [vmem:[#allocation11 + $0xf90] sm:$0xff]
    %v2003 = vld [vmem:[#allocation11 + $0xf98] sm:$0xff]
    %v2004 = vld [vmem:[#allocation11 + $0xfa0] sm:$0xff]
    %v2005 = vld [vmem:[#allocation11 + $0xfa8] sm:$0xff]
    %v2006 = vld [vmem:[#allocation11 + $0xfb0] sm:$0xff]
    %v2007 = vld [vmem:[#allocation11 + $0xfb8] sm:$0xff]
    %v2008 = vld [vmem:[#allocation11 + $0xfc0] sm:$0xff]
    %v2009 = vld [vmem:[#allocation11 + $0xfc8] sm:$0xff]
    %v2010 = vld [vmem:[#allocation11 + $0xfd0] sm:$0xff]
    %v2011 = vld [vmem:[#allocation11 + $0xfd8] sm:$0xff]
    %v2012 = vld [vmem:[#allocation11 + $0xfe0] sm:$0xff]
    %v2013 = vld [vmem:[#allocation11 + $0xfe8] sm:$0xff]
    %v2014 = vld [vmem:[#allocation11 + $0xff0] sm:$0xff]
    %v2015 = vld [vmem:[#allocation11 + $0xff8] sm:$0xff]
    %v2016 = vld [vmem:[#allocation11 + $0x1000] sm:$0xff]
    %v2017 = vld [vmem:[#allocation11 + $0x1008] sm:$0xff]
    %v2018 = vld [vmem:[#allocation11 + $0x1010] sm:$0xff]
    %v2019 = vld [vmem:[#allocation11 + $0x1018] sm:$0xff]
    %v2020 = vld [vmem:[#allocation11 + $0x1020] sm:$0xff]
    %v2021 = vld [vmem:[#allocation11 + $0x1028] sm:$0xff]
    %v2022 = vld [vmem:[#allocation11 + $0x1030] sm:$0xff]
    %v2023 = vld [vmem:[#allocation11 + $0x1038] sm:$0xff]
    %v2024 = vld [vmem:[#allocation11 + $0x1040] sm:$0xff]
    %v2025 = vld [vmem:[#allocation11 + $0x1048] sm:$0xff]
    %v2026 = vld [vmem:[#allocation11 + $0x1050] sm:$0xff]
    %v2027 = vld [vmem:[#allocation11 + $0x1058] sm:$0xff]
    %v2028 = vld [vmem:[#allocation11 + $0x1060] sm:$0xff]
    %v2029 = vld [vmem:[#allocation11 + $0x1068] sm:$0xff]
    %v2030 = vld [vmem:[#allocation11 + $0x1070] sm:$0xff]
    %v2031 = vld [vmem:[#allocation11 + $0x1078] sm:$0xff]
    %v2032 = vld [vmem:[#allocation11 + $0x1080] sm:$0xff]
    %v2033 = vld [vmem:[#allocation11 + $0x1088] sm:$0xff]
    %v2034 = vld [vmem:[#allocation11 + $0x1090] sm:$0xff]
    %v2035 = vld [vmem:[#allocation11 + $0x1098] sm:$0xff]
    %v2036 = vld [vmem:[#allocation11 + $0x10a0] sm:$0xff]
    %v2037 = vld [vmem:[#allocation11 + $0x10a8] sm:$0xff]
    %v2038 = vld [vmem:[#allocation11 + $0x10b0] sm:$0xff]
    %v2039 = vld [vmem:[#allocation11 + $0x10b8] sm:$0xff]
    %v2040 = vld [vmem:[#allocation11 + $0x10c0] sm:$0xff]
    %v2041 = vld [vmem:[#allocation11 + $0x10c8] sm:$0xff]
    %v2042 = vld [vmem:[#allocation11 + $0x10d0] sm:$0xff]
    %v2043 = vld [vmem:[#allocation11 + $0x10d8] sm:$0xff]
    %v2044 = vld [vmem:[#allocation11 + $0x10e0] sm:$0xff]
    %v2045 = vld [vmem:[#allocation11 + $0x10e8] sm:$0xff]
    %v2046 = vld [vmem:[#allocation11 + $0x10f0] sm:$0xff]
    %v2047 = vld [vmem:[#allocation11 + $0x10f8] sm:$0xff]
    %v2048 = vld [vmem:[#allocation11 + $0x1100] sm:$0xff]
    %v2049 = vld [vmem:[#allocation11 + $0x1108] sm:$0xff]
    %v2050 = vld [vmem:[#allocation11 + $0x1110] sm:$0xff]
    %v2051 = vld [vmem:[#allocation11 + $0x1118] sm:$0xff]
    %v2052 = vld [vmem:[#allocation11 + $0x1120] sm:$0xff]
    %v2053 = vld [vmem:[#allocation11 + $0x1128] sm:$0xff]
    %v2054 = vld [vmem:[#allocation11 + $0x1130] sm:$0xff]
    %v2055 = vld [vmem:[#allocation11 + $0x1138] sm:$0xff]
    %v2056 = vld [vmem:[#allocation11 + $0x1140] sm:$0xff]
    %v2057 = vld [vmem:[#allocation11 + $0x1148] sm:$0xff]
    %v2058 = vld [vmem:[#allocation11 + $0x1150] sm:$0xff]
    %v2059 = vld [vmem:[#allocation11 + $0x1158] sm:$0xff]
    %v2060 = vld [vmem:[#allocation11 + $0x1160] sm:$0xff]
    %v2061 = vld [vmem:[#allocation11 + $0x1168] sm:$0xff]
    %v2062 = vld [vmem:[#allocation11 + $0x1170] sm:$0xff]
    %v2063 = vld [vmem:[#allocation11 + $0x1178] sm:$0xff]
    %v2064 = vld [vmem:[#allocation11 + $0x1180] sm:$0xff]
    %v2065 = vld [vmem:[#allocation11 + $0x1188] sm:$0xff]
    %v2066 = vld [vmem:[#allocation11 + $0x1190] sm:$0xff]
    %v2067 = vld [vmem:[#allocation11 + $0x1198] sm:$0xff]
    %v2068 = vld [vmem:[#allocation11 + $0x11a0] sm:$0xff]
    %v2069 = vld [vmem:[#allocation11 + $0x11a8] sm:$0xff]
    %v2070 = vld [vmem:[#allocation11 + $0x11b0] sm:$0xff]
    %v2071 = vld [vmem:[#allocation11 + $0x11b8] sm:$0xff]
    %v2072 = vld [vmem:[#allocation11 + $0x11c0] sm:$0xff]
    %v2073 = vld [vmem:[#allocation11 + $0x11c8] sm:$0xff]
    %v2074 = vld [vmem:[#allocation11 + $0x11d0] sm:$0xff]
    %v2075 = vld [vmem:[#allocation11 + $0x11d8] sm:$0xff]
    %v2076 = vld [vmem:[#allocation11 + $0x11e0] sm:$0xff]
    %v2077 = vld [vmem:[#allocation11 + $0x11e8] sm:$0xff]
    %v2078 = vld [vmem:[#allocation11 + $0x11f0] sm:$0xff]
    %v2079 = vld [vmem:[#allocation11 + $0x11f8] sm:$0xff]
    %v2080 = vld [vmem:[#allocation11 + $0x1200] sm:$0xff]
    %v2081 = vld [vmem:[#allocation11 + $0x1208] sm:$0xff]
    %v2082 = vld [vmem:[#allocation11 + $0x1210] sm:$0xff]
    %v2083 = vld [vmem:[#allocation11 + $0x1218] sm:$0xff]
    %v2084 = vld [vmem:[#allocation11 + $0x1220] sm:$0xff]
    %v2085 = vld [vmem:[#allocation11 + $0x1228] sm:$0xff]
    %v2086 = vld [vmem:[#allocation11 + $0x1230] sm:$0xff]
    %v2087 = vld [vmem:[#allocation11 + $0x1238] sm:$0xff]
    %v2088 = vld [vmem:[#allocation11 + $0x1240] sm:$0xff]
    %v2089 = vld [vmem:[#allocation11 + $0x1248] sm:$0xff]
    %v2090 = vld [vmem:[#allocation11 + $0x1250] sm:$0xff]
    %v2091 = vld [vmem:[#allocation11 + $0x1258] sm:$0xff]
    %v2092 = vld [vmem:[#allocation11 + $0x1260] sm:$0xff]
    %v2093 = vld [vmem:[#allocation11 + $0x1268] sm:$0xff]
    %v2094 = vld [vmem:[#allocation11 + $0x1270] sm:$0xff]
    %v2095 = vld [vmem:[#allocation11 + $0x1278] sm:$0xff]
    %v2096 = vld [vmem:[#allocation11 + $0x1280] sm:$0xff]
    %v2097 = vld [vmem:[#allocation11 + $0x1288] sm:$0xff]
    %v2098 = vld [vmem:[#allocation11 + $0x1290] sm:$0xff]
    %v2099 = vld [vmem:[#allocation11 + $0x1298] sm:$0xff]
    %v2100 = vld [vmem:[#allocation11 + $0x12a0] sm:$0xff]
    %v2101 = vld [vmem:[#allocation11 + $0x12a8] sm:$0xff]
    %v2102 = vld [vmem:[#allocation11 + $0x12b0] sm:$0xff]
    %v2103 = vld [vmem:[#allocation11 + $0x12b8] sm:$0xff]
    %v2104 = vld [vmem:[#allocation11 + $0x12c0] sm:$0xff]
    %v2105 = vld [vmem:[#allocation11 + $0x12c8] sm:$0xff]
    %v2106 = vld [vmem:[#allocation11 + $0x12d0] sm:$0xff]
    %v2107 = vld [vmem:[#allocation11 + $0x12d8] sm:$0xff]
    %v2108 = vld [vmem:[#allocation11 + $0x12e0] sm:$0xff]
    %v2109 = vld [vmem:[#allocation11 + $0x12e8] sm:$0xff]
    %v2110 = vld [vmem:[#allocation11 + $0x12f0] sm:$0xff]
    %v2111 = vld [vmem:[#allocation11 + $0x12f8] sm:$0xff]
    %v2112 = vld [vmem:[#allocation11 + $0x1300] sm:$0xff]
    %v2113 = vld [vmem:[#allocation11 + $0x1308] sm:$0xff]
    %v2114 = vld [vmem:[#allocation11 + $0x1310] sm:$0xff]
    %v2115 = vld [vmem:[#allocation11 + $0x1318] sm:$0xff]
    %v2116 = vld [vmem:[#allocation11 + $0x1320] sm:$0xff]
    %v2117 = vld [vmem:[#allocation11 + $0x1328] sm:$0xff]
    %v2118 = vld [vmem:[#allocation11 + $0x1330] sm:$0xff]
    %v2119 = vld [vmem:[#allocation11 + $0x1338] sm:$0xff]
    %v2120 = vld [vmem:[#allocation11 + $0x1340] sm:$0xff]
    %v2121 = vld [vmem:[#allocation11 + $0x1348] sm:$0xff]
    %v2122 = vld [vmem:[#allocation11 + $0x1350] sm:$0xff]
    %v2123 = vld [vmem:[#allocation11 + $0x1358] sm:$0xff]
    %v2124 = vld [vmem:[#allocation11 + $0x1360] sm:$0xff]
    %v2125 = vld [vmem:[#allocation11 + $0x1368] sm:$0xff]
    %v2126 = vld [vmem:[#allocation11 + $0x1370] sm:$0xff]
    %v2127 = vld [vmem:[#allocation11 + $0x1378] sm:$0xff]
    %v2128 = vld [vmem:[#allocation11 + $0x1380] sm:$0xff]
    %v2129 = vld [vmem:[#allocation11 + $0x1388] sm:$0xff]
    %v2130 = vld [vmem:[#allocation11 + $0x1390] sm:$0xff]
    %v2131 = vld [vmem:[#allocation11 + $0x1398] sm:$0xff]
    %v2132 = vld [vmem:[#allocation11 + $0x13a0] sm:$0xff]
    %v2133 = vld [vmem:[#allocation11 + $0x13a8] sm:$0xff]
    %v2134 = vld [vmem:[#allocation11 + $0x13b0] sm:$0xff]
    %v2135 = vld [vmem:[#allocation11 + $0x13b8] sm:$0xff]
    %v2136 = vld [vmem:[#allocation11 + $0x13c0] sm:$0xff]
    %v2137 = vld [vmem:[#allocation11 + $0x13c8] sm:$0xff]
    %v2138 = vld [vmem:[#allocation11 + $0x13d0] sm:$0xff]
    %v2139 = vld [vmem:[#allocation11 + $0x13d8] sm:$0xff]
    %v2140 = vld [vmem:[#allocation11 + $0x13e0] sm:$0xff]
    %v2141 = vld [vmem:[#allocation11 + $0x13e8] sm:$0xff]
    %v2142 = vld [vmem:[#allocation11 + $0x13f0] sm:$0xff]
    %v2143 = vld [vmem:[#allocation11 + $0x13f8] sm:$0xff]
    %v2144 = vld [vmem:[#allocation11 + $0x1400] sm:$0xff]
    %v2145 = vld [vmem:[#allocation11 + $0x1408] sm:$0xff]
    %v2146 = vld [vmem:[#allocation11 + $0x1410] sm:$0xff]
    %v2147 = vld [vmem:[#allocation11 + $0x1418] sm:$0xff]
    %v2148 = vld [vmem:[#allocation11 + $0x1420] sm:$0xff]
    %v2149 = vld [vmem:[#allocation11 + $0x1428] sm:$0xff]
    %v2150 = vld [vmem:[#allocation11 + $0x1430] sm:$0xff]
    %v2151 = vld [vmem:[#allocation11 + $0x1438] sm:$0xff]
    %v2152 = vld [vmem:[#allocation11 + $0x1440] sm:$0xff]
    %v2153 = vld [vmem:[#allocation11 + $0x1448] sm:$0xff]
    %v2154 = vld [vmem:[#allocation11 + $0x1450] sm:$0xff]
    %v2155 = vld [vmem:[#allocation11 + $0x1458] sm:$0xff]
    %v2156 = vld [vmem:[#allocation11 + $0x1460] sm:$0xff]
    %v2157 = vld [vmem:[#allocation11 + $0x1468] sm:$0xff]
    %v2158 = vld [vmem:[#allocation11 + $0x1470] sm:$0xff]
    %v2159 = vld [vmem:[#allocation11 + $0x1478] sm:$0xff]
    %v2160 = vld [vmem:[#allocation11 + $0x1480] sm:$0xff]
    %v2161 = vld [vmem:[#allocation11 + $0x1488] sm:$0xff]
    %v2162 = vld [vmem:[#allocation11 + $0x1490] sm:$0xff]
    %v2163 = vld [vmem:[#allocation11 + $0x1498] sm:$0xff]
    %v2164 = vld [vmem:[#allocation11 + $0x14a0] sm:$0xff]
    %v2165 = vld [vmem:[#allocation11 + $0x14a8] sm:$0xff]
    %v2166 = vld [vmem:[#allocation11 + $0x14b0] sm:$0xff]
    %v2167 = vld [vmem:[#allocation11 + $0x14b8] sm:$0xff]
    %v2168 = vld [vmem:[#allocation11 + $0x14c0] sm:$0xff]
    %v2169 = vld [vmem:[#allocation11 + $0x14c8] sm:$0xff]
    %v2170 = vld [vmem:[#allocation11 + $0x14d0] sm:$0xff]
    %v2171 = vld [vmem:[#allocation11 + $0x14d8] sm:$0xff]
    %v2172 = vld [vmem:[#allocation11 + $0x14e0] sm:$0xff]
    %v2173 = vld [vmem:[#allocation11 + $0x14e8] sm:$0xff]
    %v2174 = vld [vmem:[#allocation11 + $0x14f0] sm:$0xff]
    %v2175 = vld [vmem:[#allocation11 + $0x14f8] sm:$0xff]
    %v2176 = vld [vmem:[#allocation11 + $0x1500] sm:$0xff]
    %v2177 = vld [vmem:[#allocation11 + $0x1508] sm:$0xff]
    %v2178 = vld [vmem:[#allocation11 + $0x1510] sm:$0xff]
    %v2179 = vld [vmem:[#allocation11 + $0x1518] sm:$0xff]
    %v2180 = vld [vmem:[#allocation11 + $0x1520] sm:$0xff]
    %v2181 = vld [vmem:[#allocation11 + $0x1528] sm:$0xff]
    %v2182 = vld [vmem:[#allocation11 + $0x1530] sm:$0xff]
    %v2183 = vld [vmem:[#allocation11 + $0x1538] sm:$0xff]
    %v2184 = vld [vmem:[#allocation11 + $0x1540] sm:$0xff]
    %v2185 = vld [vmem:[#allocation11 + $0x1548] sm:$0xff]
    %v2186 = vld [vmem:[#allocation11 + $0x1550] sm:$0xff]
    %v2187 = vld [vmem:[#allocation11 + $0x1558] sm:$0xff]
    %v2188 = vld [vmem:[#allocation11 + $0x1560] sm:$0xff]
    %v2189 = vld [vmem:[#allocation11 + $0x1568] sm:$0xff]
    %v2190 = vld [vmem:[#allocation11 + $0x1570] sm:$0xff]
    %v2191 = vld [vmem:[#allocation11 + $0x1578] sm:$0xff]
    %v2192 = vld [vmem:[#allocation11 + $0x1580] sm:$0xff]
    %v2193 = vld [vmem:[#allocation11 + $0x1588] sm:$0xff]
    %v2194 = vld [vmem:[#allocation11 + $0x1590] sm:$0xff]
    %v2195 = vld [vmem:[#allocation11 + $0x1598] sm:$0xff]
    %v2196 = vld [vmem:[#allocation11 + $0x15a0] sm:$0xff]
    %v2197 = vld [vmem:[#allocation11 + $0x15a8] sm:$0xff]
    %v2198 = vld [vmem:[#allocation11 + $0x15b0] sm:$0xff]
    %v2199 = vld [vmem:[#allocation11 + $0x15b8] sm:$0xff]
    %v2200 = vld [vmem:[#allocation11 + $0x15c0] sm:$0xff]
    %v2201 = vld [vmem:[#allocation11 + $0x15c8] sm:$0xff]
    %v2202 = vld [vmem:[#allocation11 + $0x15d0] sm:$0xff]
    %v2203 = vld [vmem:[#allocation11 + $0x15d8] sm:$0xff]
    %v2204 = vld [vmem:[#allocation11 + $0x15e0] sm:$0xff]
    %v2205 = vld [vmem:[#allocation11 + $0x15e8] sm:$0xff]
    %v2206 = vld [vmem:[#allocation11 + $0x15f0] sm:$0xff]
    %v2207 = vld [vmem:[#allocation11 + $0x15f8] sm:$0xff]
    %v2208 = vld [vmem:[#allocation11 + $0x1600] sm:$0xff]
    %v2209 = vld [vmem:[#allocation11 + $0x1608] sm:$0xff]
    %v2210 = vld [vmem:[#allocation11 + $0x1610] sm:$0xff]
    %v2211 = vld [vmem:[#allocation11 + $0x1618] sm:$0xff]
    %v2212 = vld [vmem:[#allocation11 + $0x1620] sm:$0xff]
    %v2213 = vld [vmem:[#allocation11 + $0x1628] sm:$0xff]
    %v2214 = vld [vmem:[#allocation11 + $0x1630] sm:$0xff]
    %v2215 = vld [vmem:[#allocation11 + $0x1638] sm:$0xff]
    %v2216 = vld [vmem:[#allocation11 + $0x1640] sm:$0xff]
    %v2217 = vld [vmem:[#allocation11 + $0x1648] sm:$0xff]
    %v2218 = vld [vmem:[#allocation11 + $0x1650] sm:$0xff]
    %v2219 = vld [vmem:[#allocation11 + $0x1658] sm:$0xff]
    %v2220 = vld [vmem:[#allocation11 + $0x1660] sm:$0xff]
    %v2221 = vld [vmem:[#allocation11 + $0x1668] sm:$0xff]
    %v2222 = vld [vmem:[#allocation11 + $0x1670] sm:$0xff]
    %v2223 = vld [vmem:[#allocation11 + $0x1678] sm:$0xff]
    %v2224 = vld [vmem:[#allocation11 + $0x1680] sm:$0xff]
    %v2225 = vld [vmem:[#allocation11 + $0x1688] sm:$0xff]
    %v2226 = vld [vmem:[#allocation11 + $0x1690] sm:$0xff]
    %v2227 = vld [vmem:[#allocation11 + $0x1698] sm:$0xff]
    %v2228 = vld [vmem:[#allocation11 + $0x16a0] sm:$0xff]
    %v2229 = vld [vmem:[#allocation11 + $0x16a8] sm:$0xff]
    %v2230 = vld [vmem:[#allocation11 + $0x16b0] sm:$0xff]
    %v2231 = vld [vmem:[#allocation11 + $0x16b8] sm:$0xff]
    %v2232 = vld [vmem:[#allocation11 + $0x16c0] sm:$0xff]
    %v2233 = vld [vmem:[#allocation11 + $0x16c8] sm:$0xff]
    %v2234 = vld [vmem:[#allocation11 + $0x16d0] sm:$0xff]
    %v2235 = vld [vmem:[#allocation11 + $0x16d8] sm:$0xff]
    %v2236 = vld [vmem:[#allocation11 + $0x16e0] sm:$0xff]
    %v2237 = vld [vmem:[#allocation11 + $0x16e8] sm:$0xff]
    %v2238 = vld [vmem:[#allocation11 + $0x16f0] sm:$0xff]
    %v2239 = vld [vmem:[#allocation11 + $0x16f8] sm:$0xff]
    %v2240 = vld [vmem:[#allocation11 + $0x1700] sm:$0xff]
    %v2241 = vld [vmem:[#allocation11 + $0x1708] sm:$0xff]
    %v2242 = vld [vmem:[#allocation11 + $0x1710] sm:$0xff]
    %v2243 = vld [vmem:[#allocation11 + $0x1718] sm:$0xff]
    %v2244 = vld [vmem:[#allocation11 + $0x1720] sm:$0xff]
    %v2245 = vld [vmem:[#allocation11 + $0x1728] sm:$0xff]
    %v2246 = vld [vmem:[#allocation11 + $0x1730] sm:$0xff]
    %v2247 = vld [vmem:[#allocation11 + $0x1738] sm:$0xff]
    %v2248 = vld [vmem:[#allocation11 + $0x1740] sm:$0xff]
    %v2249 = vld [vmem:[#allocation11 + $0x1748] sm:$0xff]
    %v2250 = vld [vmem:[#allocation11 + $0x1750] sm:$0xff]
    %v2251 = vld [vmem:[#allocation11 + $0x1758] sm:$0xff]
    %v2252 = vld [vmem:[#allocation11 + $0x1760] sm:$0xff]
    %v2253 = vld [vmem:[#allocation11 + $0x1768] sm:$0xff]
    %v2254 = vld [vmem:[#allocation11 + $0x1770] sm:$0xff]
    %v2255 = vld [vmem:[#allocation11 + $0x1778] sm:$0xff]
    %v2256 = vld [vmem:[#allocation11 + $0x1780] sm:$0xff]
    %v2257 = vld [vmem:[#allocation11 + $0x1788] sm:$0xff]
    %v2258 = vld [vmem:[#allocation11 + $0x1790] sm:$0xff]
    %v2259 = vld [vmem:[#allocation11 + $0x1798] sm:$0xff]
    %v2260 = vld [vmem:[#allocation11 + $0x17a0] sm:$0xff]
    %v2261 = vld [vmem:[#allocation11 + $0x17a8] sm:$0xff]
    %v2262 = vld [vmem:[#allocation11 + $0x17b0] sm:$0xff]
    %v2263 = vld [vmem:[#allocation11 + $0x17b8] sm:$0xff]
    %v2264 = vld [vmem:[#allocation11 + $0x17c0] sm:$0xff]
    %v2265 = vld [vmem:[#allocation11 + $0x17c8] sm:$0xff]
    %v2266 = vld [vmem:[#allocation11 + $0x17d0] sm:$0xff]
    %v2267 = vld [vmem:[#allocation11 + $0x17d8] sm:$0xff]
    %v2268 = vld [vmem:[#allocation11 + $0x17e0] sm:$0xff]
    %v2269 = vld [vmem:[#allocation11 + $0x17e8] sm:$0xff]
    %v2270 = vld [vmem:[#allocation11 + $0x17f0] sm:$0xff]
    %v2271 = vld [vmem:[#allocation11 + $0x17f8] sm:$0xff]
    %v2272 = vld [vmem:[#allocation11 + $0x1800] sm:$0xff]
    %v2273 = vld [vmem:[#allocation11 + $0x1808] sm:$0xff]
    %v2274 = vld [vmem:[#allocation11 + $0x1810] sm:$0xff]
    %v2275 = vld [vmem:[#allocation11 + $0x1818] sm:$0xff]
    %v2276 = vld [vmem:[#allocation11 + $0x1820] sm:$0xff]
    %v2277 = vld [vmem:[#allocation11 + $0x1828] sm:$0xff]
    %v2278 = vld [vmem:[#allocation11 + $0x1830] sm:$0xff]
    %v2279 = vld [vmem:[#allocation11 + $0x1838] sm:$0xff]
    %v2280 = vld [vmem:[#allocation11 + $0x1840] sm:$0xff]
    %v2281 = vld [vmem:[#allocation11 + $0x1848] sm:$0xff]
    %v2282 = vld [vmem:[#allocation11 + $0x1850] sm:$0xff]
    %v2283 = vld [vmem:[#allocation11 + $0x1858] sm:$0xff]
    %v2284 = vld [vmem:[#allocation11 + $0x1860] sm:$0xff]
    %v2285 = vld [vmem:[#allocation11 + $0x1868] sm:$0xff]
    %v2286 = vld [vmem:[#allocation11 + $0x1870] sm:$0xff]
    %v2287 = vld [vmem:[#allocation11 + $0x1878] sm:$0xff]
    %v2288 = vld [vmem:[#allocation11 + $0x1880] sm:$0xff]
    %v2289 = vld [vmem:[#allocation11 + $0x1888] sm:$0xff]
    %v2290 = vld [vmem:[#allocation11 + $0x1890] sm:$0xff]
    %v2291 = vld [vmem:[#allocation11 + $0x1898] sm:$0xff]
    %v2292 = vld [vmem:[#allocation11 + $0x18a0] sm:$0xff]
    %v2293 = vld [vmem:[#allocation11 + $0x18a8] sm:$0xff]
    %v2294 = vld [vmem:[#allocation11 + $0x18b0] sm:$0xff]
    %v2295 = vld [vmem:[#allocation11 + $0x18b8] sm:$0xff]
    %v2296 = vld [vmem:[#allocation11 + $0x18c0] sm:$0xff]
    %v2297 = vld [vmem:[#allocation11 + $0x18c8] sm:$0xff]
    %v2298 = vld [vmem:[#allocation11 + $0x18d0] sm:$0xff]
    %v2299 = vld [vmem:[#allocation11 + $0x18d8] sm:$0xff]
    %v2300 = vld [vmem:[#allocation11 + $0x18e0] sm:$0xff]
    %v2301 = vld [vmem:[#allocation11 + $0x18e8] sm:$0xff]
    %v2302 = vld [vmem:[#allocation11 + $0x18f0] sm:$0xff]
    %v2303 = vld [vmem:[#allocation11 + $0x18f8] sm:$0xff]
    %v2304 = vld [vmem:[#allocation11 + $0x1900] sm:$0xff]
    %v2305 = vld [vmem:[#allocation11 + $0x1908] sm:$0xff]
    %v2306 = vld [vmem:[#allocation11 + $0x1910] sm:$0xff]
    %v2307 = vld [vmem:[#allocation11 + $0x1918] sm:$0xff]
    %v2308 = vld [vmem:[#allocation11 + $0x1920] sm:$0xff]
    %v2309 = vld [vmem:[#allocation11 + $0x1928] sm:$0xff]
    %v2310 = vld [vmem:[#allocation11 + $0x1930] sm:$0xff]
    %v2311 = vld [vmem:[#allocation11 + $0x1938] sm:$0xff]
    %v2312 = vld [vmem:[#allocation11 + $0x1940] sm:$0xff]
    %v2313 = vld [vmem:[#allocation11 + $0x1948] sm:$0xff]
    %v2314 = vld [vmem:[#allocation11 + $0x1950] sm:$0xff]
    %v2315 = vld [vmem:[#allocation11 + $0x1958] sm:$0xff]
    %v2316 = vld [vmem:[#allocation11 + $0x1960] sm:$0xff]
    %v2317 = vld [vmem:[#allocation11 + $0x1968] sm:$0xff]
    %v2318 = vld [vmem:[#allocation11 + $0x1970] sm:$0xff]
    %v2319 = vld [vmem:[#allocation11 + $0x1978] sm:$0xff]
    %v2320 = vld [vmem:[#allocation11 + $0x1980] sm:$0xff]
    %v2321 = vld [vmem:[#allocation11 + $0x1988] sm:$0xff]
    %v2322 = vld [vmem:[#allocation11 + $0x1990] sm:$0xff]
    %v2323 = vld [vmem:[#allocation11 + $0x1998] sm:$0xff]
    %v2324 = vld [vmem:[#allocation11 + $0x19a0] sm:$0xff]
    %v2325 = vld [vmem:[#allocation11 + $0x19a8] sm:$0xff]
    %v2326 = vld [vmem:[#allocation11 + $0x19b0] sm:$0xff]
    %v2327 = vld [vmem:[#allocation11 + $0x19b8] sm:$0xff]
    %v2328 = vld [vmem:[#allocation11 + $0x19c0] sm:$0xff]
    %v2329 = vld [vmem:[#allocation11 + $0x19c8] sm:$0xff]
    %v2330 = vld [vmem:[#allocation11 + $0x19d0] sm:$0xff]
    %v2331 = vld [vmem:[#allocation11 + $0x19d8] sm:$0xff]
    %v2332 = vld [vmem:[#allocation11 + $0x19e0] sm:$0xff]
    %v2333 = vld [vmem:[#allocation11 + $0x19e8] sm:$0xff]
    %v2334 = vld [vmem:[#allocation11 + $0x19f0] sm:$0xff]
    %v2335 = vld [vmem:[#allocation11 + $0x19f8] sm:$0xff]
    %v2336 = vld [vmem:[#allocation11 + $0x1a00] sm:$0xff]
    %v2337 = vld [vmem:[#allocation11 + $0x1a08] sm:$0xff]
    %v2338 = vld [vmem:[#allocation11 + $0x1a10] sm:$0xff]
    %v2339 = vld [vmem:[#allocation11 + $0x1a18] sm:$0xff]
    %v2340 = vld [vmem:[#allocation11 + $0x1a20] sm:$0xff]
    %v2341 = vld [vmem:[#allocation11 + $0x1a28] sm:$0xff]
    %v2342 = vld [vmem:[#allocation11 + $0x1a30] sm:$0xff]
    %v2343 = vld [vmem:[#allocation11 + $0x1a38] sm:$0xff]
    %v2344 = vld [vmem:[#allocation11 + $0x1a40] sm:$0xff]
    %v2345 = vld [vmem:[#allocation11 + $0x1a48] sm:$0xff]
    %v2346 = vld [vmem:[#allocation11 + $0x1a50] sm:$0xff]
    %v2347 = vld [vmem:[#allocation11 + $0x1a58] sm:$0xff]
    %v2348 = vld [vmem:[#allocation11 + $0x1a60] sm:$0xff]
    %v2349 = vld [vmem:[#allocation11 + $0x1a68] sm:$0xff]
    %v2350 = vld [vmem:[#allocation11 + $0x1a70] sm:$0xff]
    %v2351 = vld [vmem:[#allocation11 + $0x1a78] sm:$0xff]
    %v2352 = vld [vmem:[#allocation11 + $0x1a80] sm:$0xff]
    %v2353 = vld [vmem:[#allocation11 + $0x1a88] sm:$0xff]
    %v2354 = vld [vmem:[#allocation11 + $0x1a90] sm:$0xff]
    %v2355 = vld [vmem:[#allocation11 + $0x1a98] sm:$0xff]
    %v2356 = vld [vmem:[#allocation11 + $0x1aa0] sm:$0xff]
    %v2357 = vld [vmem:[#allocation11 + $0x1aa8] sm:$0xff]
    %v2358 = vld [vmem:[#allocation11 + $0x1ab0] sm:$0xff]
    %v2359 = vld [vmem:[#allocation11 + $0x1ab8] sm:$0xff]
    %v2360 = vld [vmem:[#allocation11 + $0x1ac0] sm:$0xff]
    %v2361 = vld [vmem:[#allocation11 + $0x1ac8] sm:$0xff]
    %v2362 = vld [vmem:[#allocation11 + $0x1ad0] sm:$0xff]
    %v2363 = vld [vmem:[#allocation11 + $0x1ad8] sm:$0xff]
    %v2364 = vld [vmem:[#allocation11 + $0x1ae0] sm:$0xff]
    %v2365 = vld [vmem:[#allocation11 + $0x1ae8] sm:$0xff]
    %v2366 = vld [vmem:[#allocation11 + $0x1af0] sm:$0xff]
    %v2367 = vld [vmem:[#allocation11 + $0x1af8] sm:$0xff]
    %v2368 = vld [vmem:[#allocation11 + $0x1b00] sm:$0xff]
    %v2369 = vld [vmem:[#allocation11 + $0x1b08] sm:$0xff]
    %v2370 = vld [vmem:[#allocation11 + $0x1b10] sm:$0xff]
    %v2371 = vld [vmem:[#allocation11 + $0x1b18] sm:$0xff]
    %v2372 = vld [vmem:[#allocation11 + $0x1b20] sm:$0xff]
    %v2373 = vld [vmem:[#allocation11 + $0x1b28] sm:$0xff]
    %v2374 = vld [vmem:[#allocation11 + $0x1b30] sm:$0xff]
    %v2375 = vld [vmem:[#allocation11 + $0x1b38] sm:$0xff]
    %v2376 = vld [vmem:[#allocation11 + $0x1b40] sm:$0xff]
    %v2377 = vld [vmem:[#allocation11 + $0x1b48] sm:$0xff]
    %v2378 = vld [vmem:[#allocation11 + $0x1b50] sm:$0xff]
    %v2379 = vld [vmem:[#allocation11 + $0x1b58] sm:$0xff]
    %v2380 = vld [vmem:[#allocation11 + $0x1b60] sm:$0xff]
    %v2381 = vld [vmem:[#allocation11 + $0x1b68] sm:$0xff]
    %v2382 = vld [vmem:[#allocation11 + $0x1b70] sm:$0xff]
    %v2383 = vld [vmem:[#allocation11 + $0x1b78] sm:$0xff]
    %v2384 = vld [vmem:[#allocation11 + $0x1b80] sm:$0xff]
    %v2385 = vld [vmem:[#allocation11 + $0x1b88] sm:$0xff]
    %v2386 = vld [vmem:[#allocation11 + $0x1b90] sm:$0xff]
    %v2387 = vld [vmem:[#allocation11 + $0x1b98] sm:$0xff]
    %v2388 = vld [vmem:[#allocation11 + $0x1ba0] sm:$0xff]
    %v2389 = vld [vmem:[#allocation11 + $0x1ba8] sm:$0xff]
    %v2390 = vld [vmem:[#allocation11 + $0x1bb0] sm:$0xff]
    %v2391 = vld [vmem:[#allocation11 + $0x1bb8] sm:$0xff]
    %v2392 = vld [vmem:[#allocation11 + $0x1bc0] sm:$0xff]
    %v2393 = vld [vmem:[#allocation11 + $0x1bc8] sm:$0xff]
    %v2394 = vld [vmem:[#allocation11 + $0x1bd0] sm:$0xff]
    %v2395 = vld [vmem:[#allocation11 + $0x1bd8] sm:$0xff]
    %v2396 = vld [vmem:[#allocation11 + $0x1be0] sm:$0xff]
    %v2397 = vld [vmem:[#allocation11 + $0x1be8] sm:$0xff]
    %v2398 = vld [vmem:[#allocation11 + $0x1bf0] sm:$0xff]
    %v2399 = vld [vmem:[#allocation11 + $0x1bf8] sm:$0xff]
    %v2400 = vld [vmem:[#allocation11 + $0x1c00] sm:$0xff]
    %v2401 = vld [vmem:[#allocation11 + $0x1c08] sm:$0xff]
    %v2402 = vld [vmem:[#allocation11 + $0x1c10] sm:$0xff]
    %v2403 = vld [vmem:[#allocation11 + $0x1c18] sm:$0xff]
    %v2404 = vld [vmem:[#allocation11 + $0x1c20] sm:$0xff]
    %v2405 = vld [vmem:[#allocation11 + $0x1c28] sm:$0xff]
    %v2406 = vld [vmem:[#allocation11 + $0x1c30] sm:$0xff]
    %v2407 = vld [vmem:[#allocation11 + $0x1c38] sm:$0xff]
    %v2408 = vld [vmem:[#allocation11 + $0x1c40] sm:$0xff]
    %v2409 = vld [vmem:[#allocation11 + $0x1c48] sm:$0xff]
    %v2410 = vld [vmem:[#allocation11 + $0x1c50] sm:$0xff]
    %v2411 = vld [vmem:[#allocation11 + $0x1c58] sm:$0xff]
    %v2412 = vld [vmem:[#allocation11 + $0x1c60] sm:$0xff]
    %v2413 = vld [vmem:[#allocation11 + $0x1c68] sm:$0xff]
    %v2414 = vld [vmem:[#allocation11 + $0x1c70] sm:$0xff]
    %v2415 = vld [vmem:[#allocation11 + $0x1c78] sm:$0xff]
    %v2416 = vld [vmem:[#allocation11 + $0x1c80] sm:$0xff]
    %v2417 = vld [vmem:[#allocation11 + $0x1c88] sm:$0xff]
    %v2418 = vld [vmem:[#allocation11 + $0x1c90] sm:$0xff]
    %v2419 = vld [vmem:[#allocation11 + $0x1c98] sm:$0xff]
    %v2420 = vld [vmem:[#allocation11 + $0x1ca0] sm:$0xff]
    %v2421 = vld [vmem:[#allocation11 + $0x1ca8] sm:$0xff]
    %v2422 = vld [vmem:[#allocation11 + $0x1cb0] sm:$0xff]
    %v2423 = vld [vmem:[#allocation11 + $0x1cb8] sm:$0xff]
    %v2424 = vld [vmem:[#allocation11 + $0x1cc0] sm:$0xff]
    %v2425 = vld [vmem:[#allocation11 + $0x1cc8] sm:$0xff]
    %v2426 = vld [vmem:[#allocation11 + $0x1cd0] sm:$0xff]
    %v2427 = vld [vmem:[#allocation11 + $0x1cd8] sm:$0xff]
    %v2428 = vld [vmem:[#allocation11 + $0x1ce0] sm:$0xff]
    %v2429 = vld [vmem:[#allocation11 + $0x1ce8] sm:$0xff]
    %v2430 = vld [vmem:[#allocation11 + $0x1cf0] sm:$0xff]
    %v2431 = vld [vmem:[#allocation11 + $0x1cf8] sm:$0xff]
    %v2432 = vld [vmem:[#allocation11 + $0x1d00] sm:$0xff]
    %v2433 = vld [vmem:[#allocation11 + $0x1d08] sm:$0xff]
    %v2434 = vld [vmem:[#allocation11 + $0x1d10] sm:$0xff]
    %v2435 = vld [vmem:[#allocation11 + $0x1d18] sm:$0xff]
    %v2436 = vld [vmem:[#allocation11 + $0x1d20] sm:$0xff]
    %v2437 = vld [vmem:[#allocation11 + $0x1d28] sm:$0xff]
    %v2438 = vld [vmem:[#allocation11 + $0x1d30] sm:$0xff]
    %v2439 = vld [vmem:[#allocation11 + $0x1d38] sm:$0xff]
    %v2440 = vld [vmem:[#allocation11 + $0x1d40] sm:$0xff]
    %v2441 = vld [vmem:[#allocation11 + $0x1d48] sm:$0xff]
    %v2442 = vld [vmem:[#allocation11 + $0x1d50] sm:$0xff]
    %v2443 = vld [vmem:[#allocation11 + $0x1d58] sm:$0xff]
    %v2444 = vld [vmem:[#allocation11 + $0x1d60] sm:$0xff]
    %v2445 = vld [vmem:[#allocation11 + $0x1d68] sm:$0xff]
    %v2446 = vld [vmem:[#allocation11 + $0x1d70] sm:$0xff]
    %v2447 = vld [vmem:[#allocation11 + $0x1d78] sm:$0xff]
    %v2448 = vld [vmem:[#allocation11 + $0x1d80] sm:$0xff]
    %v2449 = vld [vmem:[#allocation11 + $0x1d88] sm:$0xff]
    %v2450 = vld [vmem:[#allocation11 + $0x1d90] sm:$0xff]
    %v2451 = vld [vmem:[#allocation11 + $0x1d98] sm:$0xff]
    %v2452 = vld [vmem:[#allocation11 + $0x1da0] sm:$0xff]
    %v2453 = vld [vmem:[#allocation11 + $0x1da8] sm:$0xff]
    %v2454 = vld [vmem:[#allocation11 + $0x1db0] sm:$0xff]
    %v2455 = vld [vmem:[#allocation11 + $0x1db8] sm:$0xff]
    %v2456 = vld [vmem:[#allocation11 + $0x1dc0] sm:$0xff]
    %v2457 = vld [vmem:[#allocation11 + $0x1dc8] sm:$0xff]
    %v2458 = vld [vmem:[#allocation11 + $0x1dd0] sm:$0xff]
    %v2459 = vld [vmem:[#allocation11 + $0x1dd8] sm:$0xff]
    %v2460 = vld [vmem:[#allocation11 + $0x1de0] sm:$0xff]
    %v2461 = vld [vmem:[#allocation11 + $0x1de8] sm:$0xff]
    %v2462 = vld [vmem:[#allocation11 + $0x1df0] sm:$0xff]
    %v2463 = vld [vmem:[#allocation11 + $0x1df8] sm:$0xff]
    %v2464 = vld [vmem:[#allocation11 + $0x1e00] sm:$0xff]
    %v2465 = vld [vmem:[#allocation11 + $0x1e08] sm:$0xff]
    %v2466 = vld [vmem:[#allocation11 + $0x1e10] sm:$0xff]
    %v2467 = vld [vmem:[#allocation11 + $0x1e18] sm:$0xff]
    %v2468 = vld [vmem:[#allocation11 + $0x1e20] sm:$0xff]
    %v2469 = vld [vmem:[#allocation11 + $0x1e28] sm:$0xff]
    %v2470 = vld [vmem:[#allocation11 + $0x1e30] sm:$0xff]
    %v2471 = vld [vmem:[#allocation11 + $0x1e38] sm:$0xff]
    %v2472 = vld [vmem:[#allocation11 + $0x1e40] sm:$0xff]
    %v2473 = vld [vmem:[#allocation11 + $0x1e48] sm:$0xff]
    %v2474 = vld [vmem:[#allocation11 + $0x1e50] sm:$0xff]
    %v2475 = vld [vmem:[#allocation11 + $0x1e58] sm:$0xff]
    %v2476 = vld [vmem:[#allocation11 + $0x1e60] sm:$0xff]
    %v2477 = vld [vmem:[#allocation11 + $0x1e68] sm:$0xff]
    %v2478 = vld [vmem:[#allocation11 + $0x1e70] sm:$0xff]
    %v2479 = vld [vmem:[#allocation11 + $0x1e78] sm:$0xff]
    %v2480 = vld [vmem:[#allocation11 + $0x1e80] sm:$0xff]
    %v2481 = vld [vmem:[#allocation11 + $0x1e88] sm:$0xff]
    %v2482 = vld [vmem:[#allocation11 + $0x1e90] sm:$0xff]
    %v2483 = vld [vmem:[#allocation11 + $0x1e98] sm:$0xff]
    %v2484 = vld [vmem:[#allocation11 + $0x1ea0] sm:$0xff]
    %v2485 = vld [vmem:[#allocation11 + $0x1ea8] sm:$0xff]
    %v2486 = vld [vmem:[#allocation11 + $0x1eb0] sm:$0xff]
    %v2487 = vld [vmem:[#allocation11 + $0x1eb8] sm:$0xff]
    %v2488 = vld [vmem:[#allocation11 + $0x1ec0] sm:$0xff]
    %v2489 = vld [vmem:[#allocation11 + $0x1ec8] sm:$0xff]
    %v2490 = vld [vmem:[#allocation11 + $0x1ed0] sm:$0xff]
    %v2491 = vld [vmem:[#allocation11 + $0x1ed8] sm:$0xff]
    %v2492 = vld [vmem:[#allocation11 + $0x1ee0] sm:$0xff]
    %v2493 = vld [vmem:[#allocation11 + $0x1ee8] sm:$0xff]
    %v2494 = vld [vmem:[#allocation11 + $0x1ef0] sm:$0xff]
    %v2495 = vld [vmem:[#allocation11 + $0x1ef8] sm:$0xff]
    %v2496 = vld [vmem:[#allocation11 + $0x1f00] sm:$0xff]
    %v2497 = vld [vmem:[#allocation11 + $0x1f08] sm:$0xff]
    %v2498 = vld [vmem:[#allocation11 + $0x1f10] sm:$0xff]
    %v2499 = vld [vmem:[#allocation11 + $0x1f18] sm:$0xff]
    %v2500 = vld [vmem:[#allocation11 + $0x1f20] sm:$0xff]
    %v2501 = vld [vmem:[#allocation11 + $0x1f28] sm:$0xff]
    %v2502 = vld [vmem:[#allocation11 + $0x1f30] sm:$0xff]
    %v2503 = vld [vmem:[#allocation11 + $0x1f38] sm:$0xff]
    %v2504 = vld [vmem:[#allocation11 + $0x1f40] sm:$0xff]
    %v2505 = vld [vmem:[#allocation11 + $0x1f48] sm:$0xff]
    %v2506 = vld [vmem:[#allocation11 + $0x1f50] sm:$0xff]
    %v2507 = vld [vmem:[#allocation11 + $0x1f58] sm:$0xff]
    %v2508 = vld [vmem:[#allocation11 + $0x1f60] sm:$0xff]
    %v2509 = vld [vmem:[#allocation11 + $0x1f68] sm:$0xff]
    %v2510 = vld [vmem:[#allocation11 + $0x1f70] sm:$0xff]
    %v2511 = vld [vmem:[#allocation11 + $0x1f78] sm:$0xff]
    %v2512 = vld [vmem:[#allocation11 + $0x1f80] sm:$0xff]
    %v2513 = vld [vmem:[#allocation11 + $0x1f88] sm:$0xff]
    %v2514 = vld [vmem:[#allocation11 + $0x1f90] sm:$0xff]
    %v2515 = vld [vmem:[#allocation11 + $0x1f98] sm:$0xff]
    %v2516 = vld [vmem:[#allocation11 + $0x1fa0] sm:$0xff]
    %v2517 = vld [vmem:[#allocation11 + $0x1fa8] sm:$0xff]
    %v2518 = vld [vmem:[#allocation11 + $0x1fb0] sm:$0xff]
    %v2519 = vld [vmem:[#allocation11 + $0x1fb8] sm:$0xff]
    %v2520 = vld [vmem:[#allocation11 + $0x1fc0] sm:$0xff]
    %v2521 = vld [vmem:[#allocation11 + $0x1fc8] sm:$0xff]
    %v2522 = vld [vmem:[#allocation11 + $0x1fd0] sm:$0xff]
    %v2523 = vld [vmem:[#allocation11 + $0x1fd8] sm:$0xff]
    %v2524 = vld [vmem:[#allocation11 + $0x1fe0] sm:$0xff]
    %v2525 = vld [vmem:[#allocation11 + $0x1fe8] sm:$0xff]
    %v2526 = vld [vmem:[#allocation11 + $0x1ff0] sm:$0xff]
    %v2527 = vld [vmem:[#allocation11 + $0x1ff8] sm:$0xff]
    %v2528 = vld [vmem:[#allocation13] sm:$0xff]
    %v2530 = vlaneseq
    %v2531 = vshrl.u32 %v2530, 7
    %v2532 = vsub.s32 0, %v2531
    %v2533 = vrot.slane %v2528, %v2532
    %v2534 = vlaneseq
    %v2535 = vshrl.u32 %v2534, 7
    %v2536 = vsub.s32 1, %v2535
    %v2537 = vrot.slane %v2528, %v2536
    %v2538 = vlaneseq
    %v2539 = vshrl.u32 %v2538, 7
    %v2540 = vsub.s32 2, %v2539
    %v2541 = vrot.slane %v2528, %v2540
    %v2542 = vlaneseq
    %v2543 = vshrl.u32 %v2542, 7
    %v2544 = vsub.s32 3, %v2543
    %v2545 = vrot.slane %v2528, %v2544
    %v2546 = vlaneseq
    %v2547 = vshrl.u32 %v2546, 7
    %v2548 = vsub.s32 4, %v2547
    %v2549 = vrot.slane %v2528, %v2548
    %v2550 = vlaneseq
    %v2551 = vshrl.u32 %v2550, 7
    %v2552 = vsub.s32 5, %v2551
    %v2553 = vrot.slane %v2528, %v2552
    %v2554 = vlaneseq
    %v2555 = vshrl.u32 %v2554, 7
    %v2556 = vsub.s32 6, %v2555
    %v2557 = vrot.slane %v2528, %v2556
    %v2558 = vlaneseq
    %v2559 = vshrl.u32 %v2558, 7
    %v2560 = vsub.s32 7, %v2559
    %v2561 = vrot.slane %v2528, %v2560
    %2570 = vmatprep.subr.mxu0 %v1505
    %2571 = vmatpush1.msra.mxu0 %v1504
    %2572 = vmatprep.subr.mxu0 %v1513
    %2573 = vmatpush1.msra.mxu0 %v1512
    %2574 = vmatprep.subr.mxu0 %v1521
    %2575 = vmatpush1.msra.mxu0 %v1520
    %2576 = vmatprep.subr.mxu0 %v1529
    %2577 = vmatpush1.msra.mxu0 %v1528
    %2578 = vmatprep.subr.mxu0 %v1537
    %2579 = vmatpush1.msra.mxu0 %v1536
    %2580 = vmatprep.subr.mxu0 %v1545
    %2581 = vmatpush1.msra.mxu0 %v1544
    %2582 = vmatprep.subr.mxu0 %v1553
    %2583 = vmatpush1.msra.mxu0 %v1552
    %2584 = vmatprep.subr.mxu0 %v1561
    %2585 = vmatpush1.msra.mxu0 %v1560
    %2586 = vmatprep.subr.mxu0 %v1569
    %2587 = vmatpush1.msra.mxu0 %v1568
    %2588 = vmatprep.subr.mxu0 %v1577
    %2589 = vmatpush1.msra.mxu0 %v1576
    %2590 = vmatprep.subr.mxu0 %v1585
    %2591 = vmatpush1.msra.mxu0 %v1584
    %2592 = vmatprep.subr.mxu0 %v1593
    %2593 = vmatpush1.msra.mxu0 %v1592
    %2594 = vmatprep.subr.mxu0 %v1601
    %2595 = vmatpush1.msra.mxu0 %v1600
    %2596 = vmatprep.subr.mxu0 %v1609
    %2597 = vmatpush1.msra.mxu0 %v1608
    %2598 = vmatprep.subr.mxu0 %v1617
    %2599 = vmatpush1.msra.mxu0 %v1616
    %2600 = vmatprep.subr.mxu0 %v1625
    %2601 = vmatpush1.msra.mxu0 %v1624
    %2602 = vmatprep.subr.mxu0 %v1633
    %2603 = vmatpush1.msra.mxu0 %v1632
    %2604 = vmatprep.subr.mxu0 %v1641
    %2605 = vmatpush1.msra.mxu0 %v1640
    %2606 = vmatprep.subr.mxu0 %v1649
    %2607 = vmatpush1.msra.mxu0 %v1648
    %2608 = vmatprep.subr.mxu0 %v1657
    %2609 = vmatpush1.msra.mxu0 %v1656
    %2610 = vmatprep.subr.mxu0 %v1665
    %2611 = vmatpush1.msra.mxu0 %v1664
    %2612 = vmatprep.subr.mxu0 %v1673
    %2613 = vmatpush1.msra.mxu0 %v1672
    %2614 = vmatprep.subr.mxu0 %v1681
    %2615 = vmatpush1.msra.mxu0 %v1680
    %2616 = vmatprep.subr.mxu0 %v1689
    %2617 = vmatpush1.msra.mxu0 %v1688
    %2618 = vmatprep.subr.mxu0 %v1697
    %2619 = vmatpush1.msra.mxu0 %v1696
    %2620 = vmatprep.subr.mxu0 %v1705
    %2621 = vmatpush1.msra.mxu0 %v1704
    %2622 = vmatprep.subr.mxu0 %v1713
    %2623 = vmatpush1.msra.mxu0 %v1712
    %2624 = vmatprep.subr.mxu0 %v1721
    %2625 = vmatpush1.msra.mxu0 %v1720
    %2626 = vmatprep.subr.mxu0 %v1729
    %2627 = vmatpush1.msra.mxu0 %v1728
    %2628 = vmatprep.subr.mxu0 %v1737
    %2629 = vmatpush1.msra.mxu0 %v1736
    %2630 = vmatprep.subr.mxu0 %v1745
    %2631 = vmatpush1.msra.mxu0 %v1744
    %2632 = vmatprep.subr.mxu0 %v1753
    %2633 = vmatpush1.msra.mxu0 %v1752
    %2634 = vmatprep.mubr.f32.mxu0 %v1497
    %2635 = vmatmul.mubr.f32.gmra.mrb[0].mxu0 %v1496
    %v2636 = vpop.f32.mrb[0].mxu0
    %v2637 = vadd.f32 %v2533, %v2636
    %v2638 = vpop.f32.mrb[0].mxu0
    %v2639 = vadd.f32 %v2537, %v2638
    %2640 = vdwg.mxu0
    %2641 = vmatprep.subr.mxu0 %v1761
    %2642 = vmatpush1.msra.mxu0 %v1760
    %2643 = vmatprep.subr.mxu0 %v1769
    %2644 = vmatpush1.msra.mxu0 %v1768
    %2645 = vmatprep.subr.mxu0 %v1777
    %2646 = vmatpush1.msra.mxu0 %v1776
    %2647 = vmatprep.subr.mxu0 %v1785
    %2648 = vmatpush1.msra.mxu0 %v1784
    %2649 = vmatprep.subr.mxu0 %v1793
    %2650 = vmatpush1.msra.mxu0 %v1792
    %2651 = vmatprep.subr.mxu0 %v1801
    %2652 = vmatpush1.msra.mxu0 %v1800
    %2653 = vmatprep.subr.mxu0 %v1809
    %2654 = vmatpush1.msra.mxu0 %v1808
    %2655 = vmatprep.subr.mxu0 %v1817
    %2656 = vmatpush1.msra.mxu0 %v1816
    %2657 = vmatprep.subr.mxu0 %v1825
    %2658 = vmatpush1.msra.mxu0 %v1824
    %2659 = vmatprep.subr.mxu0 %v1833
    %2660 = vmatpush1.msra.mxu0 %v1832
    %2661 = vmatprep.subr.mxu0 %v1841
    %2662 = vmatpush1.msra.mxu0 %v1840
    %2663 = vmatprep.subr.mxu0 %v1849
    %2664 = vmatpush1.msra.mxu0 %v1848
    %2665 = vmatprep.subr.mxu0 %v1857
    %2666 = vmatpush1.msra.mxu0 %v1856
    %2667 = vmatprep.subr.mxu0 %v1865
    %2668 = vmatpush1.msra.mxu0 %v1864
    %2669 = vmatprep.subr.mxu0 %v1873
    %2670 = vmatpush1.msra.mxu0 %v1872
    %2671 = vmatprep.subr.mxu0 %v1881
    %2672 = vmatpush1.msra.mxu0 %v1880
    %2673 = vmatprep.subr.mxu0 %v1889
    %2674 = vmatpush1.msra.mxu0 %v1888
    %2675 = vmatprep.subr.mxu0 %v1897
    %2676 = vmatpush1.msra.mxu0 %v1896
    %2677 = vmatprep.subr.mxu0 %v1905
    %2678 = vmatpush1.msra.mxu0 %v1904
    %2679 = vmatprep.subr.mxu0 %v1913
    %2680 = vmatpush1.msra.mxu0 %v1912
    %2681 = vmatprep.subr.mxu0 %v1921
    %2682 = vmatpush1.msra.mxu0 %v1920
    %2683 = vmatprep.subr.mxu0 %v1929
    %2684 = vmatpush1.msra.mxu0 %v1928
    %2685 = vmatprep.subr.mxu0 %v1937
    %2686 = vmatpush1.msra.mxu0 %v1936
    %2687 = vmatprep.subr.mxu0 %v1945
    %2688 = vmatpush1.msra.mxu0 %v1944
    %2689 = vmatprep.subr.mxu0 %v1953
    %2690 = vmatpush1.msra.mxu0 %v1952
    %2691 = vmatprep.subr.mxu0 %v1961
    %2692 = vmatpush1.msra.mxu0 %v1960
    %2693 = vmatprep.subr.mxu0 %v1969
    %2694 = vmatpush1.msra.mxu0 %v1968
    %2695 = vmatprep.subr.mxu0 %v1977
    %2696 = vmatpush1.msra.mxu0 %v1976
    %2697 = vmatprep.subr.mxu0 %v1985
    %2698 = vmatpush1.msra.mxu0 %v1984
    %2699 = vmatprep.subr.mxu0 %v1993
    %2700 = vmatpush1.msra.mxu0 %v1992
    %2701 = vmatprep.subr.mxu0 %v2001
    %2702 = vmatpush1.msra.mxu0 %v2000
    %2703 = vmatprep.subr.mxu0 %v2009
    %2704 = vmatpush1.msra.mxu0 %v2008
    %2705 = vmatprep.mubr.f32.mxu0 %v1499
    %2706 = vmatmul.mubr.f32.gmra.mrb[0].mxu0 %v1498
    %v2707 = vpop.f32.mrb[0].mxu0
    %v2708 = vadd.f32 %v2637, %v2707
    %v2709 = vpop.f32.mrb[0].mxu0
    %v2710 = vadd.f32 %v2639, %v2709
    %2711 = vdwg.mxu0
    %2712 = vmatprep.subr.mxu0 %v2017
    %2713 = vmatpush1.msra.mxu0 %v2016
    %2714 = vmatprep.subr.mxu0 %v2025
    %2715 = vmatpush1.msra.mxu0 %v2024
    %2716 = vmatprep.subr.mxu0 %v2033
    %2717 = vmatpush1.msra.mxu0 %v2032
    %2718 = vmatprep.subr.mxu0 %v2041
    %2719 = vmatpush1.msra.mxu0 %v2040
    %2720 = vmatprep.subr.mxu0 %v2049
    %2721 = vmatpush1.msra.mxu0 %v2048
    %2722 = vmatprep.subr.mxu0 %v2057
    %2723 = vmatpush1.msra.mxu0 %v2056
    %2724 = vmatprep.subr.mxu0 %v2065
    %2725 = vmatpush1.msra.mxu0 %v2064
    %2726 = vmatprep.subr.mxu0 %v2073
    %2727 = vmatpush1.msra.mxu0 %v2072
    %2728 = vmatprep.subr.mxu0 %v2081
    %2729 = vmatpush1.msra.mxu0 %v2080
    %2730 = vmatprep.subr.mxu0 %v2089
    %2731 = vmatpush1.msra.mxu0 %v2088
    %2732 = vmatprep.subr.mxu0 %v2097
    %2733 = vmatpush1.msra.mxu0 %v2096
    %2734 = vmatprep.subr.mxu0 %v2105
    %2735 = vmatpush1.msra.mxu0 %v2104
    %2736 = vmatprep.subr.mxu0 %v2113
    %2737 = vmatpush1.msra.mxu0 %v2112
    %2738 = vmatprep.subr.mxu0 %v2121
    %2739 = vmatpush1.msra.mxu0 %v2120
    %2740 = vmatprep.subr.mxu0 %v2129
    %2741 = vmatpush1.msra.mxu0 %v2128
    %2742 = vmatprep.subr.mxu0 %v2137
    %2743 = vmatpush1.msra.mxu0 %v2136
    %2744 = vmatprep.subr.mxu0 %v2145
    %2745 = vmatpush1.msra.mxu0 %v2144
    %2746 = vmatprep.subr.mxu0 %v2153
    %2747 = vmatpush1.msra.mxu0 %v2152
    %2748 = vmatprep.subr.mxu0 %v2161
    %2749 = vmatpush1.msra.mxu0 %v2160
    %2750 = vmatprep.subr.mxu0 %v2169
    %2751 = vmatpush1.msra.mxu0 %v2168
    %2752 = vmatprep.subr.mxu0 %v2177
    %2753 = vmatpush1.msra.mxu0 %v2176
    %2754 = vmatprep.subr.mxu0 %v2185
    %2755 = vmatpush1.msra.mxu0 %v2184
    %2756 = vmatprep.subr.mxu0 %v2193
    %2757 = vmatpush1.msra.mxu0 %v2192
    %2758 = vmatprep.subr.mxu0 %v2201
    %2759 = vmatpush1.msra.mxu0 %v2200
    %2760 = vmatprep.subr.mxu0 %v2209
    %2761 = vmatpush1.msra.mxu0 %v2208
    %2762 = vmatprep.subr.mxu0 %v2217
    %2763 = vmatpush1.msra.mxu0 %v2216
    %2764 = vmatprep.subr.mxu0 %v2225
    %2765 = vmatpush1.msra.mxu0 %v2224
    %2766 = vmatprep.subr.mxu0 %v2233
    %2767 = vmatpush1.msra.mxu0 %v2232
    %2768 = vmatprep.subr.mxu0 %v2241
    %2769 = vmatpush1.msra.mxu0 %v2240
    %2770 = vmatprep.subr.mxu0 %v2249
    %2771 = vmatpush1.msra.mxu0 %v2248
    %2772 = vmatprep.subr.mxu0 %v2257
    %2773 = vmatpush1.msra.mxu0 %v2256
    %2774 = vmatprep.subr.mxu0 %v2265
    %2775 = vmatpush1.msra.mxu0 %v2264
    %2776 = vmatprep.mubr.f32.mxu0 %v1501
    %2777 = vmatmul.mubr.f32.gmra.mrb[0].mxu0 %v1500
    %v2778 = vpop.f32.mrb[0].mxu0
    %v2779 = vadd.f32 %v2708, %v2778
    %v2780 = vpop.f32.mrb[0].mxu0
    %v2781 = vadd.f32 %v2710, %v2780
    %2782 = vdwg.mxu0
    %2783 = vmatprep.subr.mxu0 %v2273
    %2784 = vmatpush1.msra.mxu0 %v2272
    %2785 = vmatprep.subr.mxu0 %v2281
    %2786 = vmatpush1.msra.mxu0 %v2280
    %2787 = vmatprep.subr.mxu0 %v2289
    %2788 = vmatpush1.msra.mxu0 %v2288
    %2789 = vmatprep.subr.mxu0 %v2297
    %2790 = vmatpush1.msra.mxu0 %v2296
    %2791 = vmatprep.subr.mxu0 %v2305
    %2792 = vmatpush1.msra.mxu0 %v2304
    %2793 = vmatprep.subr.mxu0 %v2313
    %2794 = vmatpush1.msra.mxu0 %v2312
    %2795 = vmatprep.subr.mxu0 %v2321
    %2796 = vmatpush1.msra.mxu0 %v2320
    %2797 = vmatprep.subr.mxu0 %v2329
    %2798 = vmatpush1.msra.mxu0 %v2328
    %2799 = vmatprep.subr.mxu0 %v2337
    %2800 = vmatpush1.msra.mxu0 %v2336
    %2801 = vmatprep.subr.mxu0 %v2345
    %2802 = vmatpush1.msra.mxu0 %v2344
    %2803 = vmatprep.subr.mxu0 %v2353
    %2804 = vmatpush1.msra.mxu0 %v2352
    %2805 = vmatprep.subr.mxu0 %v2361
    %2806 = vmatpush1.msra.mxu0 %v2360
    %2807 = vmatprep.subr.mxu0 %v2369
    %2808 = vmatpush1.msra.mxu0 %v2368
    %2809 = vmatprep.subr.mxu0 %v2377
    %2810 = vmatpush1.msra.mxu0 %v2376
    %2811 = vmatprep.subr.mxu0 %v2385
    %2812 = vmatpush1.msra.mxu0 %v2384
    %2813 = vmatprep.subr.mxu0 %v2393
    %2814 = vmatpush1.msra.mxu0 %v2392
    %2815 = vmatprep.subr.mxu0 %v2401
    %2816 = vmatpush1.msra.mxu0 %v2400
    %2817 = vmatprep.subr.mxu0 %v2409
    %2818 = vmatpush1.msra.mxu0 %v2408
    %2819 = vmatprep.subr.mxu0 %v2417
    %2820 = vmatpush1.msra.mxu0 %v2416
    %2821 = vmatprep.subr.mxu0 %v2425
    %2822 = vmatpush1.msra.mxu0 %v2424
    %2823 = vmatprep.subr.mxu0 %v2433
    %2824 = vmatpush1.msra.mxu0 %v2432
    %2825 = vmatprep.subr.mxu0 %v2441
    %2826 = vmatpush1.msra.mxu0 %v2440
    %2827 = vmatprep.subr.mxu0 %v2449
    %2828 = vmatpush1.msra.mxu0 %v2448
    %2829 = vmatprep.subr.mxu0 %v2457
    %2830 = vmatpush1.msra.mxu0 %v2456
    %2831 = vmatprep.subr.mxu0 %v2465
    %2832 = vmatpush1.msra.mxu0 %v2464
    %2833 = vmatprep.subr.mxu0 %v2473
    %2834 = vmatpush1.msra.mxu0 %v2472
    %2835 = vmatprep.subr.mxu0 %v2481
    %2836 = vmatpush1.msra.mxu0 %v2480
    %2837 = vmatprep.subr.mxu0 %v2489
    %2838 = vmatpush1.msra.mxu0 %v2488
    %2839 = vmatprep.subr.mxu0 %v2497
    %2840 = vmatpush1.msra.mxu0 %v2496
    %2841 = vmatprep.subr.mxu0 %v2505
    %2842 = vmatpush1.msra.mxu0 %v2504
    %2843 = vmatprep.subr.mxu0 %v2513
    %2844 = vmatpush1.msra.mxu0 %v2512
    %2845 = vmatprep.subr.mxu0 %v2521
    %2846 = vmatpush1.msra.mxu0 %v2520
    %2847 = vmatprep.mubr.f32.mxu0 %v1503
    %2848 = vmatmul.mubr.f32.gmra.mrb[0].mxu0 %v1502
    %v2849 = vpop.f32.mrb[0].mxu0
    %v2850 = vadd.f32 %v2779, %v2849
    %v2851 = vpop.f32.mrb[0].mxu0
    %v2852 = vadd.f32 %v2781, %v2851
    %2853 = vdwg.mxu0
    %2854 = vmatprep.subr.mxu0 %v1507
    %2855 = vmatpush1.msra.mxu0 %v1506
    %2856 = vmatprep.subr.mxu0 %v1515
    %2857 = vmatpush1.msra.mxu0 %v1514
    %2858 = vmatprep.subr.mxu0 %v1523
    %2859 = vmatpush1.msra.mxu0 %v1522
    %2860 = vmatprep.subr.mxu0 %v1531
    %2861 = vmatpush1.msra.mxu0 %v1530
    %2862 = vmatprep.subr.mxu0 %v1539
    %2863 = vmatpush1.msra.mxu0 %v1538
    %2864 = vmatprep.subr.mxu0 %v1547
    %2865 = vmatpush1.msra.mxu0 %v1546
    %2866 = vmatprep.subr.mxu0 %v1555
    %2867 = vmatpush1.msra.mxu0 %v1554
    %2868 = vmatprep.subr.mxu0 %v1563
    %2869 = vmatpush1.msra.mxu0 %v1562
    %2870 = vmatprep.subr.mxu0 %v1571
    %2871 = vmatpush1.msra.mxu0 %v1570
    %2872 = vmatprep.subr.mxu0 %v1579
    %2873 = vmatpush1.msra.mxu0 %v1578
    %2874 = vmatprep.subr.mxu0 %v1587
    %2875 = vmatpush1.msra.mxu0 %v1586
    %2876 = vmatprep.subr.mxu0 %v1595
    %2877 = vmatpush1.msra.mxu0 %v1594
    %2878 = vmatprep.subr.mxu0 %v1603
    %2879 = vmatpush1.msra.mxu0 %v1602
    %2880 = vmatprep.subr.mxu0 %v1611
    %2881 = vmatpush1.msra.mxu0 %v1610
    %2882 = vmatprep.subr.mxu0 %v1619
    %2883 = vmatpush1.msra.mxu0 %v1618
    %2884 = vmatprep.subr.mxu0 %v1627
    %2885 = vmatpush1.msra.mxu0 %v1626
    %2886 = vmatprep.subr.mxu0 %v1635
    %2887 = vmatpush1.msra.mxu0 %v1634
    %2888 = vmatprep.subr.mxu0 %v1643
    %2889 = vmatpush1.msra.mxu0 %v1642
    %2890 = vmatprep.subr.mxu0 %v1651
    %2891 = vmatpush1.msra.mxu0 %v1650
    %2892 = vmatprep.subr.mxu0 %v1659
    %2893 = vmatpush1.msra.mxu0 %v1658
    %2894 = vmatprep.subr.mxu0 %v1667
    %2895 = vmatpush1.msra.mxu0 %v1666
    %2896 = vmatprep.subr.mxu0 %v1675
    %2897 = vmatpush1.msra.mxu0 %v1674
    %2898 = vmatprep.subr.mxu0 %v1683
    %2899 = vmatpush1.msra.mxu0 %v1682
    %2900 = vmatprep.subr.mxu0 %v1691
    %2901 = vmatpush1.msra.mxu0 %v1690
    %2902 = vmatprep.subr.mxu0 %v1699
    %2903 = vmatpush1.msra.mxu0 %v1698
    %2904 = vmatprep.subr.mxu0 %v1707
    %2905 = vmatpush1.msra.mxu0 %v1706
    %2906 = vmatprep.subr.mxu0 %v1715
    %2907 = vmatpush1.msra.mxu0 %v1714
    %2908 = vmatprep.subr.mxu0 %v1723
    %2909 = vmatpush1.msra.mxu0 %v1722
    %2910 = vmatprep.subr.mxu0 %v1731
    %2911 = vmatpush1.msra.mxu0 %v1730
    %2912 = vmatprep.subr.mxu0 %v1739
    %2913 = vmatpush1.msra.mxu0 %v1738
    %2914 = vmatprep.subr.mxu0 %v1747
    %2915 = vmatpush1.msra.mxu0 %v1746
    %2916 = vmatprep.subr.mxu0 %v1755
    %2917 = vmatpush1.msra.mxu0 %v1754
    %2918 = vmatprep.mubr.f32.mxu0 %v1497
    %2919 = vmatmul.mubr.f32.gmra.mrb[0].mxu0 %v1496
    %v2920 = vpop.f32.mrb[0].mxu0
    %v2921 = vadd.f32 %v2541, %v2920
    %v2922 = vpop.f32.mrb[0].mxu0
    %v2923 = vadd.f32 %v2545, %v2922
    %2924 = vdwg.mxu0
    %2925 = vmatprep.subr.mxu0 %v1763
    %2926 = vmatpush1.msra.mxu0 %v1762
    %2927 = vmatprep.subr.mxu0 %v1771
    %2928 = vmatpush1.msra.mxu0 %v1770
    %2929 = vmatprep.subr.mxu0 %v1779
    %2930 = vmatpush1.msra.mxu0 %v1778
    %2931 = vmatprep.subr.mxu0 %v1787
    %2932 = vmatpush1.msra.mxu0 %v1786
    %2933 = vmatprep.subr.mxu0 %v1795
    %2934 = vmatpush1.msra.mxu0 %v1794
    %2935 = vmatprep.subr.mxu0 %v1803
    %2936 = vmatpush1.msra.mxu0 %v1802
    %2937 = vmatprep.subr.mxu0 %v1811
    %2938 = vmatpush1.msra.mxu0 %v1810
    %2939 = vmatprep.subr.mxu0 %v1819
    %2940 = vmatpush1.msra.mxu0 %v1818
    %2941 = vmatprep.subr.mxu0 %v1827
    %2942 = vmatpush1.msra.mxu0 %v1826
    %2943 = vmatprep.subr.mxu0 %v1835
    %2944 = vmatpush1.msra.mxu0 %v1834
    %2945 = vmatprep.subr.mxu0 %v1843
    %2946 = vmatpush1.msra.mxu0 %v1842
    %2947 = vmatprep.subr.mxu0 %v1851
    %2948 = vmatpush1.msra.mxu0 %v1850
    %2949 = vmatprep.subr.mxu0 %v1859
    %2950 = vmatpush1.msra.mxu0 %v1858
    %2951 = vmatprep.subr.mxu0 %v1867
    %2952 = vmatpush1.msra.mxu0 %v1866
    %2953 = vmatprep.subr.mxu0 %v1875
    %2954 = vmatpush1.msra.mxu0 %v1874
    %2955 = vmatprep.subr.mxu0 %v1883
    %2956 = vmatpush1.msra.mxu0 %v1882
    %2957 = vmatprep.subr.mxu0 %v1891
    %2958 = vmatpush1.msra.mxu0 %v1890
    %2959 = vmatprep.subr.mxu0 %v1899
    %2960 = vmatpush1.msra.mxu0 %v1898
    %2961 = vmatprep.subr.mxu0 %v1907
    %2962 = vmatpush1.msra.mxu0 %v1906
    %2963 = vmatprep.subr.mxu0 %v1915
    %2964 = vmatpush1.msra.mxu0 %v1914
    %2965 = vmatprep.subr.mxu0 %v1923
    %2966 = vmatpush1.msra.mxu0 %v1922
    %2967 = vmatprep.subr.mxu0 %v1931
    %2968 = vmatpush1.msra.mxu0 %v1930
    %2969 = vmatprep.subr.mxu0 %v1939
    %2970 = vmatpush1.msra.mxu0 %v1938
    %2971 = vmatprep.subr.mxu0 %v1947
    %2972 = vmatpush1.msra.mxu0 %v1946
    %2973 = vmatprep.subr.mxu0 %v1955
    %2974 = vmatpush1.msra.mxu0 %v1954
    %2975 = vmatprep.subr.mxu0 %v1963
    %2976 = vmatpush1.msra.mxu0 %v1962
    %2977 = vmatprep.subr.mxu0 %v1971
    %2978 = vmatpush1.msra.mxu0 %v1970
    %2979 = vmatprep.subr.mxu0 %v1979
    %2980 = vmatpush1.msra.mxu0 %v1978
    %2981 = vmatprep.subr.mxu0 %v1987
    %2982 = vmatpush1.msra.mxu0 %v1986
    %2983 = vmatprep.subr.mxu0 %v1995
    %2984 = vmatpush1.msra.mxu0 %v1994
    %2985 = vmatprep.subr.mxu0 %v2003
    %2986 = vmatpush1.msra.mxu0 %v2002
    %2987 = vmatprep.subr.mxu0 %v2011
    %2988 = vmatpush1.msra.mxu0 %v2010
    %2989 = vmatprep.mubr.f32.mxu0 %v1499
    %2990 = vmatmul.mubr.f32.gmra.mrb[0].mxu0 %v1498
    %v2991 = vpop.f32.mrb[0].mxu0
    %v2992 = vadd.f32 %v2921, %v2991
    %v2993 = vpop.f32.mrb[0].mxu0
    %v2994 = vadd.f32 %v2923, %v2993
    %2995 = vdwg.mxu0
    %2996 = vmatprep.subr.mxu0 %v2019
    %2997 = vmatpush1.msra.mxu0 %v2018
    %2998 = vmatprep.subr.mxu0 %v2027
    %2999 = vmatpush1.msra.mxu0 %v2026
    %3000 = vmatprep.subr.mxu0 %v2035
    %3001 = vmatpush1.msra.mxu0 %v2034
    %3002 = vmatprep.subr.mxu0 %v2043
    %3003 = vmatpush1.msra.mxu0 %v2042
    %3004 = vmatprep.subr.mxu0 %v2051
    %3005 = vmatpush1.msra.mxu0 %v2050
    %3006 = vmatprep.subr.mxu0 %v2059
    %3007 = vmatpush1.msra.mxu0 %v2058
    %3008 = vmatprep.subr.mxu0 %v2067
    %3009 = vmatpush1.msra.mxu0 %v2066
    %3010 = vmatprep.subr.mxu0 %v2075
    %3011 = vmatpush1.msra.mxu0 %v2074
    %3012 = vmatprep.subr.mxu0 %v2083
    %3013 = vmatpush1.msra.mxu0 %v2082
    %3014 = vmatprep.subr.mxu0 %v2091
    %3015 = vmatpush1.msra.mxu0 %v2090
    %3016 = vmatprep.subr.mxu0 %v2099
    %3017 = vmatpush1.msra.mxu0 %v2098
    %3018 = vmatprep.subr.mxu0 %v2107
    %3019 = vmatpush1.msra.mxu0 %v2106
    %3020 = vmatprep.subr.mxu0 %v2115
    %3021 = vmatpush1.msra.mxu0 %v2114
    %3022 = vmatprep.subr.mxu0 %v2123
    %3023 = vmatpush1.msra.mxu0 %v2122
    %3024 = vmatprep.subr.mxu0 %v2131
    %3025 = vmatpush1.msra.mxu0 %v2130
    %3026 = vmatprep.subr.mxu0 %v2139
    %3027 = vmatpush1.msra.mxu0 %v2138
    %3028 = vmatprep.subr.mxu0 %v2147
    %3029 = vmatpush1.msra.mxu0 %v2146
    %3030 = vmatprep.subr.mxu0 %v2155
    %3031 = vmatpush1.msra.mxu0 %v2154
    %3032 = vmatprep.subr.mxu0 %v2163
    %3033 = vmatpush1.msra.mxu0 %v2162
    %3034 = vmatprep.subr.mxu0 %v2171
    %3035 = vmatpush1.msra.mxu0 %v2170
    %3036 = vmatprep.subr.mxu0 %v2179
    %3037 = vmatpush1.msra.mxu0 %v2178
    %3038 = vmatprep.subr.mxu0 %v2187
    %3039 = vmatpush1.msra.mxu0 %v2186
    %3040 = vmatprep.subr.mxu0 %v2195
    %3041 = vmatpush1.msra.mxu0 %v2194
    %3042 = vmatprep.subr.mxu0 %v2203
    %3043 = vmatpush1.msra.mxu0 %v2202
    %3044 = vmatprep.subr.mxu0 %v2211
    %3045 = vmatpush1.msra.mxu0 %v2210
    %3046 = vmatprep.subr.mxu0 %v2219
    %3047 = vmatpush1.msra.mxu0 %v2218
    %3048 = vmatprep.subr.mxu0 %v2227
    %3049 = vmatpush1.msra.mxu0 %v2226
    %3050 = vmatprep.subr.mxu0 %v2235
    %3051 = vmatpush1.msra.mxu0 %v2234
    %3052 = vmatprep.subr.mxu0 %v2243
    %3053 = vmatpush1.msra.mxu0 %v2242
    %3054 = vmatprep.subr.mxu0 %v2251
    %3055 = vmatpush1.msra.mxu0 %v2250
    %3056 = vmatprep.subr.mxu0 %v2259
    %3057 = vmatpush1.msra.mxu0 %v2258
    %3058 = vmatprep.subr.mxu0 %v2267
    %3059 = vmatpush1.msra.mxu0 %v2266
    %3060 = vmatprep.mubr.f32.mxu0 %v1501
    %3061 = vmatmul.mubr.f32.gmra.mrb[0].mxu0 %v1500
    %v3062 = vpop.f32.mrb[0].mxu0
    %v3063 = vadd.f32 %v2992, %v3062
    %v3064 = vpop.f32.mrb[0].mxu0
    %v3065 = vadd.f32 %v2994, %v3064
    %3066 = vdwg.mxu0
    %3067 = vmatprep.subr.mxu0 %v2275
    %3068 = vmatpush1.msra.mxu0 %v2274
    %3069 = vmatprep.subr.mxu0 %v2283
    %3070 = vmatpush1.msra.mxu0 %v2282
    %3071 = vmatprep.subr.mxu0 %v2291
    %3072 = vmatpush1.msra.mxu0 %v2290
    %3073 = vmatprep.subr.mxu0 %v2299
    %3074 = vmatpush1.msra.mxu0 %v2298
    %3075 = vmatprep.subr.mxu0 %v2307
    %3076 = vmatpush1.msra.mxu0 %v2306
    %3077 = vmatprep.subr.mxu0 %v2315
    %3078 = vmatpush1.msra.mxu0 %v2314
    %3079 = vmatprep.subr.mxu0 %v2323
    %3080 = vmatpush1.msra.mxu0 %v2322
    %3081 = vmatprep.subr.mxu0 %v2331
    %3082 = vmatpush1.msra.mxu0 %v2330
    %3083 = vmatprep.subr.mxu0 %v2339
    %3084 = vmatpush1.msra.mxu0 %v2338
    %3085 = vmatprep.subr.mxu0 %v2347
    %3086 = vmatpush1.msra.mxu0 %v2346
    %3087 = vmatprep.subr.mxu0 %v2355
    %3088 = vmatpush1.msra.mxu0 %v2354
    %3089 = vmatprep.subr.mxu0 %v2363
    %3090 = vmatpush1.msra.mxu0 %v2362
    %3091 = vmatprep.subr.mxu0 %v2371
    %3092 = vmatpush1.msra.mxu0 %v2370
    %3093 = vmatprep.subr.mxu0 %v2379
    %3094 = vmatpush1.msra.mxu0 %v2378
    %3095 = vmatprep.subr.mxu0 %v2387
    %3096 = vmatpush1.msra.mxu0 %v2386
    %3097 = vmatprep.subr.mxu0 %v2395
    %3098 = vmatpush1.msra.mxu0 %v2394
    %3099 = vmatprep.subr.mxu0 %v2403
    %3100 = vmatpush1.msra.mxu0 %v2402
    %3101 = vmatprep.subr.mxu0 %v2411
    %3102 = vmatpush1.msra.mxu0 %v2410
    %3103 = vmatprep.subr.mxu0 %v2419
    %3104 = vmatpush1.msra.mxu0 %v2418
    %3105 = vmatprep.subr.mxu0 %v2427
    %3106 = vmatpush1.msra.mxu0 %v2426
    %3107 = vmatprep.subr.mxu0 %v2435
    %3108 = vmatpush1.msra.mxu0 %v2434
    %3109 = vmatprep.subr.mxu0 %v2443
    %3110 = vmatpush1.msra.mxu0 %v2442
    %3111 = vmatprep.subr.mxu0 %v2451
    %3112 = vmatpush1.msra.mxu0 %v2450
    %3113 = vmatprep.subr.mxu0 %v2459
    %3114 = vmatpush1.msra.mxu0 %v2458
    %3115 = vmatprep.subr.mxu0 %v2467
    %3116 = vmatpush1.msra.mxu0 %v2466
    %3117 = vmatprep.subr.mxu0 %v2475
    %3118 = vmatpush1.msra.mxu0 %v2474
    %3119 = vmatprep.subr.mxu0 %v2483
    %3120 = vmatpush1.msra.mxu0 %v2482
    %3121 = vmatprep.subr.mxu0 %v2491
    %3122 = vmatpush1.msra.mxu0 %v2490
    %3123 = vmatprep.subr.mxu0 %v2499
    %3124 = vmatpush1.msra.mxu0 %v2498
    %3125 = vmatprep.subr.mxu0 %v2507
    %3126 = vmatpush1.msra.mxu0 %v2506
    %3127 = vmatprep.subr.mxu0 %v2515
    %3128 = vmatpush1.msra.mxu0 %v2514
    %3129 = vmatprep.subr.mxu0 %v2523
    %3130 = vmatpush1.msra.mxu0 %v2522
    %3131 = vmatprep.mubr.f32.mxu0 %v1503
    %3132 = vmatmul.mubr.f32.gmra.mrb[0].mxu0 %v1502
    %v3133 = vpop.f32.mrb[0].mxu0
    %v3134 = vadd.f32 %v3063, %v3133
    %v3135 = vpop.f32.mrb[0].mxu0
    %v3136 = vadd.f32 %v3065, %v3135
    %3137 = vdwg.mxu0
    %3138 = vmatprep.subr.mxu0 %v1509
    %3139 = vmatpush1.msra.mxu0 %v1508
    %3140 = vmatprep.subr.mxu0 %v1517
    %3141 = vmatpush1.msra.mxu0 %v1516
    %3142 = vmatprep.subr.mxu0 %v1525
    %3143 = vmatpush1.msra.mxu0 %v1524
    %3144 = vmatprep.subr.mxu0 %v1533
    %3145 = vmatpush1.msra.mxu0 %v1532
    %3146 = vmatprep.subr.mxu0 %v1541
    %3147 = vmatpush1.msra.mxu0 %v1540
    %3148 = vmatprep.subr.mxu0 %v1549
    %3149 = vmatpush1.msra.mxu0 %v1548
    %3150 = vmatprep.subr.mxu0 %v1557
    %3151 = vmatpush1.msra.mxu0 %v1556
    %3152 = vmatprep.subr.mxu0 %v1565
    %3153 = vmatpush1.msra.mxu0 %v1564
    %3154 = vmatprep.subr.mxu0 %v1573
    %3155 = vmatpush1.msra.mxu0 %v1572
    %3156 = vmatprep.subr.mxu0 %v1581
    %3157 = vmatpush1.msra.mxu0 %v1580
    %3158 = vmatprep.subr.mxu0 %v1589
    %3159 = vmatpush1.msra.mxu0 %v1588
    %3160 = vmatprep.subr.mxu0 %v1597
    %3161 = vmatpush1.msra.mxu0 %v1596
    %3162 = vmatprep.subr.mxu0 %v1605
    %3163 = vmatpush1.msra.mxu0 %v1604
    %3164 = vmatprep.subr.mxu0 %v1613
    %3165 = vmatpush1.msra.mxu0 %v1612
    %3166 = vmatprep.subr.mxu0 %v1621
    %3167 = vmatpush1.msra.mxu0 %v1620
    %3168 = vmatprep.subr.mxu0 %v1629
    %3169 = vmatpush1.msra.mxu0 %v1628
    %3170 = vmatprep.subr.mxu0 %v1637
    %3171 = vmatpush1.msra.mxu0 %v1636
    %3172 = vmatprep.subr.mxu0 %v1645
    %3173 = vmatpush1.msra.mxu0 %v1644
    %3174 = vmatprep.subr.mxu0 %v1653
    %3175 = vmatpush1.msra.mxu0 %v1652
    %3176 = vmatprep.subr.mxu0 %v1661
    %3177 = vmatpush1.msra.mxu0 %v1660
    %3178 = vmatprep.subr.mxu0 %v1669
    %3179 = vmatpush1.msra.mxu0 %v1668
    %3180 = vmatprep.subr.mxu0 %v1677
    %3181 = vmatpush1.msra.mxu0 %v1676
    %3182 = vmatprep.subr.mxu0 %v1685
    %3183 = vmatpush1.msra.mxu0 %v1684
    %3184 = vmatprep.subr.mxu0 %v1693
    %3185 = vmatpush1.msra.mxu0 %v1692
    %3186 = vmatprep.subr.mxu0 %v1701
    %3187 = vmatpush1.msra.mxu0 %v1700
    %3188 = vmatprep.subr.mxu0 %v1709
    %3189 = vmatpush1.msra.mxu0 %v1708
    %3190 = vmatprep.subr.mxu0 %v1717
    %3191 = vmatpush1.msra.mxu0 %v1716
    %3192 = vmatprep.subr.mxu0 %v1725
    %3193 = vmatpush1.msra.mxu0 %v1724
    %3194 = vmatprep.subr.mxu0 %v1733
    %3195 = vmatpush1.msra.mxu0 %v1732
    %3196 = vmatprep.subr.mxu0 %v1741
    %3197 = vmatpush1.msra.mxu0 %v1740
    %3198 = vmatprep.subr.mxu0 %v1749
    %3199 = vmatpush1.msra.mxu0 %v1748
    %3200 = vmatprep.subr.mxu0 %v1757
    %3201 = vmatpush1.msra.mxu0 %v1756
    %3202 = vmatprep.mubr.f32.mxu0 %v1497
    %3203 = vmatmul.mubr.f32.gmra.mrb[0].mxu0 %v1496
    %v3204 = vpop.f32.mrb[0].mxu0
    %v3205 = vadd.f32 %v2549, %v3204
    %v3206 = vpop.f32.mrb[0].mxu0
    %v3207 = vadd.f32 %v2553, %v3206
    %3208 = vdwg.mxu0
    %3209 = vmatprep.subr.mxu0 %v1765
    %3210 = vmatpush1.msra.mxu0 %v1764
    %3211 = vmatprep.subr.mxu0 %v1773
    %3212 = vmatpush1.msra.mxu0 %v1772
    %3213 = vmatprep.subr.mxu0 %v1781
    %3214 = vmatpush1.msra.mxu0 %v1780
    %3215 = vmatprep.subr.mxu0 %v1789
    %3216 = vmatpush1.msra.mxu0 %v1788
    %3217 = vmatprep.subr.mxu0 %v1797
    %3218 = vmatpush1.msra.mxu0 %v1796
    %3219 = vmatprep.subr.mxu0 %v1805
    %3220 = vmatpush1.msra.mxu0 %v1804
    %3221 = vmatprep.subr.mxu0 %v1813
    %3222 = vmatpush1.msra.mxu0 %v1812
    %3223 = vmatprep.subr.mxu0 %v1821
    %3224 = vmatpush1.msra.mxu0 %v1820
    %3225 = vmatprep.subr.mxu0 %v1829
    %3226 = vmatpush1.msra.mxu0 %v1828
    %3227 = vmatprep.subr.mxu0 %v1837
    %3228 = vmatpush1.msra.mxu0 %v1836
    %3229 = vmatprep.subr.mxu0 %v1845
    %3230 = vmatpush1.msra.mxu0 %v1844
    %3231 = vmatprep.subr.mxu0 %v1853
    %3232 = vmatpush1.msra.mxu0 %v1852
    %3233 = vmatprep.subr.mxu0 %v1861
    %3234 = vmatpush1.msra.mxu0 %v1860
    %3235 = vmatprep.subr.mxu0 %v1869
    %3236 = vmatpush1.msra.mxu0 %v1868
    %3237 = vmatprep.subr.mxu0 %v1877
    %3238 = vmatpush1.msra.mxu0 %v1876
    %3239 = vmatprep.subr.mxu0 %v1885
    %3240 = vmatpush1.msra.mxu0 %v1884
    %3241 = vmatprep.subr.mxu0 %v1893
    %3242 = vmatpush1.msra.mxu0 %v1892
    %3243 = vmatprep.subr.mxu0 %v1901
    %3244 = vmatpush1.msra.mxu0 %v1900
    %3245 = vmatprep.subr.mxu0 %v1909
    %3246 = vmatpush1.msra.mxu0 %v1908
    %3247 = vmatprep.subr.mxu0 %v1917
    %3248 = vmatpush1.msra.mxu0 %v1916
    %3249 = vmatprep.subr.mxu0 %v1925
    %3250 = vmatpush1.msra.mxu0 %v1924
    %3251 = vmatprep.subr.mxu0 %v1933
    %3252 = vmatpush1.msra.mxu0 %v1932
    %3253 = vmatprep.subr.mxu0 %v1941
    %3254 = vmatpush1.msra.mxu0 %v1940
    %3255 = vmatprep.subr.mxu0 %v1949
    %3256 = vmatpush1.msra.mxu0 %v1948
    %3257 = vmatprep.subr.mxu0 %v1957
    %3258 = vmatpush1.msra.mxu0 %v1956
    %3259 = vmatprep.subr.mxu0 %v1965
    %3260 = vmatpush1.msra.mxu0 %v1964
    %3261 = vmatprep.subr.mxu0 %v1973
    %3262 = vmatpush1.msra.mxu0 %v1972
    %3263 = vmatprep.subr.mxu0 %v1981
    %3264 = vmatpush1.msra.mxu0 %v1980
    %3265 = vmatprep.subr.mxu0 %v1989
    %3266 = vmatpush1.msra.mxu0 %v1988
    %3267 = vmatprep.subr.mxu0 %v1997
    %3268 = vmatpush1.msra.mxu0 %v1996
    %3269 = vmatprep.subr.mxu0 %v2005
    %3270 = vmatpush1.msra.mxu0 %v2004
    %3271 = vmatprep.subr.mxu0 %v2013
    %3272 = vmatpush1.msra.mxu0 %v2012
    %3273 = vmatprep.mubr.f32.mxu0 %v1499
    %3274 = vmatmul.mubr.f32.gmra.mrb[0].mxu0 %v1498
    %v3275 = vpop.f32.mrb[0].mxu0
    %v3276 = vadd.f32 %v3205, %v3275
    %v3277 = vpop.f32.mrb[0].mxu0
    %v3278 = vadd.f32 %v3207, %v3277
    %3279 = vdwg.mxu0
    %3280 = vmatprep.subr.mxu0 %v2021
    %3281 = vmatpush1.msra.mxu0 %v2020
    %3282 = vmatprep.subr.mxu0 %v2029
    %3283 = vmatpush1.msra.mxu0 %v2028
    %3284 = vmatprep.subr.mxu0 %v2037
    %3285 = vmatpush1.msra.mxu0 %v2036
    %3286 = vmatprep.subr.mxu0 %v2045
    %3287 = vmatpush1.msra.mxu0 %v2044
    %3288 = vmatprep.subr.mxu0 %v2053
    %3289 = vmatpush1.msra.mxu0 %v2052
    %3290 = vmatprep.subr.mxu0 %v2061
    %3291 = vmatpush1.msra.mxu0 %v2060
    %3292 = vmatprep.subr.mxu0 %v2069
    %3293 = vmatpush1.msra.mxu0 %v2068
    %3294 = vmatprep.subr.mxu0 %v2077
    %3295 = vmatpush1.msra.mxu0 %v2076
    %3296 = vmatprep.subr.mxu0 %v2085
    %3297 = vmatpush1.msra.mxu0 %v2084
    %3298 = vmatprep.subr.mxu0 %v2093
    %3299 = vmatpush1.msra.mxu0 %v2092
    %3300 = vmatprep.subr.mxu0 %v2101
    %3301 = vmatpush1.msra.mxu0 %v2100
    %3302 = vmatprep.subr.mxu0 %v2109
    %3303 = vmatpush1.msra.mxu0 %v2108
    %3304 = vmatprep.subr.mxu0 %v2117
    %3305 = vmatpush1.msra.mxu0 %v2116
    %3306 = vmatprep.subr.mxu0 %v2125
    %3307 = vmatpush1.msra.mxu0 %v2124
    %3308 = vmatprep.subr.mxu0 %v2133
    %3309 = vmatpush1.msra.mxu0 %v2132
    %3310 = vmatprep.subr.mxu0 %v2141
    %3311 = vmatpush1.msra.mxu0 %v2140
    %3312 = vmatprep.subr.mxu0 %v2149
    %3313 = vmatpush1.msra.mxu0 %v2148
    %3314 = vmatprep.subr.mxu0 %v2157
    %3315 = vmatpush1.msra.mxu0 %v2156
    %3316 = vmatprep.subr.mxu0 %v2165
    %3317 = vmatpush1.msra.mxu0 %v2164
    %3318 = vmatprep.subr.mxu0 %v2173
    %3319 = vmatpush1.msra.mxu0 %v2172
    %3320 = vmatprep.subr.mxu0 %v2181
    %3321 = vmatpush1.msra.mxu0 %v2180
    %3322 = vmatprep.subr.mxu0 %v2189
    %3323 = vmatpush1.msra.mxu0 %v2188
    %3324 = vmatprep.subr.mxu0 %v2197
    %3325 = vmatpush1.msra.mxu0 %v2196
    %3326 = vmatprep.subr.mxu0 %v2205
    %3327 = vmatpush1.msra.mxu0 %v2204
    %3328 = vmatprep.subr.mxu0 %v2213
    %3329 = vmatpush1.msra.mxu0 %v2212
    %3330 = vmatprep.subr.mxu0 %v2221
    %3331 = vmatpush1.msra.mxu0 %v2220
    %3332 = vmatprep.subr.mxu0 %v2229
    %3333 = vmatpush1.msra.mxu0 %v2228
    %3334 = vmatprep.subr.mxu0 %v2237
    %3335 = vmatpush1.msra.mxu0 %v2236
    %3336 = vmatprep.subr.mxu0 %v2245
    %3337 = vmatpush1.msra.mxu0 %v2244
    %3338 = vmatprep.subr.mxu0 %v2253
    %3339 = vmatpush1.msra.mxu0 %v2252
    %3340 = vmatprep.subr.mxu0 %v2261
    %3341 = vmatpush1.msra.mxu0 %v2260
    %3342 = vmatprep.subr.mxu0 %v2269
    %3343 = vmatpush1.msra.mxu0 %v2268
    %3344 = vmatprep.mubr.f32.mxu0 %v1501
    %3345 = vmatmul.mubr.f32.gmra.mrb[0].mxu0 %v1500
    %v3346 = vpop.f32.mrb[0].mxu0
    %v3347 = vadd.f32 %v3276, %v3346
    %v3348 = vpop.f32.mrb[0].mxu0
    %v3349 = vadd.f32 %v3278, %v3348
    %3350 = vdwg.mxu0
    %3351 = vmatprep.subr.mxu0 %v2277
    %3352 = vmatpush1.msra.mxu0 %v2276
    %3353 = vmatprep.subr.mxu0 %v2285
    %3354 = vmatpush1.msra.mxu0 %v2284
    %3355 = vmatprep.subr.mxu0 %v2293
    %3356 = vmatpush1.msra.mxu0 %v2292
    %3357 = vmatprep.subr.mxu0 %v2301
    %3358 = vmatpush1.msra.mxu0 %v2300
    %3359 = vmatprep.subr.mxu0 %v2309
    %3360 = vmatpush1.msra.mxu0 %v2308
    %3361 = vmatprep.subr.mxu0 %v2317
    %3362 = vmatpush1.msra.mxu0 %v2316
    %3363 = vmatprep.subr.mxu0 %v2325
    %3364 = vmatpush1.msra.mxu0 %v2324
    %3365 = vmatprep.subr.mxu0 %v2333
    %3366 = vmatpush1.msra.mxu0 %v2332
    %3367 = vmatprep.subr.mxu0 %v2341
    %3368 = vmatpush1.msra.mxu0 %v2340
    %3369 = vmatprep.subr.mxu0 %v2349
    %3370 = vmatpush1.msra.mxu0 %v2348
    %3371 = vmatprep.subr.mxu0 %v2357
    %3372 = vmatpush1.msra.mxu0 %v2356
    %3373 = vmatprep.subr.mxu0 %v2365
    %3374 = vmatpush1.msra.mxu0 %v2364
    %3375 = vmatprep.subr.mxu0 %v2373
    %3376 = vmatpush1.msra.mxu0 %v2372
    %3377 = vmatprep.subr.mxu0 %v2381
    %3378 = vmatpush1.msra.mxu0 %v2380
    %3379 = vmatprep.subr.mxu0 %v2389
    %3380 = vmatpush1.msra.mxu0 %v2388
    %3381 = vmatprep.subr.mxu0 %v2397
    %3382 = vmatpush1.msra.mxu0 %v2396
    %3383 = vmatprep.subr.mxu0 %v2405
    %3384 = vmatpush1.msra.mxu0 %v2404
    %3385 = vmatprep.subr.mxu0 %v2413
    %3386 = vmatpush1.msra.mxu0 %v2412
    %3387 = vmatprep.subr.mxu0 %v2421
    %3388 = vmatpush1.msra.mxu0 %v2420
    %3389 = vmatprep.subr.mxu0 %v2429
    %3390 = vmatpush1.msra.mxu0 %v2428
    %3391 = vmatprep.subr.mxu0 %v2437
    %3392 = vmatpush1.msra.mxu0 %v2436
    %3393 = vmatprep.subr.mxu0 %v2445
    %3394 = vmatpush1.msra.mxu0 %v2444
    %3395 = vmatprep.subr.mxu0 %v2453
    %3396 = vmatpush1.msra.mxu0 %v2452
    %3397 = vmatprep.subr.mxu0 %v2461
    %3398 = vmatpush1.msra.mxu0 %v2460
    %3399 = vmatprep.subr.mxu0 %v2469
    %3400 = vmatpush1.msra.mxu0 %v2468
    %3401 = vmatprep.subr.mxu0 %v2477
    %3402 = vmatpush1.msra.mxu0 %v2476
    %3403 = vmatprep.subr.mxu0 %v2485
    %3404 = vmatpush1.msra.mxu0 %v2484
    %3405 = vmatprep.subr.mxu0 %v2493
    %3406 = vmatpush1.msra.mxu0 %v2492
    %3407 = vmatprep.subr.mxu0 %v2501
    %3408 = vmatpush1.msra.mxu0 %v2500
    %3409 = vmatprep.subr.mxu0 %v2509
    %3410 = vmatpush1.msra.mxu0 %v2508
    %3411 = vmatprep.subr.mxu0 %v2517
    %3412 = vmatpush1.msra.mxu0 %v2516
    %3413 = vmatprep.subr.mxu0 %v2525
    %3414 = vmatpush1.msra.mxu0 %v2524
    %3415 = vmatprep.mubr.f32.mxu0 %v1503
    %3416 = vmatmul.mubr.f32.gmra.mrb[0].mxu0 %v1502
    %v3417 = vpop.f32.mrb[0].mxu0
    %v3418 = vadd.f32 %v3347, %v3417
    %v3419 = vpop.f32.mrb[0].mxu0
    %v3420 = vadd.f32 %v3349, %v3419
    %3421 = vdwg.mxu0
    %3422 = vmatprep.subr.mxu0 %v1511
    %3423 = vmatpush1.msra.mxu0 %v1510
    %3424 = vmatprep.subr.mxu0 %v1519
    %3425 = vmatpush1.msra.mxu0 %v1518
    %3426 = vmatprep.subr.mxu0 %v1527
    %3427 = vmatpush1.msra.mxu0 %v1526
    %3428 = vmatprep.subr.mxu0 %v1535
    %3429 = vmatpush1.msra.mxu0 %v1534
    %3430 = vmatprep.subr.mxu0 %v1543
    %3431 = vmatpush1.msra.mxu0 %v1542
    %3432 = vmatprep.subr.mxu0 %v1551
    %3433 = vmatpush1.msra.mxu0 %v1550
    %3434 = vmatprep.subr.mxu0 %v1559
    %3435 = vmatpush1.msra.mxu0 %v1558
    %3436 = vmatprep.subr.mxu0 %v1567
    %3437 = vmatpush1.msra.mxu0 %v1566
    %3438 = vmatprep.subr.mxu0 %v1575
    %3439 = vmatpush1.msra.mxu0 %v1574
    %3440 = vmatprep.subr.mxu0 %v1583
    %3441 = vmatpush1.msra.mxu0 %v1582
    %3442 = vmatprep.subr.mxu0 %v1591
    %3443 = vmatpush1.msra.mxu0 %v1590
    %3444 = vmatprep.subr.mxu0 %v1599
    %3445 = vmatpush1.msra.mxu0 %v1598
    %3446 = vmatprep.subr.mxu0 %v1607
    %3447 = vmatpush1.msra.mxu0 %v1606
    %3448 = vmatprep.subr.mxu0 %v1615
    %3449 = vmatpush1.msra.mxu0 %v1614
    %3450 = vmatprep.subr.mxu0 %v1623
    %3451 = vmatpush1.msra.mxu0 %v1622
    %3452 = vmatprep.subr.mxu0 %v1631
    %3453 = vmatpush1.msra.mxu0 %v1630
    %3454 = vmatprep.subr.mxu0 %v1639
    %3455 = vmatpush1.msra.mxu0 %v1638
    %3456 = vmatprep.subr.mxu0 %v1647
    %3457 = vmatpush1.msra.mxu0 %v1646
    %3458 = vmatprep.subr.mxu0 %v1655
    %3459 = vmatpush1.msra.mxu0 %v1654
    %3460 = vmatprep.subr.mxu0 %v1663
    %3461 = vmatpush1.msra.mxu0 %v1662
    %3462 = vmatprep.subr.mxu0 %v1671
    %3463 = vmatpush1.msra.mxu0 %v1670
    %3464 = vmatprep.subr.mxu0 %v1679
    %3465 = vmatpush1.msra.mxu0 %v1678
    %3466 = vmatprep.subr.mxu0 %v1687
    %3467 = vmatpush1.msra.mxu0 %v1686
    %3468 = vmatprep.subr.mxu0 %v1695
    %3469 = vmatpush1.msra.mxu0 %v1694
    %3470 = vmatprep.subr.mxu0 %v1703
    %3471 = vmatpush1.msra.mxu0 %v1702
    %3472 = vmatprep.subr.mxu0 %v1711
    %3473 = vmatpush1.msra.mxu0 %v1710
    %3474 = vmatprep.subr.mxu0 %v1719
    %3475 = vmatpush1.msra.mxu0 %v1718
    %3476 = vmatprep.subr.mxu0 %v1727
    %3477 = vmatpush1.msra.mxu0 %v1726
    %3478 = vmatprep.subr.mxu0 %v1735
    %3479 = vmatpush1.msra.mxu0 %v1734
    %3480 = vmatprep.subr.mxu0 %v1743
    %3481 = vmatpush1.msra.mxu0 %v1742
    %3482 = vmatprep.subr.mxu0 %v1751
    %3483 = vmatpush1.msra.mxu0 %v1750
    %3484 = vmatprep.subr.mxu0 %v1759
    %3485 = vmatpush1.msra.mxu0 %v1758
    %3486 = vmatprep.mubr.f32.mxu0 %v1497
    %3487 = vmatmul.mubr.f32.gmra.mrb[0].mxu0 %v1496
    %v3488 = vpop.f32.mrb[0].mxu0
    %v3489 = vadd.f32 %v2557, %v3488
    %v3490 = vpop.f32.mrb[0].mxu0
    %v3491 = vadd.f32 %v2561, %v3490
    %3492 = vdwg.mxu0
    %3493 = vmatprep.subr.mxu0 %v1767
    %3494 = vmatpush1.msra.mxu0 %v1766
    %3495 = vmatprep.subr.mxu0 %v1775
    %3496 = vmatpush1.msra.mxu0 %v1774
    %3497 = vmatprep.subr.mxu0 %v1783
    %3498 = vmatpush1.msra.mxu0 %v1782
    %3499 = vmatprep.subr.mxu0 %v1791
    %3500 = vmatpush1.msra.mxu0 %v1790
    %3501 = vmatprep.subr.mxu0 %v1799
    %3502 = vmatpush1.msra.mxu0 %v1798
    %3503 = vmatprep.subr.mxu0 %v1807
    %3504 = vmatpush1.msra.mxu0 %v1806
    %3505 = vmatprep.subr.mxu0 %v1815
    %3506 = vmatpush1.msra.mxu0 %v1814
    %3507 = vmatprep.subr.mxu0 %v1823
    %3508 = vmatpush1.msra.mxu0 %v1822
    %3509 = vmatprep.subr.mxu0 %v1831
    %3510 = vmatpush1.msra.mxu0 %v1830
    %3511 = vmatprep.subr.mxu0 %v1839
    %3512 = vmatpush1.msra.mxu0 %v1838
    %3513 = vmatprep.subr.mxu0 %v1847
    %3514 = vmatpush1.msra.mxu0 %v1846
    %3515 = vmatprep.subr.mxu0 %v1855
    %3516 = vmatpush1.msra.mxu0 %v1854
    %3517 = vmatprep.subr.mxu0 %v1863
    %3518 = vmatpush1.msra.mxu0 %v1862
    %3519 = vmatprep.subr.mxu0 %v1871
    %3520 = vmatpush1.msra.mxu0 %v1870
    %3521 = vmatprep.subr.mxu0 %v1879
    %3522 = vmatpush1.msra.mxu0 %v1878
    %3523 = vmatprep.subr.mxu0 %v1887
    %3524 = vmatpush1.msra.mxu0 %v1886
    %3525 = vmatprep.subr.mxu0 %v1895
    %3526 = vmatpush1.msra.mxu0 %v1894
    %3527 = vmatprep.subr.mxu0 %v1903
    %3528 = vmatpush1.msra.mxu0 %v1902
    %3529 = vmatprep.subr.mxu0 %v1911
    %3530 = vmatpush1.msra.mxu0 %v1910
    %3531 = vmatprep.subr.mxu0 %v1919
    %3532 = vmatpush1.msra.mxu0 %v1918
    %3533 = vmatprep.subr.mxu0 %v1927
    %3534 = vmatpush1.msra.mxu0 %v1926
    %3535 = vmatprep.subr.mxu0 %v1935
    %3536 = vmatpush1.msra.mxu0 %v1934
    %3537 = vmatprep.subr.mxu0 %v1943
    %3538 = vmatpush1.msra.mxu0 %v1942
    %3539 = vmatprep.subr.mxu0 %v1951
    %3540 = vmatpush1.msra.mxu0 %v1950
    %3541 = vmatprep.subr.mxu0 %v1959
    %3542 = vmatpush1.msra.mxu0 %v1958
    %3543 = vmatprep.subr.mxu0 %v1967
    %3544 = vmatpush1.msra.mxu0 %v1966
    %3545 = vmatprep.subr.mxu0 %v1975
    %3546 = vmatpush1.msra.mxu0 %v1974
    %3547 = vmatprep.subr.mxu0 %v1983
    %3548 = vmatpush1.msra.mxu0 %v1982
    %3549 = vmatprep.subr.mxu0 %v1991
    %3550 = vmatpush1.msra.mxu0 %v1990
    %3551 = vmatprep.subr.mxu0 %v1999
    %3552 = vmatpush1.msra.mxu0 %v1998
    %3553 = vmatprep.subr.mxu0 %v2007
    %3554 = vmatpush1.msra.mxu0 %v2006
    %3555 = vmatprep.subr.mxu0 %v2015
    %3556 = vmatpush1.msra.mxu0 %v2014
    %3557 = vmatprep.mubr.f32.mxu0 %v1499
    %3558 = vmatmul.mubr.f32.gmra.mrb[0].mxu0 %v1498
    %v3559 = vpop.f32.mrb[0].mxu0
    %v3560 = vadd.f32 %v3489, %v3559
    %v3561 = vpop.f32.mrb[0].mxu0
    %v3562 = vadd.f32 %v3491, %v3561
    %3563 = vdwg.mxu0
    %3564 = vmatprep.subr.mxu0 %v2023
    %3565 = vmatpush1.msra.mxu0 %v2022
    %3566 = vmatprep.subr.mxu0 %v2031
    %3567 = vmatpush1.msra.mxu0 %v2030
    %3568 = vmatprep.subr.mxu0 %v2039
    %3569 = vmatpush1.msra.mxu0 %v2038
    %3570 = vmatprep.subr.mxu0 %v2047
    %3571 = vmatpush1.msra.mxu0 %v2046
    %3572 = vmatprep.subr.mxu0 %v2055
    %3573 = vmatpush1.msra.mxu0 %v2054
    %3574 = vmatprep.subr.mxu0 %v2063
    %3575 = vmatpush1.msra.mxu0 %v2062
    %3576 = vmatprep.subr.mxu0 %v2071
    %3577 = vmatpush1.msra.mxu0 %v2070
    %3578 = vmatprep.subr.mxu0 %v2079
    %3579 = vmatpush1.msra.mxu0 %v2078
    %3580 = vmatprep.subr.mxu0 %v2087
    %3581 = vmatpush1.msra.mxu0 %v2086
    %3582 = vmatprep.subr.mxu0 %v2095
    %3583 = vmatpush1.msra.mxu0 %v2094
    %3584 = vmatprep.subr.mxu0 %v2103
    %3585 = vmatpush1.msra.mxu0 %v2102
    %3586 = vmatprep.subr.mxu0 %v2111
    %3587 = vmatpush1.msra.mxu0 %v2110
    %3588 = vmatprep.subr.mxu0 %v2119
    %3589 = vmatpush1.msra.mxu0 %v2118
    %3590 = vmatprep.subr.mxu0 %v2127
    %3591 = vmatpush1.msra.mxu0 %v2126
    %3592 = vmatprep.subr.mxu0 %v2135
    %3593 = vmatpush1.msra.mxu0 %v2134
    %3594 = vmatprep.subr.mxu0 %v2143
    %3595 = vmatpush1.msra.mxu0 %v2142
    %3596 = vmatprep.subr.mxu0 %v2151
    %3597 = vmatpush1.msra.mxu0 %v2150
    %3598 = vmatprep.subr.mxu0 %v2159
    %3599 = vmatpush1.msra.mxu0 %v2158
    %3600 = vmatprep.subr.mxu0 %v2167
    %3601 = vmatpush1.msra.mxu0 %v2166
    %3602 = vmatprep.subr.mxu0 %v2175
    %3603 = vmatpush1.msra.mxu0 %v2174
    %3604 = vmatprep.subr.mxu0 %v2183
    %3605 = vmatpush1.msra.mxu0 %v2182
    %3606 = vmatprep.subr.mxu0 %v2191
    %3607 = vmatpush1.msra.mxu0 %v2190
    %3608 = vmatprep.subr.mxu0 %v2199
    %3609 = vmatpush1.msra.mxu0 %v2198
    %3610 = vmatprep.subr.mxu0 %v2207
    %3611 = vmatpush1.msra.mxu0 %v2206
    %3612 = vmatprep.subr.mxu0 %v2215
    %3613 = vmatpush1.msra.mxu0 %v2214
    %3614 = vmatprep.subr.mxu0 %v2223
    %3615 = vmatpush1.msra.mxu0 %v2222
    %3616 = vmatprep.subr.mxu0 %v2231
    %3617 = vmatpush1.msra.mxu0 %v2230
    %3618 = vmatprep.subr.mxu0 %v2239
    %3619 = vmatpush1.msra.mxu0 %v2238
    %3620 = vmatprep.subr.mxu0 %v2247
    %3621 = vmatpush1.msra.mxu0 %v2246
    %3622 = vmatprep.subr.mxu0 %v2255
    %3623 = vmatpush1.msra.mxu0 %v2254
    %3624 = vmatprep.subr.mxu0 %v2263
    %3625 = vmatpush1.msra.mxu0 %v2262
    %3626 = vmatprep.subr.mxu0 %v2271
    %3627 = vmatpush1.msra.mxu0 %v2270
    %3628 = vmatprep.mubr.f32.mxu0 %v1501
    %3629 = vmatmul.mubr.f32.gmra.mrb[0].mxu0 %v1500
    %v3630 = vpop.f32.mrb[0].mxu0
    %v3631 = vadd.f32 %v3560, %v3630
    %v3632 = vpop.f32.mrb[0].mxu0
    %v3633 = vadd.f32 %v3562, %v3632
    %3634 = vdwg.mxu0
    %3635 = vmatprep.subr.mxu0 %v2279
    %3636 = vmatpush1.msra.mxu0 %v2278
    %3637 = vmatprep.subr.mxu0 %v2287
    %3638 = vmatpush1.msra.mxu0 %v2286
    %3639 = vmatprep.subr.mxu0 %v2295
    %3640 = vmatpush1.msra.mxu0 %v2294
    %3641 = vmatprep.subr.mxu0 %v2303
    %3642 = vmatpush1.msra.mxu0 %v2302
    %3643 = vmatprep.subr.mxu0 %v2311
    %3644 = vmatpush1.msra.mxu0 %v2310
    %3645 = vmatprep.subr.mxu0 %v2319
    %3646 = vmatpush1.msra.mxu0 %v2318
    %3647 = vmatprep.subr.mxu0 %v2327
    %3648 = vmatpush1.msra.mxu0 %v2326
    %3649 = vmatprep.subr.mxu0 %v2335
    %3650 = vmatpush1.msra.mxu0 %v2334
    %3651 = vmatprep.subr.mxu0 %v2343
    %3652 = vmatpush1.msra.mxu0 %v2342
    %3653 = vmatprep.subr.mxu0 %v2351
    %3654 = vmatpush1.msra.mxu0 %v2350
    %3655 = vmatprep.subr.mxu0 %v2359
    %3656 = vmatpush1.msra.mxu0 %v2358
    %3657 = vmatprep.subr.mxu0 %v2367
    %3658 = vmatpush1.msra.mxu0 %v2366
    %3659 = vmatprep.subr.mxu0 %v2375
    %3660 = vmatpush1.msra.mxu0 %v2374
    %3661 = vmatprep.subr.mxu0 %v2383
    %3662 = vmatpush1.msra.mxu0 %v2382
    %3663 = vmatprep.subr.mxu0 %v2391
    %3664 = vmatpush1.msra.mxu0 %v2390
    %3665 = vmatprep.subr.mxu0 %v2399
    %3666 = vmatpush1.msra.mxu0 %v2398
    %3667 = vmatprep.subr.mxu0 %v2407
    %3668 = vmatpush1.msra.mxu0 %v2406
    %3669 = vmatprep.subr.mxu0 %v2415
    %3670 = vmatpush1.msra.mxu0 %v2414
    %3671 = vmatprep.subr.mxu0 %v2423
    %3672 = vmatpush1.msra.mxu0 %v2422
    %3673 = vmatprep.subr.mxu0 %v2431
    %3674 = vmatpush1.msra.mxu0 %v2430
    %3675 = vmatprep.subr.mxu0 %v2439
    %3676 = vmatpush1.msra.mxu0 %v2438
    %3677 = vmatprep.subr.mxu0 %v2447
    %3678 = vmatpush1.msra.mxu0 %v2446
    %3679 = vmatprep.subr.mxu0 %v2455
    %3680 = vmatpush1.msra.mxu0 %v2454
    %3681 = vmatprep.subr.mxu0 %v2463
    %3682 = vmatpush1.msra.mxu0 %v2462
    %3683 = vmatprep.subr.mxu0 %v2471
    %3684 = vmatpush1.msra.mxu0 %v2470
    %3685 = vmatprep.subr.mxu0 %v2479
    %3686 = vmatpush1.msra.mxu0 %v2478
    %3687 = vmatprep.subr.mxu0 %v2487
    %3688 = vmatpush1.msra.mxu0 %v2486
    %3689 = vmatprep.subr.mxu0 %v2495
    %3690 = vmatpush1.msra.mxu0 %v2494
    %3691 = vmatprep.subr.mxu0 %v2503
    %3692 = vmatpush1.msra.mxu0 %v2502
    %3693 = vmatprep.subr.mxu0 %v2511
    %3694 = vmatpush1.msra.mxu0 %v2510
    %3695 = vmatprep.subr.mxu0 %v2519
    %3696 = vmatpush1.msra.mxu0 %v2518
    %3697 = vmatprep.subr.mxu0 %v2527
    %3698 = vmatpush1.msra.mxu0 %v2526
    %3699 = vmatprep.mubr.f32.mxu0 %v1503
    %3700 = vmatmul.mubr.f32.gmra.mrb[0].mxu0 %v1502
    %v3701 = vpop.f32.mrb[0].mxu0
    %v3702 = vadd.f32 %v3631, %v3701
    %v3703 = vpop.f32.mrb[0].mxu0
    %v3704 = vadd.f32 %v3633, %v3703
    %3705 = vdwg.mxu0
    %v3706 = vld [vmem:[#allocation14] sm:$0xff]
    %v3707 = vld [vmem:[#allocation14 + $0x8] sm:$0xff]
    %v3708 = vld [vmem:[#allocation14 + $0x10] sm:$0xff]
    %v3709 = vld [vmem:[#allocation14 + $0x18] sm:$0xff]
    %v3710 = vld [vmem:[#allocation14 + $0x20] sm:$0xff]
    %v3711 = vld [vmem:[#allocation14 + $0x28] sm:$0xff]
    %v3712 = vld [vmem:[#allocation14 + $0x30] sm:$0xff]
    %v3713 = vld [vmem:[#allocation14 + $0x38] sm:$0xff]
    %v3714 = vld [vmem:[#allocation14 + $0x40] sm:$0xff]
    %v3715 = vld [vmem:[#allocation14 + $0x48] sm:$0xff]
    %v3716 = vld [vmem:[#allocation14 + $0x50] sm:$0xff]
    %v3717 = vld [vmem:[#allocation14 + $0x58] sm:$0xff]
    %v3718 = vld [vmem:[#allocation14 + $0x60] sm:$0xff]
    %v3719 = vld [vmem:[#allocation14 + $0x68] sm:$0xff]
    %v3720 = vld [vmem:[#allocation14 + $0x70] sm:$0xff]
    %v3721 = vld [vmem:[#allocation14 + $0x78] sm:$0xff]
    %v3722 = vld [vmem:[#allocation14 + $0x80] sm:$0xff]
    %v3723 = vld [vmem:[#allocation14 + $0x88] sm:$0xff]
    %v3724 = vld [vmem:[#allocation14 + $0x90] sm:$0xff]
    %v3725 = vld [vmem:[#allocation14 + $0x98] sm:$0xff]
    %v3726 = vld [vmem:[#allocation14 + $0xa0] sm:$0xff]
    %v3727 = vld [vmem:[#allocation14 + $0xa8] sm:$0xff]
    %v3728 = vld [vmem:[#allocation14 + $0xb0] sm:$0xff]
    %v3729 = vld [vmem:[#allocation14 + $0xb8] sm:$0xff]
    %v3730 = vld [vmem:[#allocation14 + $0xc0] sm:$0xff]
    %v3731 = vld [vmem:[#allocation14 + $0xc8] sm:$0xff]
    %v3732 = vld [vmem:[#allocation14 + $0xd0] sm:$0xff]
    %v3733 = vld [vmem:[#allocation14 + $0xd8] sm:$0xff]
    %v3734 = vld [vmem:[#allocation14 + $0xe0] sm:$0xff]
    %v3735 = vld [vmem:[#allocation14 + $0xe8] sm:$0xff]
    %v3736 = vld [vmem:[#allocation14 + $0xf0] sm:$0xff]
    %v3737 = vld [vmem:[#allocation14 + $0xf8] sm:$0xff]
    %v3738 = vld [vmem:[#allocation14 + $0x100] sm:$0xff]
    %v3739 = vld [vmem:[#allocation14 + $0x108] sm:$0xff]
    %v3740 = vld [vmem:[#allocation14 + $0x110] sm:$0xff]
    %v3741 = vld [vmem:[#allocation14 + $0x118] sm:$0xff]
    %v3742 = vld [vmem:[#allocation14 + $0x120] sm:$0xff]
    %v3743 = vld [vmem:[#allocation14 + $0x128] sm:$0xff]
    %v3744 = vld [vmem:[#allocation14 + $0x130] sm:$0xff]
    %v3745 = vld [vmem:[#allocation14 + $0x138] sm:$0xff]
    %v3746 = vld [vmem:[#allocation14 + $0x140] sm:$0xff]
    %v3747 = vld [vmem:[#allocation14 + $0x148] sm:$0xff]
    %v3748 = vld [vmem:[#allocation14 + $0x150] sm:$0xff]
    %v3749 = vld [vmem:[#allocation14 + $0x158] sm:$0xff]
    %v3750 = vld [vmem:[#allocation14 + $0x160] sm:$0xff]
    %v3751 = vld [vmem:[#allocation14 + $0x168] sm:$0xff]
    %v3752 = vld [vmem:[#allocation14 + $0x170] sm:$0xff]
    %v3753 = vld [vmem:[#allocation14 + $0x178] sm:$0xff]
    %v3754 = vld [vmem:[#allocation14 + $0x180] sm:$0xff]
    %v3755 = vld [vmem:[#allocation14 + $0x188] sm:$0xff]
    %v3756 = vld [vmem:[#allocation14 + $0x190] sm:$0xff]
    %v3757 = vld [vmem:[#allocation14 + $0x198] sm:$0xff]
    %v3758 = vld [vmem:[#allocation14 + $0x1a0] sm:$0xff]
    %v3759 = vld [vmem:[#allocation14 + $0x1a8] sm:$0xff]
    %v3760 = vld [vmem:[#allocation14 + $0x1b0] sm:$0xff]
    %v3761 = vld [vmem:[#allocation14 + $0x1b8] sm:$0xff]
    %v3762 = vld [vmem:[#allocation14 + $0x1c0] sm:$0xff]
    %v3763 = vld [vmem:[#allocation14 + $0x1c8] sm:$0xff]
    %v3764 = vld [vmem:[#allocation14 + $0x1d0] sm:$0xff]
    %v3765 = vld [vmem:[#allocation14 + $0x1d8] sm:$0xff]
    %v3766 = vld [vmem:[#allocation14 + $0x1e0] sm:$0xff]
    %v3767 = vld [vmem:[#allocation14 + $0x1e8] sm:$0xff]
    %v3768 = vld [vmem:[#allocation14 + $0x1f0] sm:$0xff]
    %v3769 = vld [vmem:[#allocation14 + $0x1f8] sm:$0xff]
    %v3770 = vld [vmem:[#allocation14 + $0x200] sm:$0xff]
    %v3771 = vld [vmem:[#allocation14 + $0x208] sm:$0xff]
    %v3772 = vld [vmem:[#allocation14 + $0x210] sm:$0xff]
    %v3773 = vld [vmem:[#allocation14 + $0x218] sm:$0xff]
    %v3774 = vld [vmem:[#allocation14 + $0x220] sm:$0xff]
    %v3775 = vld [vmem:[#allocation14 + $0x228] sm:$0xff]
    %v3776 = vld [vmem:[#allocation14 + $0x230] sm:$0xff]
    %v3777 = vld [vmem:[#allocation14 + $0x238] sm:$0xff]
    %v3778 = vld [vmem:[#allocation14 + $0x240] sm:$0xff]
    %v3779 = vld [vmem:[#allocation14 + $0x248] sm:$0xff]
    %v3780 = vld [vmem:[#allocation14 + $0x250] sm:$0xff]
    %v3781 = vld [vmem:[#allocation14 + $0x258] sm:$0xff]
    %v3782 = vld [vmem:[#allocation14 + $0x260] sm:$0xff]
    %v3783 = vld [vmem:[#allocation14 + $0x268] sm:$0xff]
    %v3784 = vld [vmem:[#allocation14 + $0x270] sm:$0xff]
    %v3785 = vld [vmem:[#allocation14 + $0x278] sm:$0xff]
    %v3786 = vld [vmem:[#allocation14 + $0x280] sm:$0xff]
    %v3787 = vld [vmem:[#allocation14 + $0x288] sm:$0xff]
    %v3788 = vld [vmem:[#allocation14 + $0x290] sm:$0xff]
    %v3789 = vld [vmem:[#allocation14 + $0x298] sm:$0xff]
    %v3790 = vld [vmem:[#allocation14 + $0x2a0] sm:$0xff]
    %v3791 = vld [vmem:[#allocation14 + $0x2a8] sm:$0xff]
    %v3792 = vld [vmem:[#allocation14 + $0x2b0] sm:$0xff]
    %v3793 = vld [vmem:[#allocation14 + $0x2b8] sm:$0xff]
    %v3794 = vld [vmem:[#allocation14 + $0x2c0] sm:$0xff]
    %v3795 = vld [vmem:[#allocation14 + $0x2c8] sm:$0xff]
    %v3796 = vld [vmem:[#allocation14 + $0x2d0] sm:$0xff]
    %v3797 = vld [vmem:[#allocation14 + $0x2d8] sm:$0xff]
    %v3798 = vld [vmem:[#allocation14 + $0x2e0] sm:$0xff]
    %v3799 = vld [vmem:[#allocation14 + $0x2e8] sm:$0xff]
    %v3800 = vld [vmem:[#allocation14 + $0x2f0] sm:$0xff]
    %v3801 = vld [vmem:[#allocation14 + $0x2f8] sm:$0xff]
    %v3802 = vld [vmem:[#allocation14 + $0x300] sm:$0xff]
    %v3803 = vld [vmem:[#allocation14 + $0x308] sm:$0xff]
    %v3804 = vld [vmem:[#allocation14 + $0x310] sm:$0xff]
    %v3805 = vld [vmem:[#allocation14 + $0x318] sm:$0xff]
    %v3806 = vld [vmem:[#allocation14 + $0x320] sm:$0xff]
    %v3807 = vld [vmem:[#allocation14 + $0x328] sm:$0xff]
    %v3808 = vld [vmem:[#allocation14 + $0x330] sm:$0xff]
    %v3809 = vld [vmem:[#allocation14 + $0x338] sm:$0xff]
    %v3810 = vld [vmem:[#allocation14 + $0x340] sm:$0xff]
    %v3811 = vld [vmem:[#allocation14 + $0x348] sm:$0xff]
    %v3812 = vld [vmem:[#allocation14 + $0x350] sm:$0xff]
    %v3813 = vld [vmem:[#allocation14 + $0x358] sm:$0xff]
    %v3814 = vld [vmem:[#allocation14 + $0x360] sm:$0xff]
    %v3815 = vld [vmem:[#allocation14 + $0x368] sm:$0xff]
    %v3816 = vld [vmem:[#allocation14 + $0x370] sm:$0xff]
    %v3817 = vld [vmem:[#allocation14 + $0x378] sm:$0xff]
    %v3818 = vld [vmem:[#allocation14 + $0x380] sm:$0xff]
    %v3819 = vld [vmem:[#allocation14 + $0x388] sm:$0xff]
    %v3820 = vld [vmem:[#allocation14 + $0x390] sm:$0xff]
    %v3821 = vld [vmem:[#allocation14 + $0x398] sm:$0xff]
    %v3822 = vld [vmem:[#allocation14 + $0x3a0] sm:$0xff]
    %v3823 = vld [vmem:[#allocation14 + $0x3a8] sm:$0xff]
    %v3824 = vld [vmem:[#allocation14 + $0x3b0] sm:$0xff]
    %v3825 = vld [vmem:[#allocation14 + $0x3b8] sm:$0xff]
    %v3826 = vld [vmem:[#allocation14 + $0x3c0] sm:$0xff]
    %v3827 = vld [vmem:[#allocation14 + $0x3c8] sm:$0xff]
    %v3828 = vld [vmem:[#allocation14 + $0x3d0] sm:$0xff]
    %v3829 = vld [vmem:[#allocation14 + $0x3d8] sm:$0xff]
    %v3830 = vld [vmem:[#allocation14 + $0x3e0] sm:$0xff]
    %v3831 = vld [vmem:[#allocation14 + $0x3e8] sm:$0xff]
    %v3832 = vld [vmem:[#allocation14 + $0x3f0] sm:$0xff]
    %v3833 = vld [vmem:[#allocation14 + $0x3f8] sm:$0xff]
    %v3834 = vld [vmem:[#allocation16] sm:$0x1]
    %v3836 = vlaneseq
    %v3837 = vshrl.u32 %v3836, 7
    %v3838 = vsub.s32 0, %v3837
    %v3839 = vrot.slane %v3834, %v3838
    %3841 = vmatprep.subr.mxu0 0.0
    %3842 = vmatpush1.msra.mxu0 %v3706
    %3843 = vmatprep.subr.mxu0 0.0
    %3844 = vmatpush1.msra.mxu0 %v3707
    %3845 = vmatprep.subr.mxu0 0.0
    %3846 = vmatpush1.msra.mxu0 %v3708
    %3847 = vmatprep.subr.mxu0 0.0
    %3848 = vmatpush1.msra.mxu0 %v3709
    %3849 = vmatprep.subr.mxu0 0.0
    %3850 = vmatpush1.msra.mxu0 %v3710
    %3851 = vmatprep.subr.mxu0 0.0
    %3852 = vmatpush1.msra.mxu0 %v3711
    %3853 = vmatprep.subr.mxu0 0.0
    %3854 = vmatpush1.msra.mxu0 %v3712
    %3855 = vmatprep.subr.mxu0 0.0
    %3856 = vmatpush1.msra.mxu0 %v3713
    %3857 = vmatprep.subr.mxu0 0.0
    %3858 = vmatpush1.msra.mxu0 %v3714
    %3859 = vmatprep.subr.mxu0 0.0
    %3860 = vmatpush1.msra.mxu0 %v3715
    %3861 = vmatprep.subr.mxu0 0.0
    %3862 = vmatpush1.msra.mxu0 %v3716
    %3863 = vmatprep.subr.mxu0 0.0
    %3864 = vmatpush1.msra.mxu0 %v3717
    %3865 = vmatprep.subr.mxu0 0.0
    %3866 = vmatpush1.msra.mxu0 %v3718
    %3867 = vmatprep.subr.mxu0 0.0
    %3868 = vmatpush1.msra.mxu0 %v3719
    %3869 = vmatprep.subr.mxu0 0.0
    %3870 = vmatpush1.msra.mxu0 %v3720
    %3871 = vmatprep.subr.mxu0 0.0
    %3872 = vmatpush1.msra.mxu0 %v3721
    %3873 = vmatprep.subr.mxu0 0.0
    %3874 = vmatpush1.msra.mxu0 %v3722
    %3875 = vmatprep.subr.mxu0 0.0
    %3876 = vmatpush1.msra.mxu0 %v3723
    %3877 = vmatprep.subr.mxu0 0.0
    %3878 = vmatpush1.msra.mxu0 %v3724
    %3879 = vmatprep.subr.mxu0 0.0
    %3880 = vmatpush1.msra.mxu0 %v3725
    %3881 = vmatprep.subr.mxu0 0.0
    %3882 = vmatpush1.msra.mxu0 %v3726
    %3883 = vmatprep.subr.mxu0 0.0
    %3884 = vmatpush1.msra.mxu0 %v3727
    %3885 = vmatprep.subr.mxu0 0.0
    %3886 = vmatpush1.msra.mxu0 %v3728
    %3887 = vmatprep.subr.mxu0 0.0
    %3888 = vmatpush1.msra.mxu0 %v3729
    %3889 = vmatprep.subr.mxu0 0.0
    %3890 = vmatpush1.msra.mxu0 %v3730
    %3891 = vmatprep.subr.mxu0 0.0
    %3892 = vmatpush1.msra.mxu0 %v3731
    %3893 = vmatprep.subr.mxu0 0.0
    %3894 = vmatpush1.msra.mxu0 %v3732
    %3895 = vmatprep.subr.mxu0 0.0
    %3896 = vmatpush1.msra.mxu0 %v3733
    %3897 = vmatprep.subr.mxu0 0.0
    %3898 = vmatpush1.msra.mxu0 %v3734
    %3899 = vmatprep.subr.mxu0 0.0
    %3900 = vmatpush1.msra.mxu0 %v3735
    %3901 = vmatprep.subr.mxu0 0.0
    %3902 = vmatpush1.msra.mxu0 %v3736
    %3903 = vmatprep.subr.mxu0 0.0
    %3904 = vmatpush1.msra.mxu0 %v3737
    %3905 = vmatprep.mubr.f32.mxu0 %v2852
    %3906 = vmatmul.mubr.f32.gmra.mrb[0].mxu0 %v2850
    %v3907 = vpop.f32.mrb[0].mxu0
    %v3908 = vadd.f32 %v3839, %v3907
    %v3909 = vpop.f32.mrb[0].mxu0
    %3910 = vdwg.mxu0
    %3911 = vmatprep.subr.mxu0 0.0
    %3912 = vmatpush1.msra.mxu0 %v3738
    %3913 = vmatprep.subr.mxu0 0.0
    %3914 = vmatpush1.msra.mxu0 %v3739
    %3915 = vmatprep.subr.mxu0 0.0
    %3916 = vmatpush1.msra.mxu0 %v3740
    %3917 = vmatprep.subr.mxu0 0.0
    %3918 = vmatpush1.msra.mxu0 %v3741
    %3919 = vmatprep.subr.mxu0 0.0
    %3920 = vmatpush1.msra.mxu0 %v3742
    %3921 = vmatprep.subr.mxu0 0.0
    %3922 = vmatpush1.msra.mxu0 %v3743
    %3923 = vmatprep.subr.mxu0 0.0
    %3924 = vmatpush1.msra.mxu0 %v3744
    %3925 = vmatprep.subr.mxu0 0.0
    %3926 = vmatpush1.msra.mxu0 %v3745
    %3927 = vmatprep.subr.mxu0 0.0
    %3928 = vmatpush1.msra.mxu0 %v3746
    %3929 = vmatprep.subr.mxu0 0.0
    %3930 = vmatpush1.msra.mxu0 %v3747
    %3931 = vmatprep.subr.mxu0 0.0
    %3932 = vmatpush1.msra.mxu0 %v3748
    %3933 = vmatprep.subr.mxu0 0.0
    %3934 = vmatpush1.msra.mxu0 %v3749
    %3935 = vmatprep.subr.mxu0 0.0
    %3936 = vmatpush1.msra.mxu0 %v3750
    %3937 = vmatprep.subr.mxu0 0.0
    %3938 = vmatpush1.msra.mxu0 %v3751
    %3939 = vmatprep.subr.mxu0 0.0
    %3940 = vmatpush1.msra.mxu0 %v3752
    %3941 = vmatprep.subr.mxu0 0.0
    %3942 = vmatpush1.msra.mxu0 %v3753
    %3943 = vmatprep.subr.mxu0 0.0
    %3944 = vmatpush1.msra.mxu0 %v3754
    %3945 = vmatprep.subr.mxu0 0.0
    %3946 = vmatpush1.msra.mxu0 %v3755
    %3947 = vmatprep.subr.mxu0 0.0
    %3948 = vmatpush1.msra.mxu0 %v3756
    %3949 = vmatprep.subr.mxu0 0.0
    %3950 = vmatpush1.msra.mxu0 %v3757
    %3951 = vmatprep.subr.mxu0 0.0
    %3952 = vmatpush1.msra.mxu0 %v3758
    %3953 = vmatprep.subr.mxu0 0.0
    %3954 = vmatpush1.msra.mxu0 %v3759
    %3955 = vmatprep.subr.mxu0 0.0
    %3956 = vmatpush1.msra.mxu0 %v3760
    %3957 = vmatprep.subr.mxu0 0.0
    %3958 = vmatpush1.msra.mxu0 %v3761
    %3959 = vmatprep.subr.mxu0 0.0
    %3960 = vmatpush1.msra.mxu0 %v3762
    %3961 = vmatprep.subr.mxu0 0.0
    %3962 = vmatpush1.msra.mxu0 %v3763
    %3963 = vmatprep.subr.mxu0 0.0
    %3964 = vmatpush1.msra.mxu0 %v3764
    %3965 = vmatprep.subr.mxu0 0.0
    %3966 = vmatpush1.msra.mxu0 %v3765
    %3967 = vmatprep.subr.mxu0 0.0
    %3968 = vmatpush1.msra.mxu0 %v3766
    %3969 = vmatprep.subr.mxu0 0.0
    %3970 = vmatpush1.msra.mxu0 %v3767
    %3971 = vmatprep.subr.mxu0 0.0
    %3972 = vmatpush1.msra.mxu0 %v3768
    %3973 = vmatprep.subr.mxu0 0.0
    %3974 = vmatpush1.msra.mxu0 %v3769
    %3975 = vmatprep.mubr.f32.mxu0 %v3136
    %3976 = vmatmul.mubr.f32.gmra.mrb[0].mxu0 %v3134
    %v3977 = vpop.f32.mrb[0].mxu0
    %v3978 = vadd.f32 %v3908, %v3977
    %v3979 = vpop.f32.mrb[0].mxu0
    %3980 = vdwg.mxu0
    %3981 = vmatprep.subr.mxu0 0.0
    %3982 = vmatpush1.msra.mxu0 %v3770
    %3983 = vmatprep.subr.mxu0 0.0
    %3984 = vmatpush1.msra.mxu0 %v3771
    %3985 = vmatprep.subr.mxu0 0.0
    %3986 = vmatpush1.msra.mxu0 %v3772
    %3987 = vmatprep.subr.mxu0 0.0
    %3988 = vmatpush1.msra.mxu0 %v3773
    %3989 = vmatprep.subr.mxu0 0.0
    %3990 = vmatpush1.msra.mxu0 %v3774
    %3991 = vmatprep.subr.mxu0 0.0
    %3992 = vmatpush1.msra.mxu0 %v3775
    %3993 = vmatprep.subr.mxu0 0.0
    %3994 = vmatpush1.msra.mxu0 %v3776
    %3995 = vmatprep.subr.mxu0 0.0
    %3996 = vmatpush1.msra.mxu0 %v3777
    %3997 = vmatprep.subr.mxu0 0.0
    %3998 = vmatpush1.msra.mxu0 %v3778
    %3999 = vmatprep.subr.mxu0 0.0
    %4000 = vmatpush1.msra.mxu0 %v3779
    %4001 = vmatprep.subr.mxu0 0.0
    %4002 = vmatpush1.msra.mxu0 %v3780
    %4003 = vmatprep.subr.mxu0 0.0
    %4004 = vmatpush1.msra.mxu0 %v3781
    %4005 = vmatprep.subr.mxu0 0.0
    %4006 = vmatpush1.msra.mxu0 %v3782
    %4007 = vmatprep.subr.mxu0 0.0
    %4008 = vmatpush1.msra.mxu0 %v3783
    %4009 = vmatprep.subr.mxu0 0.0
    %4010 = vmatpush1.msra.mxu0 %v3784
    %4011 = vmatprep.subr.mxu0 0.0
    %4012 = vmatpush1.msra.mxu0 %v3785
    %4013 = vmatprep.subr.mxu0 0.0
    %4014 = vmatpush1.msra.mxu0 %v3786
    %4015 = vmatprep.subr.mxu0 0.0
    %4016 = vmatpush1.msra.mxu0 %v3787
    %4017 = vmatprep.subr.mxu0 0.0
    %4018 = vmatpush1.msra.mxu0 %v3788
    %4019 = vmatprep.subr.mxu0 0.0
    %4020 = vmatpush1.msra.mxu0 %v3789
    %4021 = vmatprep.subr.mxu0 0.0
    %4022 = vmatpush1.msra.mxu0 %v3790
    %4023 = vmatprep.subr.mxu0 0.0
    %4024 = vmatpush1.msra.mxu0 %v3791
    %4025 = vmatprep.subr.mxu0 0.0
    %4026 = vmatpush1.msra.mxu0 %v3792
    %4027 = vmatprep.subr.mxu0 0.0
    %4028 = vmatpush1.msra.mxu0 %v3793
    %4029 = vmatprep.subr.mxu0 0.0
    %4030 = vmatpush1.msra.mxu0 %v3794
    %4031 = vmatprep.subr.mxu0 0.0
    %4032 = vmatpush1.msra.mxu0 %v3795
    %4033 = vmatprep.subr.mxu0 0.0
    %4034 = vmatpush1.msra.mxu0 %v3796
    %4035 = vmatprep.subr.mxu0 0.0
    %4036 = vmatpush1.msra.mxu0 %v3797
    %4037 = vmatprep.subr.mxu0 0.0
    %4038 = vmatpush1.msra.mxu0 %v3798
    %4039 = vmatprep.subr.mxu0 0.0
    %4040 = vmatpush1.msra.mxu0 %v3799
    %4041 = vmatprep.subr.mxu0 0.0
    %4042 = vmatpush1.msra.mxu0 %v3800
    %4043 = vmatprep.subr.mxu0 0.0
    %4044 = vmatpush1.msra.mxu0 %v3801
    %4045 = vmatprep.mubr.f32.mxu0 %v3420
    %4046 = vmatmul.mubr.f32.gmra.mrb[0].mxu0 %v3418
    %v4047 = vpop.f32.mrb[0].mxu0
    %v4048 = vadd.f32 %v3978, %v4047
    %v4049 = vpop.f32.mrb[0].mxu0
    %4050 = vdwg.mxu0
    %4051 = vmatprep.subr.mxu0 0.0
    %4052 = vmatpush1.msra.mxu0 %v3802
    %4053 = vmatprep.subr.mxu0 0.0
    %4054 = vmatpush1.msra.mxu0 %v3803
    %4055 = vmatprep.subr.mxu0 0.0
    %4056 = vmatpush1.msra.mxu0 %v3804
    %4057 = vmatprep.subr.mxu0 0.0
    %4058 = vmatpush1.msra.mxu0 %v3805
    %4059 = vmatprep.subr.mxu0 0.0
    %4060 = vmatpush1.msra.mxu0 %v3806
    %4061 = vmatprep.subr.mxu0 0.0
    %4062 = vmatpush1.msra.mxu0 %v3807
    %4063 = vmatprep.subr.mxu0 0.0
    %4064 = vmatpush1.msra.mxu0 %v3808
    %4065 = vmatprep.subr.mxu0 0.0
    %4066 = vmatpush1.msra.mxu0 %v3809
    %4067 = vmatprep.subr.mxu0 0.0
    %4068 = vmatpush1.msra.mxu0 %v3810
    %4069 = vmatprep.subr.mxu0 0.0
    %4070 = vmatpush1.msra.mxu0 %v3811
    %4071 = vmatprep.subr.mxu0 0.0
    %4072 = vmatpush1.msra.mxu0 %v3812
    %4073 = vmatprep.subr.mxu0 0.0
    %4074 = vmatpush1.msra.mxu0 %v3813
    %4075 = vmatprep.subr.mxu0 0.0
    %4076 = vmatpush1.msra.mxu0 %v3814
    %4077 = vmatprep.subr.mxu0 0.0
    %4078 = vmatpush1.msra.mxu0 %v3815
    %4079 = vmatprep.subr.mxu0 0.0
    %4080 = vmatpush1.msra.mxu0 %v3816
    %4081 = vmatprep.subr.mxu0 0.0
    %4082 = vmatpush1.msra.mxu0 %v3817
    %4083 = vmatprep.subr.mxu0 0.0
    %4084 = vmatpush1.msra.mxu0 %v3818
    %4085 = vmatprep.subr.mxu0 0.0
    %4086 = vmatpush1.msra.mxu0 %v3819
    %4087 = vmatprep.subr.mxu0 0.0
    %4088 = vmatpush1.msra.mxu0 %v3820
    %4089 = vmatprep.subr.mxu0 0.0
    %4090 = vmatpush1.msra.mxu0 %v3821
    %4091 = vmatprep.subr.mxu0 0.0
    %4092 = vmatpush1.msra.mxu0 %v3822
    %4093 = vmatprep.subr.mxu0 0.0
    %4094 = vmatpush1.msra.mxu0 %v3823
    %4095 = vmatprep.subr.mxu0 0.0
    %4096 = vmatpush1.msra.mxu0 %v3824
    %4097 = vmatprep.subr.mxu0 0.0
    %4098 = vmatpush1.msra.mxu0 %v3825
    %4099 = vmatprep.subr.mxu0 0.0
    %4100 = vmatpush1.msra.mxu0 %v3826
    %4101 = vmatprep.subr.mxu0 0.0
    %4102 = vmatpush1.msra.mxu0 %v3827
    %4103 = vmatprep.subr.mxu0 0.0
    %4104 = vmatpush1.msra.mxu0 %v3828
    %4105 = vmatprep.subr.mxu0 0.0
    %4106 = vmatpush1.msra.mxu0 %v3829
    %4107 = vmatprep.subr.mxu0 0.0
    %4108 = vmatpush1.msra.mxu0 %v3830
    %4109 = vmatprep.subr.mxu0 0.0
    %4110 = vmatpush1.msra.mxu0 %v3831
    %4111 = vmatprep.subr.mxu0 0.0
    %4112 = vmatpush1.msra.mxu0 %v3832
    %4113 = vmatprep.subr.mxu0 0.0
    %4114 = vmatpush1.msra.mxu0 %v3833
    %4115 = vmatprep.mubr.f32.mxu0 %v3704
    %4116 = vmatmul.mubr.f32.gmra.mrb[0].mxu0 %v3702
    %v4117 = vpop.f32.mrb[0].mxu0
    %v4118 = vadd.f32 %v4048, %v4117
    %v4119 = vpop.f32.mrb[0].mxu0
    %4120 = vdwg.mxu0
    %4121 = vst [vmem:[#allocation17] sm:$0xff] %v4118
    // Predicated region
    $region74: #{tpu_custom_call.1} parent=1 // pred_check
      _
    $region75: #{tpu_custom_call.1} parent=1 // pred_check_branch
      %4123 = sbr.rel (0) target = $region77
    $region76: #{tpu_custom_call.1} parent=1 // pred_region
      %s4125 = ssub.s32 128, 128
      %4126 = vsyncadd [#allocation4], %s4125
      %s4128 = sshll.u32 [#allocation17], 4
      %s4129 = int_to_ptr.vmem [resolvable:$true] %s4128
      %4131 = dma.vmem_to_hbm [thread:$0]  %s4129, 128, %s9, [#allocation4]
    $region77: #{tpu_custom_call.1} parent=1 // pred_fallthru
      _
    // Predicated region
    $region78: #{tpu_custom_call.1} parent=1 // pred_check
      _
    $region79: #{tpu_custom_call.1} parent=1 // pred_check_branch
      %4133 = sbr.rel (0) target = $region81
    $region80: #{tpu_custom_call.1} parent=1 // pred_region
      %4134 = dma.done [#allocation4], 128
    $region81: #{tpu_custom_call.1} parent=1 // pred_fallthru
      _
    %4135 = vsyncpa [#allocation3], 1
    %4136 = vsyncpa [#allocation6], 1
    %4137 = vsyncpa [#allocation9], 1
    %4138 = vsyncpa [#allocation12], 1
    %4139 = vsyncpa [#allocation15], 1
    %4140 = vsyncpa [#allocation4], 1

</llo_original>
